<compile_context>
chip_gen: v5e
topology: v5e:2x2
jax: 0.10.0
libtpu: 0.0.40
codegen_flags: <defaults>
</compile_context>

<pallas_src>
import functools

import jax
import jax.numpy as jnp
from jax.experimental import pallas as pl
from jax.experimental.pallas import tpu as pltpu

_MM_DTYPE = jnp.bfloat16  # MXU operand dtype for weight matmuls (f32 accumulation)


def _mm(a, b):
    """bf16-operand, f32-accumulate matmul (MXU friendly on v6e/v7x)."""
    return jnp.dot(a.astype(_MM_DTYPE), b.astype(_MM_DTYPE),
                   preferred_element_type=jnp.float32)


def _layernorm(x, g, b, eps):
    mu = jnp.mean(x, axis=-1, keepdims=True)
    xc = x - mu
    var = jnp.mean(xc * xc, axis=-1, keepdims=True)
    return xc * jax.lax.rsqrt(var + eps) * g + b


def _pick_row_block(m):
    """Row-tile size: multiple of 8 that divides m and yields >=2 grid steps."""
    if m % 8 != 0:
        return m
    for bm in (512, 256, 128, 64, 32, 16, 8):
        if bm < m and m % bm == 0:
            return bm
    return m


# ----------------------------------------------------------------------------
# Fused Pallas kernels
# ----------------------------------------------------------------------------
def _linear_kernel(x_ref, w_ref, b_ref, o_ref):
    y = _mm(x_ref[...], w_ref[...]) + b_ref[...]
    o_ref[...] = y.astype(o_ref.dtype)


def linear(x, w, b):
    """Row-tiled fused linear: x (..., Din) @ w (Din, Dout) + b."""
    lead = x.shape[:-1]
    din = x.shape[-1]
    dout = w.shape[-1]
    x2 = x.reshape(-1, din)
    m = x2.shape[0]
    bm = _pick_row_block(m)
    out = pl.pallas_call(
        _linear_kernel,
        out_shape=jax.ShapeDtypeStruct((m, dout), x.dtype),
        grid=(m // bm,),
        in_specs=[pl.BlockSpec((bm, din), lambda i: (i, 0)),
                  pl.BlockSpec((din, dout), lambda i: (0, 0)),
                  pl.BlockSpec((1, dout), lambda i: (0, 0))],
        out_specs=pl.BlockSpec((bm, dout), lambda i: (i, 0)),
        compiler_params=pltpu.CompilerParams(dimension_semantics=("parallel",)),
    )(x2, w, b.reshape(1, dout))
    return out.reshape(*lead, dout)


def _add_ln_kernel(x_ref, r_ref, g_ref, b_ref, o_ref, *, eps):
    x = x_ref[...].astype(jnp.float32) + r_ref[...].astype(jnp.float32)
    o_ref[...] = _layernorm(x, g_ref[...], b_ref[...], eps).astype(o_ref.dtype)


def add_layernorm(x, residual, gamma, beta, eps=1e-5):
    """LayerNorm(residual + x), PyTorch nn.LayerNorm semantics."""
    lead = x.shape[:-1]
    d = x.shape[-1]
    x2 = x.reshape(-1, d)
    r2 = residual.reshape(-1, d)
    m = x2.shape[0]
    bm = _pick_row_block(m)
    out = pl.pallas_call(
        functools.partial(_add_ln_kernel, eps=eps),
        out_shape=jax.ShapeDtypeStruct((m, d), x.dtype),
        grid=(m // bm,),
        in_specs=[pl.BlockSpec((bm, d), lambda i: (i, 0)),
                  pl.BlockSpec((bm, d), lambda i: (i, 0)),
                  pl.BlockSpec((1, d), lambda i: (0, 0)),
                  pl.BlockSpec((1, d), lambda i: (0, 0))],
        out_specs=pl.BlockSpec((bm, d), lambda i: (i, 0)),
        compiler_params=pltpu.CompilerParams(dimension_semantics=("parallel",)),
    )(x2, r2, gamma.reshape(1, d), beta.reshape(1, d))
    return out.reshape(*lead, d)


def _mha_kernel(q_ref, kv_ref, wq_ref, bq_ref, wkv_ref, bkv_ref,
                wo_ref, bo_ref, g_ref, bb_ref, o_ref, *, h, d_k, d_v, eps):
    """Whole MultiHeadAttention block (QKV proj, all heads, out proj, +res, LN)."""
    nq = q_ref.shape[1]
    d = wo_ref.shape[1]
    xq = q_ref[0].astype(jnp.float32)     # (Nq, D)  residual = queries
    xkv = kv_ref[0].astype(jnp.float32)   # (Nk, D)

    q = _mm(xq, wq_ref[...]) + bq_ref[...]        # (Nq, h*d_k)
    kv = _mm(xkv, wkv_ref[...]) + bkv_ref[...]    # (Nk, h*(d_k+d_v)), lane-dense
    k = kv[:, : h * d_k]
    v = kv[:, h * d_k:]

    scale = 1.0 / (d_k ** 0.5)
    o = jnp.zeros((nq, d), jnp.float32) + bo_ref[...]
    for head in range(h):                          # unrolled at trace time
        qh = q[:, head * d_k:(head + 1) * d_k]
        kh = k[:, head * d_k:(head + 1) * d_k]
        vh = v[:, head * d_v:(head + 1) * d_v]
        s = jax.lax.dot_general(qh, kh, (((1,), (1,)), ((), ())),
                                preferred_element_type=jnp.float32) * scale
        s = s - jnp.max(s, axis=-1, keepdims=True)
        p = jnp.exp(s)
        p = p * pl.reciprocal(jnp.sum(p, axis=-1, keepdims=True), approx=True)
        oh = jnp.dot(p, vh, preferred_element_type=jnp.float32)       # (Nq, d_v)
        # accumulate output projection head-by-head (== concat + matmul)
        o = o + _mm(oh, wo_ref[head * d_v:(head + 1) * d_v, :])
    y = o + xq
    o_ref[0] = _layernorm(y, g_ref[...], bb_ref[...], eps).astype(o_ref.dtype)


def fused_mha(p, queries, keys, h, d_k, d_v, eps=1e-5):
    """queries:(B,Nq,D), keys==values:(B,Nk,D) -> LN(queries + MHA(...))."""
    b, nq, d = queries.shape
    nk = keys.shape[1]
    return pl.pallas_call(
        functools.partial(_mha_kernel, h=h, d_k=d_k, d_v=d_v, eps=eps),
        out_shape=jax.ShapeDtypeStruct((b, nq, d), queries.dtype),
        grid=(b,),
        in_specs=[
            pl.BlockSpec((1, nq, d), lambda i: (i, 0, 0)),
            pl.BlockSpec((1, nk, d), lambda i: (i, 0, 0)),
            pl.BlockSpec((d, h * d_k), lambda i: (0, 0)),
            pl.BlockSpec((1, h * d_k), lambda i: (0, 0)),
            pl.BlockSpec((d, h * (d_k + d_v)), lambda i: (0, 0)),
            pl.BlockSpec((1, h * (d_k + d_v)), lambda i: (0, 0)),
            pl.BlockSpec((h * d_v, d), lambda i: (0, 0)),
            pl.BlockSpec((1, d), lambda i: (0, 0)),
            pl.BlockSpec((1, d), lambda i: (0, 0)),
            pl.BlockSpec((1, d), lambda i: (0, 0)),
        ],
        out_specs=pl.BlockSpec((1, nq, d), lambda i: (i, 0, 0)),
        compiler_params=pltpu.CompilerParams(dimension_semantics=("parallel",)),
    )(queries, keys, p["wq"], p["bq"], p["wkv"], p["bkv"],
      p["wo"], p["bo"], p["ln_g"], p["ln_b"])


def _ffn_kernel(x_ref, w1_ref, b1_ref, w2_ref, b2_ref, g_ref, bb_ref, o_ref, *, eps):
    x = x_ref[...].astype(jnp.float32)
    hdn = jnp.maximum(_mm(x, w1_ref[...]) + b1_ref[...], 0.0)
    y = _mm(hdn, w2_ref[...]) + b2_ref[...]
    o_ref[...] = _layernorm(y + x, g_ref[...], bb_ref[...], eps).astype(o_ref.dtype)


def fused_ffn(p, x, eps=1e-5):
    """LN(x + w2(relu(w1 x))) in a single row-tiled kernel."""
    lead = x.shape[:-1]
    d = x.shape[-1]
    dff = p["w1"].shape[-1]
    x2 = x.reshape(-1, d)
    m = x2.shape[0]
    bm = _pick_row_block(m)
    out = pl.pallas_call(
        functools.partial(_ffn_kernel, eps=eps),
        out_shape=jax.ShapeDtypeStruct((m, d), x.dtype),
        grid=(m // bm,),
        in_specs=[pl.BlockSpec((bm, d), lambda i: (i, 0)),
                  pl.BlockSpec((d, dff), lambda i: (0, 0)),
                  pl.BlockSpec((1, dff), lambda i: (0, 0)),
                  pl.BlockSpec((dff, d), lambda i: (0, 0)),
                  pl.BlockSpec((1, d), lambda i: (0, 0)),
                  pl.BlockSpec((1, d), lambda i: (0, 0)),
                  pl.BlockSpec((1, d), lambda i: (0, 0))],
        out_specs=pl.BlockSpec((bm, d), lambda i: (i, 0)),
        compiler_params=pltpu.CompilerParams(dimension_semantics=("parallel",)),
    )(x2, p["w1"], p["b1"], p["w2"], p["b2"], p["ln_g"], p["ln_b"])
    return out.reshape(*lead, d)


def _shift_attn_kernel(res_ref, src_ref, m_ref, wk_ref, bk_ref,
                       wm_ref, bm_ref, g_ref, bb_ref, o_ref, *, h, eps):
    """Fused shift-head attention: value proj, per-head sampling matmul,
    output proj, residual add, LayerNorm — one batch element per grid step."""
    lq = res_ref.shape[1]
    d = wk_ref.shape[1]
    ch = d // h
    res = res_ref[0].astype(jnp.float32)          # (Lq, D)
    xs = src_ref[0].astype(jnp.float32)           # (S_tot, D)
    m_all = m_ref[0].astype(jnp.float32)          # (h*Lq, S_tot)

    v = _mm(xs, wk_ref[...]) + bk_ref[...]        # (S_tot, D)
    o = jnp.zeros((lq, d), jnp.float32) + bm_ref[...]
    for head in range(h):                          # unrolled
        mh = m_all[head * lq:(head + 1) * lq, :]   # (Lq, S_tot)
        vh = v[:, head * ch:(head + 1) * ch]       # (S_tot, ch)
        sampled = jnp.dot(mh, vh, preferred_element_type=jnp.float32)  # (Lq, ch)
        o = o + _mm(sampled, wm_ref[head * ch:(head + 1) * ch, :])
    y = o + res
    o_ref[0] = _layernorm(y, g_ref[...], bb_ref[...], eps).astype(o_ref.dtype)


def fused_shift_attention(p, src_res, src_cat, m_cat, ln_g, ln_b, h, eps=1e-5):
    b, lq, d = src_res.shape
    s_tot = src_cat.shape[1]
    return pl.pallas_call(
        functools.partial(_shift_attn_kernel, h=h, eps=eps),
        out_shape=jax.ShapeDtypeStruct((b, lq, d), src_res.dtype),
        grid=(b,),
        in_specs=[
            pl.BlockSpec((1, lq, d), lambda i: (i, 0, 0)),
            pl.BlockSpec((1, s_tot, d), lambda i: (i, 0, 0)),
            pl.BlockSpec((1, h * lq, s_tot), lambda i: (i, 0, 0)),
            pl.BlockSpec((d, d), lambda i: (0, 0)),
            pl.BlockSpec((1, d), lambda i: (0, 0)),
            pl.BlockSpec((d, d), lambda i: (0, 0)),
            pl.BlockSpec((1, d), lambda i: (0, 0)),
            pl.BlockSpec((1, d), lambda i: (0, 0)),
            pl.BlockSpec((1, d), lambda i: (0, 0)),
        ],
        out_specs=pl.BlockSpec((1, lq, d), lambda i: (i, 0, 0)),
        compiler_params=pltpu.CompilerParams(dimension_semantics=("parallel",)),
    )(src_res, src_cat, m_cat, p["w_k"], p["b_k"], p["w_m"], p["b_m"], ln_g, ln_b)


# ----------------------------------------------------------------------------
# Dense bilinear sampling-matrix construction (plain JAX, no gather)
# ----------------------------------------------------------------------------
def _build_sampling_matrix(ref, offsets, a, key_masks, spatial_shapes):
    """Fold bilinear weights, attention weights `a`, and key padding masks into
    one (B, h*Lq, S_total) matrix; sampling then becomes an MXU matmul.

    ref:(B,Lq,2)  offsets:(B,Lq,h,scales,K,2)  a:(B,Lq,h,scales,K)
    key_masks: list (per scale) of (B,Hk,Wk) bool or None.
    """
    bsz, lq, nh = a.shape[0], a.shape[1], a.shape[2]
    mats = []
    for l, (hk, wk) in enumerate(spatial_shapes):
        loc = ref[:, :, None, None, :] + offsets[:, :, :, l, :, :]   # (B,Lq,h,K,2)
        px = loc[..., 0] * (wk - 1)
        py = loc[..., 1] * (hk - 1)
        x0 = jnp.floor(px)
        y0 = jnp.floor(py)
        wx1 = px - x0
        wx0 = 1.0 - wx1
        wy1 = py - y0
        wy0 = 1.0 - wy1
        ys = jnp.arange(hk, dtype=jnp.float32)
        xs = jnp.arange(wk, dtype=jnp.float32)

        def corner(yc, xc, w):
            # border-clip behaviour (matches clipped gather).
            yc = jnp.clip(yc, 0.0, hk - 1.0)
            xc = jnp.clip(xc, 0.0, wk - 1.0)
            oh_y = (ys[None, None, None, None, :] == yc[..., None]).astype(jnp.float32)
            oh_x = (xs[None, None, None, None, :] == xc[..., None]).astype(jnp.float32)
            return w[..., None, None] * oh_y[..., :, None] * oh_x[..., None, :]

        wmat = (corner(y0, x0, wy0 * wx0) + corner(y0, x0 + 1.0, wy0 * wx1)
                + corner(y0 + 1.0, x0, wy1 * wx0) + corner(y0 + 1.0, x0 + 1.0, wy1 * wx1))
        m = jnp.sum(a[:, :, :, l, :, None, None] * wmat, axis=3)     # (B,Lq,h,Hk,Wk)
        if key_masks[l] is not None:
            m = m * (1.0 - key_masks[l].astype(jnp.float32))[:, None, None, :, :]
        mats.append(m.reshape(bsz, lq, nh, hk * wk))
    m_cat = jnp.concatenate(mats, axis=-1)                            # (B,Lq,h,S_tot)
    m_cat = jnp.transpose(m_cat, (0, 2, 1, 3))                        # (B,h,Lq,S_tot)
    return m_cat.reshape(bsz, nh * lq, m_cat.shape[-1]).astype(jnp.float32)


# ----------------------------------------------------------------------------
# Module forward functions
# ----------------------------------------------------------------------------
def shift_layer(p, src_tensors, ref_points, src_key_padding_masks, poses,
                src_querys, h, k):
    if src_key_padding_masks is None:
        src_key_padding_masks = [None] * len(src_tensors)
    if poses is None:
        poses = [None] * len(src_tensors)
    src_tensors = [s if pos is None else s + pos for s, pos in zip(src_tensors, poses)]
    scales = len(src_tensors)
    d = src_tensors[0].shape[-1]
    spatial_shapes = [(s.shape[1], s.shape[2]) for s in src_tensors]
    src_cat = jnp.concatenate(
        [s.reshape(s.shape[0], -1, d) for s in src_tensors], axis=1)  # (B,S_tot,D)

    outs = []
    for src, ref_point, src_query in zip(src_tensors, ref_points, src_querys):
        b, hq, wq, _ = src.shape
        lq = hq * wq
        # fused offsets + attention-weight projection (single matmul)
        offa = linear(src_query.reshape(b, lq, d), p["mhatt"]["w_offa"],
                      p["mhatt"]["b_offa"])
        n_off = h * scales * k * 2
        offsets = offa[..., :n_off].reshape(b, lq, h, scales, k, 2).astype(jnp.float32)
        a = offa[..., n_off:].reshape(b, lq, h, scales * k).astype(jnp.float32)
        # TODO(synk): the tap softmax (over scales*k) and the dense one-hot
        # bilinear weight construction stay in plain JAX (elementwise only, no
        # gather); the sampling contraction itself runs on the MXU in-kernel.
        a = jax.nn.softmax(a, axis=-1).reshape(b, lq, h, scales, k)
        ref = ref_point.reshape(b, lq, 2).astype(jnp.float32)
        m_cat = _build_sampling_matrix(ref, offsets, a, src_key_padding_masks,
                                       spatial_shapes)
        src_res = src.reshape(b, lq, d)
        out_ln = fused_shift_attention(p["mhatt"], src_res, src_cat, m_cat,
                                       p["ln_g"], p["ln_b"], h)
        out_ln = fused_ffn(p["pwff"], out_ln)
        outs.append(out_ln.reshape(b, hq, wq, d))
    return outs[0] if len(outs) == 1 else outs


def generate_ref_points(width, height):
    gy, gx = jnp.meshgrid(jnp.arange(height, dtype=jnp.float32),
                          jnp.arange(width, dtype=jnp.float32), indexing="ij")
    gy = gy / max(height - 1, 1)
    gx = gx / max(width - 1, 1)
    return jnp.stack([gx, gy], axis=-1)  # (H, W, 2), (x, y) in [0, 1]


def encoder_forward(params, inputs, attention_mask, pos, box_output, pos_emb, *,
                    n_layers, feat_h, feat_w, h, d_k, d_v, k):
    bs = inputs.shape[0]
    ref_point = generate_ref_points(feat_w, feat_h).astype(jnp.float32)
    ref_points = [jnp.broadcast_to(ref_point[None], (bs, feat_h, feat_w, 2))]
    mask_ = attention_mask.reshape(bs, feat_h, feat_w)
    src_masks = [mask_]

    x = inputs
    for i in range(n_layers):
        out = x
        # ---- QueryLayer (cross attention to box features) ----
        queries = out if pos is None else out + pos
        keys = box_output if pos_emb is None else box_output + pos_emb
        att = fused_mha(params["offset_layers"][i]["mhatt"], queries, keys,
                        h, d_k, d_v)
        offset_query = fused_ffn(params["offset_layers"][i]["pwff"], att)
        # ---- ShiftLayer ----
        src = out.reshape(bs, feat_h, feat_w, -1)
        query_ = offset_query.reshape(bs, feat_h, feat_w, -1)
        pos_ = pos.reshape(bs, feat_h, feat_w, -1)
        out2 = shift_layer(params["att_layers"][i], [src], ref_points,
                           src_masks, [pos_], [query_], h, k)
        out2 = out2.reshape(bs, feat_h * feat_w, -1)
        # ---- encoder residual + LayerNorm ----
        x = add_layernorm(out2, x,
                          params["norm_layers"][i]["g"],
                          params["norm_layers"][i]["b"])
    return x


# ----------------------------------------------------------------------------
# Deterministic parameter init (xavier_uniform weights, zero bias)
# ----------------------------------------------------------------------------
def _xavier(key, din, dout):
    limit = (6.0 / (din + dout)) ** 0.5
    return jax.random.uniform(key, (din, dout), jnp.float32, -limit, limit)


def _init_linear(key, din, dout):
    return _xavier(key, din, dout), jnp.zeros((dout,), jnp.float32)


def _init_mha(key, d_model, d_k, d_v, h):
    ks = jax.random.split(key, 4)
    wq, bq = _init_linear(ks[0], d_model, h * d_k)
    wk, bk = _init_linear(ks[1], d_model, h * d_k)
    wv, bv = _init_linear(ks[2], d_model, h * d_v)
    wo, bo = _init_linear(ks[3], h * d_v, d_model)
    return dict(wq=wq, bq=bq.reshape(1, -1),
                wkv=jnp.concatenate([wk, wv], axis=1),          # lane-dense fused KV
                bkv=jnp.concatenate([bk, bv]).reshape(1, -1),
                wo=wo, bo=bo.reshape(1, -1),
                ln_g=jnp.ones((1, d_model), jnp.float32),
                ln_b=jnp.zeros((1, d_model), jnp.float32))


def _init_pwff(key, d_model, d_ff):
    ks = jax.random.split(key, 2)
    w1, b1 = _init_linear(ks[0], d_model, d_ff)
    w2, b2 = _init_linear(ks[1], d_ff, d_model)
    return dict(w1=w1, b1=b1.reshape(1, -1), w2=w2, b2=b2.reshape(1, -1),
                ln_g=jnp.ones((1, d_model), jnp.float32),
                ln_b=jnp.zeros((1, d_model), jnp.float32))


def _init_shift_attn(key, d_model, h, k, scales):
    ks = jax.random.split(key, 4)
    w_k, b_k = _init_linear(ks[0], d_model, d_model)
    w_off, b_off = _init_linear(ks[1], d_model, h * scales * k * 2)
    w_a, b_a = _init_linear(ks[2], d_model, h * scales * k)
    w_m, b_m = _init_linear(ks[3], d_model, d_model)
    w_off = w_off * 0.1  # small offsets so sampling stays near the ref points
    return dict(w_k=w_k, b_k=b_k.reshape(1, -1),
                w_offa=jnp.concatenate([w_off, w_a], axis=1),   # fused off + A proj
                b_offa=jnp.concatenate([b_off, b_a]).reshape(1, -1),
                w_m=w_m, b_m=b_m.reshape(1, -1))


def init_encoder_params(key, n_layers, d_model, d_k, d_v, h, d_ff, k, scales):
    offset_layers, att_layers, norm_layers = [], [], []
    for _ in range(n_layers):
        k0, k1, k2, k3, key = jax.random.split(key, 5)
        offset_layers.append(dict(mhatt=_init_mha(k0, d_model, d_k, d_v, h),
                                  pwff=_init_pwff(k1, d_model, d_ff)))
        att_layers.append(dict(mhatt=_init_shift_attn(k2, d_model, h, k, scales),
                               pwff=_init_pwff(k3, d_model, d_ff),
                               ln_g=jnp.ones((1, d_model), jnp.float32),
                               ln_b=jnp.zeros((1, d_model), jnp.float32)))
        norm_layers.append(dict(g=jnp.ones((1, d_model), jnp.float32),
                                b=jnp.zeros((1, d_model), jnp.float32)))
    return dict(offset_layers=offset_layers, att_layers=att_layers,
                norm_layers=norm_layers)


# ----------------------------------------------------------------------------
if __name__ == "__main__":
    # Small, module-consistent shapes.
    N = 2               # encoder layers
    d_model = 64
    h = 4
    d_k = d_v = d_model // h
    d_ff = 128
    feat_h = feat_w = 4
    seq = feat_h * feat_w
    k_points = 2
    scales = 1
    bs = 2
    n_box = 8

    root = jax.random.PRNGKey(0)
    kp, kx, kpos, kbox, kpe = jax.random.split(root, 5)

    params = init_encoder_params(kp, N, d_model, d_k, d_v, h, d_ff, k_points, scales)

    x = jax.random.normal(kx, (bs, seq, d_model), jnp.float32)
    pos = jax.random.normal(kpos, (bs, seq, d_model), jnp.float32)
    box_output = jax.random.normal(kbox, (bs, n_box, d_model), jnp.float32)
    pos_emb = jax.random.normal(kpe, (bs, n_box, d_model), jnp.float32)
    # attention_mask: (bs, 1, 1, seq), True = padded position.
    attention_mask = jnp.zeros((bs, 1, 1, seq), jnp.bool_)
    attention_mask = attention_mask.at[1, :, :, -3:].set(True)

    fwd = jax.jit(functools.partial(
        encoder_forward, n_layers=N, feat_h=feat_h, feat_w=feat_w,
        h=h, d_k=d_k, d_v=d_v, k=k_points))

    out = fwd(params, x, attention_mask, pos, box_output, pos_emb)
    out = jax.block_until_ready(out)
    assert out.shape == (bs, seq, d_model)
    assert bool(jnp.all(jnp.isfinite(out)))
    print("KERNEL_OK")
</pallas_src>

<mosaic_0001>
module attributes {stable_mosaic.version = 11 : i64} {
  func.func @_mha_kernel(%arg0: i32, %arg1: memref<1x16x64xf32, #tpu.memory_space<vmem>>, %arg2: memref<1x8x64xf32, #tpu.memory_space<vmem>>, %arg3: memref<64x64xf32, #tpu.memory_space<vmem>>, %arg4: memref<1x64xf32, #tpu.memory_space<vmem>>, %arg5: memref<64x128xf32, #tpu.memory_space<vmem>>, %arg6: memref<1x128xf32, #tpu.memory_space<vmem>>, %arg7: memref<64x64xf32, #tpu.memory_space<vmem>>, %arg8: memref<1x64xf32, #tpu.memory_space<vmem>>, %arg9: memref<1x64xf32, #tpu.memory_space<vmem>>, %arg10: memref<1x64xf32, #tpu.memory_space<vmem>>, %arg11: memref<1x16x64xf32, #tpu.memory_space<vmem>>) attributes {dimension_semantics = [#tpu.dimension_semantics<parallel>], iteration_bounds = array<i64: 2>, scalar_prefetch = 0 : i64, scratch_operands = 0 : i64, tpu.core_type = #tpu.core_type<tc>, window_params = [{transform_indices = @transform_0, window_bounds = array<i64: 1, 16, 64>}, {transform_indices = @transform_1, window_bounds = array<i64: 1, 8, 64>}, {pipeline_mode = #tpu.pipeline_mode<synchronous>, transform_indices = @transform_2, window_bounds = array<i64: 64, 64>}, {pipeline_mode = #tpu.pipeline_mode<synchronous>, transform_indices = @transform_3, window_bounds = array<i64: 1, 64>}, {pipeline_mode = #tpu.pipeline_mode<synchronous>, transform_indices = @transform_4, window_bounds = array<i64: 64, 128>}, {pipeline_mode = #tpu.pipeline_mode<synchronous>, transform_indices = @transform_5, window_bounds = array<i64: 1, 128>}, {pipeline_mode = #tpu.pipeline_mode<synchronous>, transform_indices = @transform_6, window_bounds = array<i64: 64, 64>}, {pipeline_mode = #tpu.pipeline_mode<synchronous>, transform_indices = @transform_7, window_bounds = array<i64: 1, 64>}, {pipeline_mode = #tpu.pipeline_mode<synchronous>, transform_indices = @transform_8, window_bounds = array<i64: 1, 64>}, {pipeline_mode = #tpu.pipeline_mode<synchronous>, transform_indices = @transform_9, window_bounds = array<i64: 1, 64>}, {transform_indices = @transform_10, window_bounds = array<i64: 1, 16, 64>}]} {
    %c0 = arith.constant 0 : index
    %c0_0 = arith.constant 0 : index
    %c0_1 = arith.constant 0 : index
    %0 = vector.load %arg1[%c0, %c0_0, %c0_1] : memref<1x16x64xf32, #tpu.memory_space<vmem>>, vector<1x16x64xf32>
    %1 = vector.shape_cast %0 : vector<1x16x64xf32> to vector<16x64xf32>
    %c0_2 = arith.constant 0 : index
    %c0_3 = arith.constant 0 : index
    %c0_4 = arith.constant 0 : index
    %2 = vector.load %arg2[%c0_2, %c0_3, %c0_4] : memref<1x8x64xf32, #tpu.memory_space<vmem>>, vector<1x8x64xf32>
    %3 = vector.shape_cast %2 : vector<1x8x64xf32> to vector<8x64xf32>
    %c0_5 = arith.constant 0 : index
    %c0_6 = arith.constant 0 : index
    %4 = vector.load %arg3[%c0_5, %c0_6] : memref<64x64xf32, #tpu.memory_space<vmem>>, vector<64x64xf32>
    %5 = arith.truncf %1 : vector<16x64xf32> to vector<16x64xbf16>
    %6 = arith.truncf %4 : vector<64x64xf32> to vector<64x64xbf16>
    %cst = arith.constant dense<0.000000e+00> : vector<16x64xf32>
    %7 = tpu.matmul %5, %6, %cst {dimension_numbers = #tpu.dot_dimension_numbers<[1], [0], [0], [1], [0, 0, 1, 1], [], []>} : vector<16x64xbf16>, vector<64x64xbf16>, vector<16x64xf32> -> vector<16x64xf32>
    %c0_7 = arith.constant 0 : index
    %c0_8 = arith.constant 0 : index
    %8 = vector.load %arg4[%c0_7, %c0_8] : memref<1x64xf32, #tpu.memory_space<vmem>>, vector<1x64xf32>
    %9 = vector.broadcast %8 : vector<1x64xf32> to vector<16x64xf32>
    %10 = arith.addf %7, %9 : vector<16x64xf32>
    %c0_9 = arith.constant 0 : index
    %c0_10 = arith.constant 0 : index
    %11 = vector.load %arg5[%c0_9, %c0_10] : memref<64x128xf32, #tpu.memory_space<vmem>>, vector<64x128xf32>
    %12 = arith.truncf %3 : vector<8x64xf32> to vector<8x64xbf16>
    %13 = arith.truncf %11 : vector<64x128xf32> to vector<64x128xbf16>
    %cst_11 = arith.constant dense<0.000000e+00> : vector<8x128xf32>
    %14 = tpu.matmul %12, %13, %cst_11 {dimension_numbers = #tpu.dot_dimension_numbers<[1], [0], [0], [1], [0, 0, 1, 1], [], []>} : vector<8x64xbf16>, vector<64x128xbf16>, vector<8x128xf32> -> vector<8x128xf32>
    %c0_12 = arith.constant 0 : index
    %c0_13 = arith.constant 0 : index
    %15 = vector.load %arg6[%c0_12, %c0_13] : memref<1x128xf32, #tpu.memory_space<vmem>>, vector<1x128xf32>
    %16 = vector.broadcast %15 : vector<1x128xf32> to vector<8x128xf32>
    %17 = arith.addf %14, %16 : vector<8x128xf32>
    %18 = vector.extract_strided_slice %17 {offsets = [0, 0], sizes = [8, 64], strides = [1, 1]} : vector<8x128xf32> to vector<8x64xf32>
    %19 = vector.extract_strided_slice %17 {offsets = [0, 64], sizes = [8, 64], strides = [1, 1]} : vector<8x128xf32> to vector<8x64xf32>
    %cst_14 = arith.constant 0.000000e+00 : f32
    %20 = vector.broadcast %cst_14 : f32 to vector<16x64xf32>
    %c0_15 = arith.constant 0 : index
    %c0_16 = arith.constant 0 : index
    %21 = vector.load %arg8[%c0_15, %c0_16] : memref<1x64xf32, #tpu.memory_space<vmem>>, vector<1x64xf32>
    %22 = vector.broadcast %21 : vector<1x64xf32> to vector<16x64xf32>
    %23 = arith.addf %20, %22 : vector<16x64xf32>
    %24 = vector.extract_strided_slice %10 {offsets = [0, 0], sizes = [16, 16], strides = [1, 1]} : vector<16x64xf32> to vector<16x16xf32>
    %25 = vector.extract_strided_slice %18 {offsets = [0, 0], sizes = [8, 16], strides = [1, 1]} : vector<8x64xf32> to vector<8x16xf32>
    %26 = vector.extract_strided_slice %19 {offsets = [0, 0], sizes = [8, 16], strides = [1, 1]} : vector<8x64xf32> to vector<8x16xf32>
    %cst_17 = arith.constant dense<0.000000e+00> : vector<16x8xf32>
    %27 = tpu.matmul %24, %25, %cst_17 {dimension_numbers = #tpu.dot_dimension_numbers<[1], [1], [0], [0], [0, 0, 1, 0], [], []>} : vector<16x16xf32>, vector<8x16xf32>, vector<16x8xf32> -> vector<16x8xf32>
    %cst_18 = arith.constant 2.500000e-01 : f32
    %28 = vector.broadcast %cst_18 : f32 to vector<16x8xf32>
    %29 = arith.mulf %27, %28 : vector<16x8xf32>
    %cst_19 = arith.constant dense<0xFF800000> : vector<16xf32>
    %30 = vector.multi_reduction <maximumf>, %29, %cst_19 [1] : vector<16x8xf32> to vector<16xf32>
    %31 = vector.shape_cast %30 : vector<16xf32> to vector<16x1xf32>
    %32 = vector.broadcast %31 : vector<16x1xf32> to vector<16x8xf32>
    %33 = arith.subf %29, %32 : vector<16x8xf32>
    %34 = math.exp %33 : vector<16x8xf32>
    %cst_20 = arith.constant dense<0.000000e+00> : vector<16xf32>
    %35 = vector.multi_reduction <add>, %34, %cst_20 [1] : vector<16x8xf32> to vector<16xf32>
    %36 = vector.shape_cast %35 : vector<16xf32> to vector<16x1xf32>
    %37 = tpu.reciprocal %36 {approx = true} : vector<16x1xf32> -> vector<16x1xf32>
    %38 = vector.broadcast %37 : vector<16x1xf32> to vector<16x8xf32>
    %39 = arith.mulf %34, %38 : vector<16x8xf32>
    %cst_21 = arith.constant dense<0.000000e+00> : vector<16x16xf32>
    %40 = tpu.matmul %39, %26, %cst_21 {dimension_numbers = #tpu.dot_dimension_numbers<[1], [0], [0], [1], [0, 0, 1, 1], [], []>} : vector<16x8xf32>, vector<8x16xf32>, vector<16x16xf32> -> vector<16x16xf32>
    %c0_22 = arith.constant 0 : index
    %c0_23 = arith.constant 0 : index
    %41 = vector.load %arg7[%c0_22, %c0_23] : memref<64x64xf32, #tpu.memory_space<vmem>>, vector<16x64xf32>
    %42 = arith.truncf %40 : vector<16x16xf32> to vector<16x16xbf16>
    %43 = arith.truncf %41 : vector<16x64xf32> to vector<16x64xbf16>
    %cst_24 = arith.constant dense<0.000000e+00> : vector<16x64xf32>
    %44 = tpu.matmul %42, %43, %cst_24 {dimension_numbers = #tpu.dot_dimension_numbers<[1], [0], [0], [1], [0, 0, 1, 1], [], []>} : vector<16x16xbf16>, vector<16x64xbf16>, vector<16x64xf32> -> vector<16x64xf32>
    %45 = arith.addf %23, %44 : vector<16x64xf32>
    %46 = vector.extract_strided_slice %10 {offsets = [0, 16], sizes = [16, 16], strides = [1, 1]} : vector<16x64xf32> to vector<16x16xf32>
    %47 = vector.extract_strided_slice %18 {offsets = [0, 16], sizes = [8, 16], strides = [1, 1]} : vector<8x64xf32> to vector<8x16xf32>
    %48 = vector.extract_strided_slice %19 {offsets = [0, 16], sizes = [8, 16], strides = [1, 1]} : vector<8x64xf32> to vector<8x16xf32>
    %cst_25 = arith.constant dense<0.000000e+00> : vector<16x8xf32>
    %49 = tpu.matmul %46, %47, %cst_25 {dimension_numbers = #tpu.dot_dimension_numbers<[1], [1], [0], [0], [0, 0, 1, 0], [], []>} : vector<16x16xf32>, vector<8x16xf32>, vector<16x8xf32> -> vector<16x8xf32>
    %cst_26 = arith.constant 2.500000e-01 : f32
    %50 = vector.broadcast %cst_26 : f32 to vector<16x8xf32>
    %51 = arith.mulf %49, %50 : vector<16x8xf32>
    %cst_27 = arith.constant dense<0xFF800000> : vector<16xf32>
    %52 = vector.multi_reduction <maximumf>, %51, %cst_27 [1] : vector<16x8xf32> to vector<16xf32>
    %53 = vector.shape_cast %52 : vector<16xf32> to vector<16x1xf32>
    %54 = vector.broadcast %53 : vector<16x1xf32> to vector<16x8xf32>
    %55 = arith.subf %51, %54 : vector<16x8xf32>
    %56 = math.exp %55 : vector<16x8xf32>
    %cst_28 = arith.constant dense<0.000000e+00> : vector<16xf32>
    %57 = vector.multi_reduction <add>, %56, %cst_28 [1] : vector<16x8xf32> to vector<16xf32>
    %58 = vector.shape_cast %57 : vector<16xf32> to vector<16x1xf32>
    %59 = tpu.reciprocal %58 {approx = true} : vector<16x1xf32> -> vector<16x1xf32>
    %60 = vector.broadcast %59 : vector<16x1xf32> to vector<16x8xf32>
    %61 = arith.mulf %56, %60 : vector<16x8xf32>
    %cst_29 = arith.constant dense<0.000000e+00> : vector<16x16xf32>
    %62 = tpu.matmul %61, %48, %cst_29 {dimension_numbers = #tpu.dot_dimension_numbers<[1], [0], [0], [1], [0, 0, 1, 1], [], []>} : vector<16x8xf32>, vector<8x16xf32>, vector<16x16xf32> -> vector<16x16xf32>
    %c16 = arith.constant 16 : index
    %c0_30 = arith.constant 0 : index
    %63 = vector.load %arg7[%c16, %c0_30] : memref<64x64xf32, #tpu.memory_space<vmem>>, vector<16x64xf32>
    %64 = arith.truncf %62 : vector<16x16xf32> to vector<16x16xbf16>
    %65 = arith.truncf %63 : vector<16x64xf32> to vector<16x64xbf16>
    %cst_31 = arith.constant dense<0.000000e+00> : vector<16x64xf32>
    %66 = tpu.matmul %64, %65, %cst_31 {dimension_numbers = #tpu.dot_dimension_numbers<[1], [0], [0], [1], [0, 0, 1, 1], [], []>} : vector<16x16xbf16>, vector<16x64xbf16>, vector<16x64xf32> -> vector<16x64xf32>
    %67 = arith.addf %45, %66 : vector<16x64xf32>
    %68 = vector.extract_strided_slice %10 {offsets = [0, 32], sizes = [16, 16], strides = [1, 1]} : vector<16x64xf32> to vector<16x16xf32>
    %69 = vector.extract_strided_slice %18 {offsets = [0, 32], sizes = [8, 16], strides = [1, 1]} : vector<8x64xf32> to vector<8x16xf32>
    %70 = vector.extract_strided_slice %19 {offsets = [0, 32], sizes = [8, 16], strides = [1, 1]} : vector<8x64xf32> to vector<8x16xf32>
    %cst_32 = arith.constant dense<0.000000e+00> : vector<16x8xf32>
    %71 = tpu.matmul %68, %69, %cst_32 {dimension_numbers = #tpu.dot_dimension_numbers<[1], [1], [0], [0], [0, 0, 1, 0], [], []>} : vector<16x16xf32>, vector<8x16xf32>, vector<16x8xf32> -> vector<16x8xf32>
    %cst_33 = arith.constant 2.500000e-01 : f32
    %72 = vector.broadcast %cst_33 : f32 to vector<16x8xf32>
    %73 = arith.mulf %71, %72 : vector<16x8xf32>
    %cst_34 = arith.constant dense<0xFF800000> : vector<16xf32>
    %74 = vector.multi_reduction <maximumf>, %73, %cst_34 [1] : vector<16x8xf32> to vector<16xf32>
    %75 = vector.shape_cast %74 : vector<16xf32> to vector<16x1xf32>
    %76 = vector.broadcast %75 : vector<16x1xf32> to vector<16x8xf32>
    %77 = arith.subf %73, %76 : vector<16x8xf32>
    %78 = math.exp %77 : vector<16x8xf32>
    %cst_35 = arith.constant dense<0.000000e+00> : vector<16xf32>
    %79 = vector.multi_reduction <add>, %78, %cst_35 [1] : vector<16x8xf32> to vector<16xf32>
    %80 = vector.shape_cast %79 : vector<16xf32> to vector<16x1xf32>
    %81 = tpu.reciprocal %80 {approx = true} : vector<16x1xf32> -> vector<16x1xf32>
    %82 = vector.broadcast %81 : vector<16x1xf32> to vector<16x8xf32>
    %83 = arith.mulf %78, %82 : vector<16x8xf32>
    %cst_36 = arith.constant dense<0.000000e+00> : vector<16x16xf32>
    %84 = tpu.matmul %83, %70, %cst_36 {dimension_numbers = #tpu.dot_dimension_numbers<[1], [0], [0], [1], [0, 0, 1, 1], [], []>} : vector<16x8xf32>, vector<8x16xf32>, vector<16x16xf32> -> vector<16x16xf32>
    %c32 = arith.constant 32 : index
    %c0_37 = arith.constant 0 : index
    %85 = vector.load %arg7[%c32, %c0_37] : memref<64x64xf32, #tpu.memory_space<vmem>>, vector<16x64xf32>
    %86 = arith.truncf %84 : vector<16x16xf32> to vector<16x16xbf16>
    %87 = arith.truncf %85 : vector<16x64xf32> to vector<16x64xbf16>
    %cst_38 = arith.constant dense<0.000000e+00> : vector<16x64xf32>
    %88 = tpu.matmul %86, %87, %cst_38 {dimension_numbers = #tpu.dot_dimension_numbers<[1], [0], [0], [1], [0, 0, 1, 1], [], []>} : vector<16x16xbf16>, vector<16x64xbf16>, vector<16x64xf32> -> vector<16x64xf32>
    %89 = arith.addf %67, %88 : vector<16x64xf32>
    %90 = vector.extract_strided_slice %10 {offsets = [0, 48], sizes = [16, 16], strides = [1, 1]} : vector<16x64xf32> to vector<16x16xf32>
    %91 = vector.extract_strided_slice %18 {offsets = [0, 48], sizes = [8, 16], strides = [1, 1]} : vector<8x64xf32> to vector<8x16xf32>
    %92 = vector.extract_strided_slice %19 {offsets = [0, 48], sizes = [8, 16], strides = [1, 1]} : vector<8x64xf32> to vector<8x16xf32>
    %cst_39 = arith.constant dense<0.000000e+00> : vector<16x8xf32>
    %93 = tpu.matmul %90, %91, %cst_39 {dimension_numbers = #tpu.dot_dimension_numbers<[1], [1], [0], [0], [0, 0, 1, 0], [], []>} : vector<16x16xf32>, vector<8x16xf32>, vector<16x8xf32> -> vector<16x8xf32>
    %cst_40 = arith.constant 2.500000e-01 : f32
    %94 = vector.broadcast %cst_40 : f32 to vector<16x8xf32>
    %95 = arith.mulf %93, %94 : vector<16x8xf32>
    %cst_41 = arith.constant dense<0xFF800000> : vector<16xf32>
    %96 = vector.multi_reduction <maximumf>, %95, %cst_41 [1] : vector<16x8xf32> to vector<16xf32>
    %97 = vector.shape_cast %96 : vector<16xf32> to vector<16x1xf32>
    %98 = vector.broadcast %97 : vector<16x1xf32> to vector<16x8xf32>
    %99 = arith.subf %95, %98 : vector<16x8xf32>
    %100 = math.exp %99 : vector<16x8xf32>
    %cst_42 = arith.constant dense<0.000000e+00> : vector<16xf32>
    %101 = vector.multi_reduction <add>, %100, %cst_42 [1] : vector<16x8xf32> to vector<16xf32>
    %102 = vector.shape_cast %101 : vector<16xf32> to vector<16x1xf32>
    %103 = tpu.reciprocal %102 {approx = true} : vector<16x1xf32> -> vector<16x1xf32>
    %104 = vector.broadcast %103 : vector<16x1xf32> to vector<16x8xf32>
    %105 = arith.mulf %100, %104 : vector<16x8xf32>
    %cst_43 = arith.constant dense<0.000000e+00> : vector<16x16xf32>
    %106 = tpu.matmul %105, %92, %cst_43 {dimension_numbers = #tpu.dot_dimension_numbers<[1], [0], [0], [1], [0, 0, 1, 1], [], []>} : vector<16x8xf32>, vector<8x16xf32>, vector<16x16xf32> -> vector<16x16xf32>
    %c48 = arith.constant 48 : index
    %c0_44 = arith.constant 0 : index
    %107 = vector.load %arg7[%c48, %c0_44] : memref<64x64xf32, #tpu.memory_space<vmem>>, vector<16x64xf32>
    %108 = arith.truncf %106 : vector<16x16xf32> to vector<16x16xbf16>
    %109 = arith.truncf %107 : vector<16x64xf32> to vector<16x64xbf16>
    %cst_45 = arith.constant dense<0.000000e+00> : vector<16x64xf32>
    %110 = tpu.matmul %108, %109, %cst_45 {dimension_numbers = #tpu.dot_dimension_numbers<[1], [0], [0], [1], [0, 0, 1, 1], [], []>} : vector<16x16xbf16>, vector<16x64xbf16>, vector<16x64xf32> -> vector<16x64xf32>
    %111 = arith.addf %89, %110 : vector<16x64xf32>
    %112 = arith.addf %111, %1 : vector<16x64xf32>
    %c0_46 = arith.constant 0 : index
    %c0_47 = arith.constant 0 : index
    %113 = vector.load %arg9[%c0_46, %c0_47] : memref<1x64xf32, #tpu.memory_space<vmem>>, vector<1x64xf32>
    %c0_48 = arith.constant 0 : index
    %c0_49 = arith.constant 0 : index
    %114 = vector.load %arg10[%c0_48, %c0_49] : memref<1x64xf32, #tpu.memory_space<vmem>>, vector<1x64xf32>
    %cst_50 = arith.constant dense<0.000000e+00> : vector<16xf32>
    %115 = vector.multi_reduction <add>, %112, %cst_50 [1] : vector<16x64xf32> to vector<16xf32>
    %116 = vector.shape_cast %115 : vector<16xf32> to vector<16x1xf32>
    %cst_51 = arith.constant 6.400000e+01 : f32
    %117 = vector.broadcast %cst_51 : f32 to vector<16x1xf32>
    %118 = arith.divf %116, %117 : vector<16x1xf32>
    %119 = vector.broadcast %118 : vector<16x1xf32> to vector<16x64xf32>
    %120 = arith.subf %112, %119 : vector<16x64xf32>
    %121 = arith.mulf %120, %120 : vector<16x64xf32>
    %cst_52 = arith.constant dense<0.000000e+00> : vector<16xf32>
    %122 = vector.multi_reduction <add>, %121, %cst_52 [1] : vector<16x64xf32> to vector<16xf32>
    %123 = vector.shape_cast %122 : vector<16xf32> to vector<16x1xf32>
    %cst_53 = arith.constant 6.400000e+01 : f32
    %124 = vector.broadcast %cst_53 : f32 to vector<16x1xf32>
    %125 = arith.divf %123, %124 : vector<16x1xf32>
    %cst_54 = arith.constant 9.99999974E-6 : f32
    %126 = vector.broadcast %cst_54 : f32 to vector<16x1xf32>
    %127 = arith.addf %125, %126 : vector<16x1xf32>
    %128 = math.rsqrt %127 : vector<16x1xf32>
    %129 = vector.broadcast %128 : vector<16x1xf32> to vector<16x64xf32>
    %130 = arith.mulf %120, %129 : vector<16x64xf32>
    %131 = vector.broadcast %113 : vector<1x64xf32> to vector<16x64xf32>
    %132 = arith.mulf %130, %131 : vector<16x64xf32>
    %133 = vector.broadcast %114 : vector<1x64xf32> to vector<16x64xf32>
    %134 = arith.addf %132, %133 : vector<16x64xf32>
    %c0_55 = arith.constant 0 : index
    %c0_56 = arith.constant 0 : index
    %c0_57 = arith.constant 0 : index
    %135 = vector.load %arg11[%c0_55, %c0_56, %c0_57] : memref<1x16x64xf32, #tpu.memory_space<vmem>>, vector<1x16x64xf32>
    %136 = vector.shape_cast %135 : vector<1x16x64xf32> to vector<16x64xf32>
    %137 = vector.shape_cast %134 : vector<16x64xf32> to vector<1x16x64xf32>
    tpu.vector_store %arg11[%c0_55, %c0_56, %c0_57], %137 {strides = array<i32>} : memref<1x16x64xf32, #tpu.memory_space<vmem>>, vector<1x16x64xf32>,
    return
  }
  func.func @transform_0(%arg0: i32) -> (i32, i32, i32) {
    %c0_i32 = arith.constant 0 : i32
    %c0_i32_0 = arith.constant 0 : i32
    %c0_i32_1 = arith.constant 0 : i32
    return %arg0, %c0_i32, %c0_i32_0 : i32, i32, i32
  }
  func.func @transform_1(%arg0: i32) -> (i32, i32, i32) {
    %c0_i32 = arith.constant 0 : i32
    %c0_i32_0 = arith.constant 0 : i32
    %c0_i32_1 = arith.constant 0 : i32
    return %arg0, %c0_i32, %c0_i32_0 : i32, i32, i32
  }
  func.func @transform_2(%arg0: i32) -> (i32, i32) {
    %c0_i32 = arith.constant 0 : i32
    %c0_i32_0 = arith.constant 0 : i32
    %c0_i32_1 = arith.constant 0 : i32
    return %c0_i32, %c0_i32_0 : i32, i32
  }
  func.func @transform_3(%arg0: i32) -> (i32, i32) {
    %c0_i32 = arith.constant 0 : i32
    %c0_i32_0 = arith.constant 0 : i32
    %c0_i32_1 = arith.constant 0 : i32
    return %c0_i32, %c0_i32_0 : i32, i32
  }
  func.func @transform_4(%arg0: i32) -> (i32, i32) {
    %c0_i32 = arith.constant 0 : i32
    %c0_i32_0 = arith.constant 0 : i32
    %c0_i32_1 = arith.constant 0 : i32
    return %c0_i32, %c0_i32_0 : i32, i32
  }
  func.func @transform_5(%arg0: i32) -> (i32, i32) {
    %c0_i32 = arith.constant 0 : i32
    %c0_i32_0 = arith.constant 0 : i32
    %c0_i32_1 = arith.constant 0 : i32
    return %c0_i32, %c0_i32_0 : i32, i32
  }
  func.func @transform_6(%arg0: i32) -> (i32, i32) {
    %c0_i32 = arith.constant 0 : i32
    %c0_i32_0 = arith.constant 0 : i32
    %c0_i32_1 = arith.constant 0 : i32
    return %c0_i32, %c0_i32_0 : i32, i32
  }
  func.func @transform_7(%arg0: i32) -> (i32, i32) {
    %c0_i32 = arith.constant 0 : i32
    %c0_i32_0 = arith.constant 0 : i32
    %c0_i32_1 = arith.constant 0 : i32
    return %c0_i32, %c0_i32_0 : i32, i32
  }
  func.func @transform_8(%arg0: i32) -> (i32, i32) {
    %c0_i32 = arith.constant 0 : i32
    %c0_i32_0 = arith.constant 0 : i32
    %c0_i32_1 = arith.constant 0 : i32
    return %c0_i32, %c0_i32_0 : i32, i32
  }
  func.func @transform_9(%arg0: i32) -> (i32, i32) {
    %c0_i32 = arith.constant 0 : i32
    %c0_i32_0 = arith.constant 0 : i32
    %c0_i32_1 = arith.constant 0 : i32
    return %c0_i32, %c0_i32_0 : i32, i32
  }
  func.func @transform_10(%arg0: i32) -> (i32, i32, i32) {
    %c0_i32 = arith.constant 0 : i32
    %c0_i32_0 = arith.constant 0 : i32
    %c0_i32_1 = arith.constant 0 : i32
    return %arg0, %c0_i32, %c0_i32_0 : i32, i32, i32
  }
}

module attributes {stable_mosaic.version = 11 : i64} {
  func.func @_ffn_kernel(%arg0: i32, %arg1: memref<16x64xf32, #tpu.memory_space<vmem>>, %arg2: memref<64x128xf32, #tpu.memory_space<vmem>>, %arg3: memref<1x128xf32, #tpu.memory_space<vmem>>, %arg4: memref<128x64xf32, #tpu.memory_space<vmem>>, %arg5: memref<1x64xf32, #tpu.memory_space<vmem>>, %arg6: memref<1x64xf32, #tpu.memory_space<vmem>>, %arg7: memref<1x64xf32, #tpu.memory_space<vmem>>, %arg8: memref<16x64xf32, #tpu.memory_space<vmem>>) attributes {dimension_semantics = [#tpu.dimension_semantics<parallel>], iteration_bounds = array<i64: 2>, scalar_prefetch = 0 : i64, scratch_operands = 0 : i64, tpu.core_type = #tpu.core_type<tc>, window_params = [{transform_indices = @transform_0, window_bounds = array<i64: 16, 64>}, {pipeline_mode = #tpu.pipeline_mode<synchronous>, transform_indices = @transform_1, window_bounds = array<i64: 64, 128>}, {pipeline_mode = #tpu.pipeline_mode<synchronous>, transform_indices = @transform_2, window_bounds = array<i64: 1, 128>}, {pipeline_mode = #tpu.pipeline_mode<synchronous>, transform_indices = @transform_3, window_bounds = array<i64: 128, 64>}, {pipeline_mode = #tpu.pipeline_mode<synchronous>, transform_indices = @transform_4, window_bounds = array<i64: 1, 64>}, {pipeline_mode = #tpu.pipeline_mode<synchronous>, transform_indices = @transform_5, window_bounds = array<i64: 1, 64>}, {pipeline_mode = #tpu.pipeline_mode<synchronous>, transform_indices = @transform_6, window_bounds = array<i64: 1, 64>}, {transform_indices = @transform_7, window_bounds = array<i64: 16, 64>}]} {
    %c0 = arith.constant 0 : index
    %c0_0 = arith.constant 0 : index
    %0 = vector.load %arg1[%c0, %c0_0] : memref<16x64xf32, #tpu.memory_space<vmem>>, vector<16x64xf32>
    %c0_1 = arith.constant 0 : index
    %c0_2 = arith.constant 0 : index
    %1 = vector.load %arg2[%c0_1, %c0_2] : memref<64x128xf32, #tpu.memory_space<vmem>>, vector<64x128xf32>
    %2 = arith.truncf %0 : vector<16x64xf32> to vector<16x64xbf16>
    %3 = arith.truncf %1 : vector<64x128xf32> to vector<64x128xbf16>
    %cst = arith.constant dense<0.000000e+00> : vector<16x128xf32>
    %4 = tpu.matmul %2, %3, %cst {dimension_numbers = #tpu.dot_dimension_numbers<[1], [0], [0], [1], [0, 0, 1, 1], [], []>} : vector<16x64xbf16>, vector<64x128xbf16>, vector<16x128xf32> -> vector<16x128xf32>
    %c0_3 = arith.constant 0 : index
    %c0_4 = arith.constant 0 : index
    %5 = vector.load %arg3[%c0_3, %c0_4] : memref<1x128xf32, #tpu.memory_space<vmem>>, vector<1x128xf32>
    %6 = vector.broadcast %5 : vector<1x128xf32> to vector<16x128xf32>
    %7 = arith.addf %4, %6 : vector<16x128xf32>
    %cst_5 = arith.constant 0.000000e+00 : f32
    %8 = vector.broadcast %cst_5 : f32 to vector<16x128xf32>
    %9 = arith.maximumf %7, %8 : vector<16x128xf32>
    %c0_6 = arith.constant 0 : index
    %c0_7 = arith.constant 0 : index
    %10 = vector.load %arg4[%c0_6, %c0_7] : memref<128x64xf32, #tpu.memory_space<vmem>>, vector<128x64xf32>
    %11 = arith.truncf %9 : vector<16x128xf32> to vector<16x128xbf16>
    %12 = arith.truncf %10 : vector<128x64xf32> to vector<128x64xbf16>
    %cst_8 = arith.constant dense<0.000000e+00> : vector<16x64xf32>
    %13 = tpu.matmul %11, %12, %cst_8 {dimension_numbers = #tpu.dot_dimension_numbers<[1], [0], [0], [1], [0, 0, 1, 1], [], []>} : vector<16x128xbf16>, vector<128x64xbf16>, vector<16x64xf32> -> vector<16x64xf32>
    %c0_9 = arith.constant 0 : index
    %c0_10 = arith.constant 0 : index
    %14 = vector.load %arg5[%c0_9, %c0_10] : memref<1x64xf32, #tpu.memory_space<vmem>>, vector<1x64xf32>
    %15 = vector.broadcast %14 : vector<1x64xf32> to vector<16x64xf32>
    %16 = arith.addf %13, %15 : vector<16x64xf32>
    %17 = arith.addf %16, %0 : vector<16x64xf32>
    %c0_11 = arith.constant 0 : index
    %c0_12 = arith.constant 0 : index
    %18 = vector.load %arg6[%c0_11, %c0_12] : memref<1x64xf32, #tpu.memory_space<vmem>>, vector<1x64xf32>
    %c0_13 = arith.constant 0 : index
    %c0_14 = arith.constant 0 : index
    %19 = vector.load %arg7[%c0_13, %c0_14] : memref<1x64xf32, #tpu.memory_space<vmem>>, vector<1x64xf32>
    %cst_15 = arith.constant dense<0.000000e+00> : vector<16xf32>
    %20 = vector.multi_reduction <add>, %17, %cst_15 [1] : vector<16x64xf32> to vector<16xf32>
    %21 = vector.shape_cast %20 : vector<16xf32> to vector<16x1xf32>
    %cst_16 = arith.constant 6.400000e+01 : f32
    %22 = vector.broadcast %cst_16 : f32 to vector<16x1xf32>
    %23 = arith.divf %21, %22 : vector<16x1xf32>
    %24 = vector.broadcast %23 : vector<16x1xf32> to vector<16x64xf32>
    %25 = arith.subf %17, %24 : vector<16x64xf32>
    %26 = arith.mulf %25, %25 : vector<16x64xf32>
    %cst_17 = arith.constant dense<0.000000e+00> : vector<16xf32>
    %27 = vector.multi_reduction <add>, %26, %cst_17 [1] : vector<16x64xf32> to vector<16xf32>
    %28 = vector.shape_cast %27 : vector<16xf32> to vector<16x1xf32>
    %cst_18 = arith.constant 6.400000e+01 : f32
    %29 = vector.broadcast %cst_18 : f32 to vector<16x1xf32>
    %30 = arith.divf %28, %29 : vector<16x1xf32>
    %cst_19 = arith.constant 9.99999974E-6 : f32
    %31 = vector.broadcast %cst_19 : f32 to vector<16x1xf32>
    %32 = arith.addf %30, %31 : vector<16x1xf32>
    %33 = math.rsqrt %32 : vector<16x1xf32>
    %34 = vector.broadcast %33 : vector<16x1xf32> to vector<16x64xf32>
    %35 = arith.mulf %25, %34 : vector<16x64xf32>
    %36 = vector.broadcast %18 : vector<1x64xf32> to vector<16x64xf32>
    %37 = arith.mulf %35, %36 : vector<16x64xf32>
    %38 = vector.broadcast %19 : vector<1x64xf32> to vector<16x64xf32>
    %39 = arith.addf %37, %38 : vector<16x64xf32>
    %c0_20 = arith.constant 0 : index
    %c0_21 = arith.constant 0 : index
    %40 = vector.load %arg8[%c0_20, %c0_21] : memref<16x64xf32, #tpu.memory_space<vmem>>, vector<16x64xf32>
    tpu.vector_store %arg8[%c0_20, %c0_21], %39 {strides = array<i32>} : memref<16x64xf32, #tpu.memory_space<vmem>>, vector<16x64xf32>,
    return
  }
  func.func @transform_0(%arg0: i32) -> (i32, i32) {
    %c0_i32 = arith.constant 0 : i32
    %c0_i32_0 = arith.constant 0 : i32
    return %arg0, %c0_i32 : i32, i32
  }
  func.func @transform_1(%arg0: i32) -> (i32, i32) {
    %c0_i32 = arith.constant 0 : i32
    %c0_i32_0 = arith.constant 0 : i32
    %c0_i32_1 = arith.constant 0 : i32
    return %c0_i32, %c0_i32_0 : i32, i32
  }
  func.func @transform_2(%arg0: i32) -> (i32, i32) {
    %c0_i32 = arith.constant 0 : i32
    %c0_i32_0 = arith.constant 0 : i32
    %c0_i32_1 = arith.constant 0 : i32
    return %c0_i32, %c0_i32_0 : i32, i32
  }
  func.func @transform_3(%arg0: i32) -> (i32, i32) {
    %c0_i32 = arith.constant 0 : i32
    %c0_i32_0 = arith.constant 0 : i32
    %c0_i32_1 = arith.constant 0 : i32
    return %c0_i32, %c0_i32_0 : i32, i32
  }
  func.func @transform_4(%arg0: i32) -> (i32, i32) {
    %c0_i32 = arith.constant 0 : i32
    %c0_i32_0 = arith.constant 0 : i32
    %c0_i32_1 = arith.constant 0 : i32
    return %c0_i32, %c0_i32_0 : i32, i32
  }
  func.func @transform_5(%arg0: i32) -> (i32, i32) {
    %c0_i32 = arith.constant 0 : i32
    %c0_i32_0 = arith.constant 0 : i32
    %c0_i32_1 = arith.constant 0 : i32
    return %c0_i32, %c0_i32_0 : i32, i32
  }
  func.func @transform_6(%arg0: i32) -> (i32, i32) {
    %c0_i32 = arith.constant 0 : i32
    %c0_i32_0 = arith.constant 0 : i32
    %c0_i32_1 = arith.constant 0 : i32
    return %c0_i32, %c0_i32_0 : i32, i32
  }
  func.func @transform_7(%arg0: i32) -> (i32, i32) {
    %c0_i32 = arith.constant 0 : i32
    %c0_i32_0 = arith.constant 0 : i32
    return %arg0, %c0_i32 : i32, i32
  }
}

module attributes {stable_mosaic.version = 11 : i64} {
  func.func @_linear_kernel(%arg0: i32, %arg1: memref<16x64xf32, #tpu.memory_space<vmem>>, %arg2: memref<64x24xf32, #tpu.memory_space<vmem>>, %arg3: memref<1x24xf32, #tpu.memory_space<vmem>>, %arg4: memref<16x24xf32, #tpu.memory_space<vmem>>) attributes {dimension_semantics = [#tpu.dimension_semantics<parallel>], iteration_bounds = array<i64: 2>, scalar_prefetch = 0 : i64, scratch_operands = 0 : i64, tpu.core_type = #tpu.core_type<tc>, window_params = [{transform_indices = @transform_0, window_bounds = array<i64: 16, 64>}, {pipeline_mode = #tpu.pipeline_mode<synchronous>, transform_indices = @transform_1, window_bounds = array<i64: 64, 24>}, {pipeline_mode = #tpu.pipeline_mode<synchronous>, transform_indices = @transform_2, window_bounds = array<i64: 1, 24>}, {transform_indices = @transform_3, window_bounds = array<i64: 16, 24>}]} {
    %c0 = arith.constant 0 : index
    %c0_0 = arith.constant 0 : index
    %0 = vector.load %arg1[%c0, %c0_0] : memref<16x64xf32, #tpu.memory_space<vmem>>, vector<16x64xf32>
    %c0_1 = arith.constant 0 : index
    %c0_2 = arith.constant 0 : index
    %1 = vector.load %arg2[%c0_1, %c0_2] : memref<64x24xf32, #tpu.memory_space<vmem>>, vector<64x24xf32>
    %2 = arith.truncf %0 : vector<16x64xf32> to vector<16x64xbf16>
    %3 = arith.truncf %1 : vector<64x24xf32> to vector<64x24xbf16>
    %cst = arith.constant dense<0.000000e+00> : vector<16x24xf32>
    %4 = tpu.matmul %2, %3, %cst {dimension_numbers = #tpu.dot_dimension_numbers<[1], [0], [0], [1], [0, 0, 1, 1], [], []>} : vector<16x64xbf16>, vector<64x24xbf16>, vector<16x24xf32> -> vector<16x24xf32>
    %c0_3 = arith.constant 0 : index
    %c0_4 = arith.constant 0 : index
    %5 = vector.load %arg3[%c0_3, %c0_4] : memref<1x24xf32, #tpu.memory_space<vmem>>, vector<1x24xf32>
    %6 = vector.broadcast %5 : vector<1x24xf32> to vector<16x24xf32>
    %7 = arith.addf %4, %6 : vector<16x24xf32>
    %c0_5 = arith.constant 0 : index
    %c0_6 = arith.constant 0 : index
    %8 = vector.load %arg4[%c0_5, %c0_6] : memref<16x24xf32, #tpu.memory_space<vmem>>, vector<16x24xf32>
    tpu.vector_store %arg4[%c0_5, %c0_6], %7 {strides = array<i32>} : memref<16x24xf32, #tpu.memory_space<vmem>>, vector<16x24xf32>,
    return
  }
  func.func @transform_0(%arg0: i32) -> (i32, i32) {
    %c0_i32 = arith.constant 0 : i32
    %c0_i32_0 = arith.constant 0 : i32
    return %arg0, %c0_i32 : i32, i32
  }
  func.func @transform_1(%arg0: i32) -> (i32, i32) {
    %c0_i32 = arith.constant 0 : i32
    %c0_i32_0 = arith.constant 0 : i32
    %c0_i32_1 = arith.constant 0 : i32
    return %c0_i32, %c0_i32_0 : i32, i32
  }
  func.func @transform_2(%arg0: i32) -> (i32, i32) {
    %c0_i32 = arith.constant 0 : i32
    %c0_i32_0 = arith.constant 0 : i32
    %c0_i32_1 = arith.constant 0 : i32
    return %c0_i32, %c0_i32_0 : i32, i32
  }
  func.func @transform_3(%arg0: i32) -> (i32, i32) {
    %c0_i32 = arith.constant 0 : i32
    %c0_i32_0 = arith.constant 0 : i32
    return %arg0, %c0_i32 : i32, i32
  }
}

module attributes {stable_mosaic.version = 11 : i64} {
  func.func @_shift_attn_kernel(%arg0: i32, %arg1: memref<1x16x64xf32, #tpu.memory_space<vmem>>, %arg2: memref<1x16x64xf32, #tpu.memory_space<vmem>>, %arg3: memref<1x64x16xf32, #tpu.memory_space<vmem>>, %arg4: memref<64x64xf32, #tpu.memory_space<vmem>>, %arg5: memref<1x64xf32, #tpu.memory_space<vmem>>, %arg6: memref<64x64xf32, #tpu.memory_space<vmem>>, %arg7: memref<1x64xf32, #tpu.memory_space<vmem>>, %arg8: memref<1x64xf32, #tpu.memory_space<vmem>>, %arg9: memref<1x64xf32, #tpu.memory_space<vmem>>, %arg10: memref<1x16x64xf32, #tpu.memory_space<vmem>>) attributes {dimension_semantics = [#tpu.dimension_semantics<parallel>], iteration_bounds = array<i64: 2>, scalar_prefetch = 0 : i64, scratch_operands = 0 : i64, tpu.core_type = #tpu.core_type<tc>, window_params = [{transform_indices = @transform_0, window_bounds = array<i64: 1, 16, 64>}, {transform_indices = @transform_1, window_bounds = array<i64: 1, 16, 64>}, {transform_indices = @transform_2, window_bounds = array<i64: 1, 64, 16>}, {pipeline_mode = #tpu.pipeline_mode<synchronous>, transform_indices = @transform_3, window_bounds = array<i64: 64, 64>}, {pipeline_mode = #tpu.pipeline_mode<synchronous>, transform_indices = @transform_4, window_bounds = array<i64: 1, 64>}, {pipeline_mode = #tpu.pipeline_mode<synchronous>, transform_indices = @transform_5, window_bounds = array<i64: 64, 64>}, {pipeline_mode = #tpu.pipeline_mode<synchronous>, transform_indices = @transform_6, window_bounds = array<i64: 1, 64>}, {pipeline_mode = #tpu.pipeline_mode<synchronous>, transform_indices = @transform_7, window_bounds = array<i64: 1, 64>}, {pipeline_mode = #tpu.pipeline_mode<synchronous>, transform_indices = @transform_8, window_bounds = array<i64: 1, 64>}, {transform_indices = @transform_9, window_bounds = array<i64: 1, 16, 64>}]} {
    %c0 = arith.constant 0 : index
    %c0_0 = arith.constant 0 : index
    %c0_1 = arith.constant 0 : index
    %0 = vector.load %arg1[%c0, %c0_0, %c0_1] : memref<1x16x64xf32, #tpu.memory_space<vmem>>, vector<1x16x64xf32>
    %1 = vector.shape_cast %0 : vector<1x16x64xf32> to vector<16x64xf32>
    %c0_2 = arith.constant 0 : index
    %c0_3 = arith.constant 0 : index
    %c0_4 = arith.constant 0 : index
    %2 = vector.load %arg2[%c0_2, %c0_3, %c0_4] : memref<1x16x64xf32, #tpu.memory_space<vmem>>, vector<1x16x64xf32>
    %3 = vector.shape_cast %2 : vector<1x16x64xf32> to vector<16x64xf32>
    %c0_5 = arith.constant 0 : index
    %c0_6 = arith.constant 0 : index
    %c0_7 = arith.constant 0 : index
    %4 = vector.load %arg3[%c0_5, %c0_6, %c0_7] : memref<1x64x16xf32, #tpu.memory_space<vmem>>, vector<1x64x16xf32>
    %5 = vector.shape_cast %4 : vector<1x64x16xf32> to vector<64x16xf32>
    %c0_8 = arith.constant 0 : index
    %c0_9 = arith.constant 0 : index
    %6 = vector.load %arg4[%c0_8, %c0_9] : memref<64x64xf32, #tpu.memory_space<vmem>>, vector<64x64xf32>
    %7 = arith.truncf %3 : vector<16x64xf32> to vector<16x64xbf16>
    %8 = arith.truncf %6 : vector<64x64xf32> to vector<64x64xbf16>
    %cst = arith.constant dense<0.000000e+00> : vector<16x64xf32>
    %9 = tpu.matmul %7, %8, %cst {dimension_numbers = #tpu.dot_dimension_numbers<[1], [0], [0], [1], [0, 0, 1, 1], [], []>} : vector<16x64xbf16>, vector<64x64xbf16>, vector<16x64xf32> -> vector<16x64xf32>
    %c0_10 = arith.constant 0 : index
    %c0_11 = arith.constant 0 : index
    %10 = vector.load %arg5[%c0_10, %c0_11] : memref<1x64xf32, #tpu.memory_space<vmem>>, vector<1x64xf32>
    %11 = vector.broadcast %10 : vector<1x64xf32> to vector<16x64xf32>
    %12 = arith.addf %9, %11 : vector<16x64xf32>
    %cst_12 = arith.constant 0.000000e+00 : f32
    %13 = vector.broadcast %cst_12 : f32 to vector<16x64xf32>
    %c0_13 = arith.constant 0 : index
    %c0_14 = arith.constant 0 : index
    %14 = vector.load %arg7[%c0_13, %c0_14] : memref<1x64xf32, #tpu.memory_space<vmem>>, vector<1x64xf32>
    %15 = vector.broadcast %14 : vector<1x64xf32> to vector<16x64xf32>
    %16 = arith.addf %13, %15 : vector<16x64xf32>
    %17 = vector.extract_strided_slice %5 {offsets = [0, 0], sizes = [16, 16], strides = [1, 1]} : vector<64x16xf32> to vector<16x16xf32>
    %18 = vector.extract_strided_slice %12 {offsets = [0, 0], sizes = [16, 16], strides = [1, 1]} : vector<16x64xf32> to vector<16x16xf32>
    %cst_15 = arith.constant dense<0.000000e+00> : vector<16x16xf32>
    %19 = tpu.matmul %17, %18, %cst_15 {dimension_numbers = #tpu.dot_dimension_numbers<[1], [0], [0], [1], [0, 0, 1, 1], [], []>} : vector<16x16xf32>, vector<16x16xf32>, vector<16x16xf32> -> vector<16x16xf32>
    %c0_16 = arith.constant 0 : index
    %c0_17 = arith.constant 0 : index
    %20 = vector.load %arg6[%c0_16, %c0_17] : memref<64x64xf32, #tpu.memory_space<vmem>>, vector<16x64xf32>
    %21 = arith.truncf %19 : vector<16x16xf32> to vector<16x16xbf16>
    %22 = arith.truncf %20 : vector<16x64xf32> to vector<16x64xbf16>
    %cst_18 = arith.constant dense<0.000000e+00> : vector<16x64xf32>
    %23 = tpu.matmul %21, %22, %cst_18 {dimension_numbers = #tpu.dot_dimension_numbers<[1], [0], [0], [1], [0, 0, 1, 1], [], []>} : vector<16x16xbf16>, vector<16x64xbf16>, vector<16x64xf32> -> vector<16x64xf32>
    %24 = arith.addf %16, %23 : vector<16x64xf32>
    %25 = vector.extract_strided_slice %5 {offsets = [16, 0], sizes = [16, 16], strides = [1, 1]} : vector<64x16xf32> to vector<16x16xf32>
    %26 = vector.extract_strided_slice %12 {offsets = [0, 16], sizes = [16, 16], strides = [1, 1]} : vector<16x64xf32> to vector<16x16xf32>
    %cst_19 = arith.constant dense<0.000000e+00> : vector<16x16xf32>
    %27 = tpu.matmul %25, %26, %cst_19 {dimension_numbers = #tpu.dot_dimension_numbers<[1], [0], [0], [1], [0, 0, 1, 1], [], []>} : vector<16x16xf32>, vector<16x16xf32>, vector<16x16xf32> -> vector<16x16xf32>
    %c16 = arith.constant 16 : index
    %c0_20 = arith.constant 0 : index
    %28 = vector.load %arg6[%c16, %c0_20] : memref<64x64xf32, #tpu.memory_space<vmem>>, vector<16x64xf32>
    %29 = arith.truncf %27 : vector<16x16xf32> to vector<16x16xbf16>
    %30 = arith.truncf %28 : vector<16x64xf32> to vector<16x64xbf16>
    %cst_21 = arith.constant dense<0.000000e+00> : vector<16x64xf32>
    %31 = tpu.matmul %29, %30, %cst_21 {dimension_numbers = #tpu.dot_dimension_numbers<[1], [0], [0], [1], [0, 0, 1, 1], [], []>} : vector<16x16xbf16>, vector<16x64xbf16>, vector<16x64xf32> -> vector<16x64xf32>
    %32 = arith.addf %24, %31 : vector<16x64xf32>
    %33 = vector.extract_strided_slice %5 {offsets = [32, 0], sizes = [16, 16], strides = [1, 1]} : vector<64x16xf32> to vector<16x16xf32>
    %34 = vector.extract_strided_slice %12 {offsets = [0, 32], sizes = [16, 16], strides = [1, 1]} : vector<16x64xf32> to vector<16x16xf32>
    %cst_22 = arith.constant dense<0.000000e+00> : vector<16x16xf32>
    %35 = tpu.matmul %33, %34, %cst_22 {dimension_numbers = #tpu.dot_dimension_numbers<[1], [0], [0], [1], [0, 0, 1, 1], [], []>} : vector<16x16xf32>, vector<16x16xf32>, vector<16x16xf32> -> vector<16x16xf32>
    %c32 = arith.constant 32 : index
    %c0_23 = arith.constant 0 : index
    %36 = vector.load %arg6[%c32, %c0_23] : memref<64x64xf32, #tpu.memory_space<vmem>>, vector<16x64xf32>
    %37 = arith.truncf %35 : vector<16x16xf32> to vector<16x16xbf16>
    %38 = arith.truncf %36 : vector<16x64xf32> to vector<16x64xbf16>
    %cst_24 = arith.constant dense<0.000000e+00> : vector<16x64xf32>
    %39 = tpu.matmul %37, %38, %cst_24 {dimension_numbers = #tpu.dot_dimension_numbers<[1], [0], [0], [1], [0, 0, 1, 1], [], []>} : vector<16x16xbf16>, vector<16x64xbf16>, vector<16x64xf32> -> vector<16x64xf32>
    %40 = arith.addf %32, %39 : vector<16x64xf32>
    %41 = vector.extract_strided_slice %5 {offsets = [48, 0], sizes = [16, 16], strides = [1, 1]} : vector<64x16xf32> to vector<16x16xf32>
    %42 = vector.extract_strided_slice %12 {offsets = [0, 48], sizes = [16, 16], strides = [1, 1]} : vector<16x64xf32> to vector<16x16xf32>
    %cst_25 = arith.constant dense<0.000000e+00> : vector<16x16xf32>
    %43 = tpu.matmul %41, %42, %cst_25 {dimension_numbers = #tpu.dot_dimension_numbers<[1], [0], [0], [1], [0, 0, 1, 1], [], []>} : vector<16x16xf32>, vector<16x16xf32>, vector<16x16xf32> -> vector<16x16xf32>
    %c48 = arith.constant 48 : index
    %c0_26 = arith.constant 0 : index
    %44 = vector.load %arg6[%c48, %c0_26] : memref<64x64xf32, #tpu.memory_space<vmem>>, vector<16x64xf32>
    %45 = arith.truncf %43 : vector<16x16xf32> to vector<16x16xbf16>
    %46 = arith.truncf %44 : vector<16x64xf32> to vector<16x64xbf16>
    %cst_27 = arith.constant dense<0.000000e+00> : vector<16x64xf32>
    %47 = tpu.matmul %45, %46, %cst_27 {dimension_numbers = #tpu.dot_dimension_numbers<[1], [0], [0], [1], [0, 0, 1, 1], [], []>} : vector<16x16xbf16>, vector<16x64xbf16>, vector<16x64xf32> -> vector<16x64xf32>
    %48 = arith.addf %40, %47 : vector<16x64xf32>
    %49 = arith.addf %48, %1 : vector<16x64xf32>
    %c0_28 = arith.constant 0 : index
    %c0_29 = arith.constant 0 : index
    %50 = vector.load %arg8[%c0_28, %c0_29] : memref<1x64xf32, #tpu.memory_space<vmem>>, vector<1x64xf32>
    %c0_30 = arith.constant 0 : index
    %c0_31 = arith.constant 0 : index
    %51 = vector.load %arg9[%c0_30, %c0_31] : memref<1x64xf32, #tpu.memory_space<vmem>>, vector<1x64xf32>
    %cst_32 = arith.constant dense<0.000000e+00> : vector<16xf32>
    %52 = vector.multi_reduction <add>, %49, %cst_32 [1] : vector<16x64xf32> to vector<16xf32>
    %53 = vector.shape_cast %52 : vector<16xf32> to vector<16x1xf32>
    %cst_33 = arith.constant 6.400000e+01 : f32
    %54 = vector.broadcast %cst_33 : f32 to vector<16x1xf32>
    %55 = arith.divf %53, %54 : vector<16x1xf32>
    %56 = vector.broadcast %55 : vector<16x1xf32> to vector<16x64xf32>
    %57 = arith.subf %49, %56 : vector<16x64xf32>
    %58 = arith.mulf %57, %57 : vector<16x64xf32>
    %cst_34 = arith.constant dense<0.000000e+00> : vector<16xf32>
    %59 = vector.multi_reduction <add>, %58, %cst_34 [1] : vector<16x64xf32> to vector<16xf32>
    %60 = vector.shape_cast %59 : vector<16xf32> to vector<16x1xf32>
    %cst_35 = arith.constant 6.400000e+01 : f32
    %61 = vector.broadcast %cst_35 : f32 to vector<16x1xf32>
    %62 = arith.divf %60, %61 : vector<16x1xf32>
    %cst_36 = arith.constant 9.99999974E-6 : f32
    %63 = vector.broadcast %cst_36 : f32 to vector<16x1xf32>
    %64 = arith.addf %62, %63 : vector<16x1xf32>
    %65 = math.rsqrt %64 : vector<16x1xf32>
    %66 = vector.broadcast %65 : vector<16x1xf32> to vector<16x64xf32>
    %67 = arith.mulf %57, %66 : vector<16x64xf32>
    %68 = vector.broadcast %50 : vector<1x64xf32> to vector<16x64xf32>
    %69 = arith.mulf %67, %68 : vector<16x64xf32>
    %70 = vector.broadcast %51 : vector<1x64xf32> to vector<16x64xf32>
    %71 = arith.addf %69, %70 : vector<16x64xf32>
    %c0_37 = arith.constant 0 : index
    %c0_38 = arith.constant 0 : index
    %c0_39 = arith.constant 0 : index
    %72 = vector.load %arg10[%c0_37, %c0_38, %c0_39] : memref<1x16x64xf32, #tpu.memory_space<vmem>>, vector<1x16x64xf32>
    %73 = vector.shape_cast %72 : vector<1x16x64xf32> to vector<16x64xf32>
    %74 = vector.shape_cast %71 : vector<16x64xf32> to vector<1x16x64xf32>
    tpu.vector_store %arg10[%c0_37, %c0_38, %c0_39], %74 {strides = array<i32>} : memref<1x16x64xf32, #tpu.memory_space<vmem>>, vector<1x16x64xf32>,
    return
  }
  func.func @transform_0(%arg0: i32) -> (i32, i32, i32) {
    %c0_i32 = arith.constant 0 : i32
    %c0_i32_0 = arith.constant 0 : i32
    %c0_i32_1 = arith.constant 0 : i32
    return %arg0, %c0_i32, %c0_i32_0 : i32, i32, i32
  }
  func.func @transform_1(%arg0: i32) -> (i32, i32, i32) {
    %c0_i32 = arith.constant 0 : i32
    %c0_i32_0 = arith.constant 0 : i32
    %c0_i32_1 = arith.constant 0 : i32
    return %arg0, %c0_i32, %c0_i32_0 : i32, i32, i32
  }
  func.func @transform_2(%arg0: i32) -> (i32, i32, i32) {
    %c0_i32 = arith.constant 0 : i32
    %c0_i32_0 = arith.constant 0 : i32
    %c0_i32_1 = arith.constant 0 : i32
    return %arg0, %c0_i32, %c0_i32_0 : i32, i32, i32
  }
  func.func @transform_3(%arg0: i32) -> (i32, i32) {
    %c0_i32 = arith.constant 0 : i32
    %c0_i32_0 = arith.constant 0 : i32
    %c0_i32_1 = arith.constant 0 : i32
    return %c0_i32, %c0_i32_0 : i32, i32
  }
  func.func @transform_4(%arg0: i32) -> (i32, i32) {
    %c0_i32 = arith.constant 0 : i32
    %c0_i32_0 = arith.constant 0 : i32
    %c0_i32_1 = arith.constant 0 : i32
    return %c0_i32, %c0_i32_0 : i32, i32
  }
  func.func @transform_5(%arg0: i32) -> (i32, i32) {
    %c0_i32 = arith.constant 0 : i32
    %c0_i32_0 = arith.constant 0 : i32
    %c0_i32_1 = arith.constant 0 : i32
    return %c0_i32, %c0_i32_0 : i32, i32
  }
  func.func @transform_6(%arg0: i32) -> (i32, i32) {
    %c0_i32 = arith.constant 0 : i32
    %c0_i32_0 = arith.constant 0 : i32
    %c0_i32_1 = arith.constant 0 : i32
    return %c0_i32, %c0_i32_0 : i32, i32
  }
  func.func @transform_7(%arg0: i32) -> (i32, i32) {
    %c0_i32 = arith.constant 0 : i32
    %c0_i32_0 = arith.constant 0 : i32
    %c0_i32_1 = arith.constant 0 : i32
    return %c0_i32, %c0_i32_0 : i32, i32
  }
  func.func @transform_8(%arg0: i32) -> (i32, i32) {
    %c0_i32 = arith.constant 0 : i32
    %c0_i32_0 = arith.constant 0 : i32
    %c0_i32_1 = arith.constant 0 : i32
    return %c0_i32, %c0_i32_0 : i32, i32
  }
  func.func @transform_9(%arg0: i32) -> (i32, i32, i32) {
    %c0_i32 = arith.constant 0 : i32
    %c0_i32_0 = arith.constant 0 : i32
    %c0_i32_1 = arith.constant 0 : i32
    return %arg0, %c0_i32, %c0_i32_0 : i32, i32, i32
  }
}

module attributes {stable_mosaic.version = 11 : i64} {
  func.func @_add_ln_kernel(%arg0: i32, %arg1: memref<16x64xf32, #tpu.memory_space<vmem>>, %arg2: memref<16x64xf32, #tpu.memory_space<vmem>>, %arg3: memref<1x64xf32, #tpu.memory_space<vmem>>, %arg4: memref<1x64xf32, #tpu.memory_space<vmem>>, %arg5: memref<16x64xf32, #tpu.memory_space<vmem>>) attributes {dimension_semantics = [#tpu.dimension_semantics<parallel>], iteration_bounds = array<i64: 2>, scalar_prefetch = 0 : i64, scratch_operands = 0 : i64, tpu.core_type = #tpu.core_type<tc>, window_params = [{transform_indices = @transform_0, window_bounds = array<i64: 16, 64>}, {transform_indices = @transform_1, window_bounds = array<i64: 16, 64>}, {pipeline_mode = #tpu.pipeline_mode<synchronous>, transform_indices = @transform_2, window_bounds = array<i64: 1, 64>}, {pipeline_mode = #tpu.pipeline_mode<synchronous>, transform_indices = @transform_3, window_bounds = array<i64: 1, 64>}, {transform_indices = @transform_4, window_bounds = array<i64: 16, 64>}]} {
    %c0 = arith.constant 0 : index
    %c0_0 = arith.constant 0 : index
    %0 = vector.load %arg1[%c0, %c0_0] : memref<16x64xf32, #tpu.memory_space<vmem>>, vector<16x64xf32>
    %c0_1 = arith.constant 0 : index
    %c0_2 = arith.constant 0 : index
    %1 = vector.load %arg2[%c0_1, %c0_2] : memref<16x64xf32, #tpu.memory_space<vmem>>, vector<16x64xf32>
    %2 = arith.addf %0, %1 : vector<16x64xf32>
    %c0_3 = arith.constant 0 : index
    %c0_4 = arith.constant 0 : index
    %3 = vector.load %arg3[%c0_3, %c0_4] : memref<1x64xf32, #tpu.memory_space<vmem>>, vector<1x64xf32>
    %c0_5 = arith.constant 0 : index
    %c0_6 = arith.constant 0 : index
    %4 = vector.load %arg4[%c0_5, %c0_6] : memref<1x64xf32, #tpu.memory_space<vmem>>, vector<1x64xf32>
    %cst = arith.constant dense<0.000000e+00> : vector<16xf32>
    %5 = vector.multi_reduction <add>, %2, %cst [1] : vector<16x64xf32> to vector<16xf32>
    %6 = vector.shape_cast %5 : vector<16xf32> to vector<16x1xf32>
    %cst_7 = arith.constant 6.400000e+01 : f32
    %7 = vector.broadcast %cst_7 : f32 to vector<16x1xf32>
    %8 = arith.divf %6, %7 : vector<16x1xf32>
    %9 = vector.broadcast %8 : vector<16x1xf32> to vector<16x64xf32>
    %10 = arith.subf %2, %9 : vector<16x64xf32>
    %11 = arith.mulf %10, %10 : vector<16x64xf32>
    %cst_8 = arith.constant dense<0.000000e+00> : vector<16xf32>
    %12 = vector.multi_reduction <add>, %11, %cst_8 [1] : vector<16x64xf32> to vector<16xf32>
    %13 = vector.shape_cast %12 : vector<16xf32> to vector<16x1xf32>
    %cst_9 = arith.constant 6.400000e+01 : f32
    %14 = vector.broadcast %cst_9 : f32 to vector<16x1xf32>
    %15 = arith.divf %13, %14 : vector<16x1xf32>
    %cst_10 = arith.constant 9.99999974E-6 : f32
    %16 = vector.broadcast %cst_10 : f32 to vector<16x1xf32>
    %17 = arith.addf %15, %16 : vector<16x1xf32>
    %18 = math.rsqrt %17 : vector<16x1xf32>
    %19 = vector.broadcast %18 : vector<16x1xf32> to vector<16x64xf32>
    %20 = arith.mulf %10, %19 : vector<16x64xf32>
    %21 = vector.broadcast %3 : vector<1x64xf32> to vector<16x64xf32>
    %22 = arith.mulf %20, %21 : vector<16x64xf32>
    %23 = vector.broadcast %4 : vector<1x64xf32> to vector<16x64xf32>
    %24 = arith.addf %22, %23 : vector<16x64xf32>
    %c0_11 = arith.constant 0 : index
    %c0_12 = arith.constant 0 : index
    %25 = vector.load %arg5[%c0_11, %c0_12] : memref<16x64xf32, #tpu.memory_space<vmem>>, vector<16x64xf32>
    tpu.vector_store %arg5[%c0_11, %c0_12], %24 {strides = array<i32>} : memref<16x64xf32, #tpu.memory_space<vmem>>, vector<16x64xf32>,
    return
  }
  func.func @transform_0(%arg0: i32) -> (i32, i32) {
    %c0_i32 = arith.constant 0 : i32
    %c0_i32_0 = arith.constant 0 : i32
    return %arg0, %c0_i32 : i32, i32
  }
  func.func @transform_1(%arg0: i32) -> (i32, i32) {
    %c0_i32 = arith.constant 0 : i32
    %c0_i32_0 = arith.constant 0 : i32
    return %arg0, %c0_i32 : i32, i32
  }
  func.func @transform_2(%arg0: i32) -> (i32, i32) {
    %c0_i32 = arith.constant 0 : i32
    %c0_i32_0 = arith.constant 0 : i32
    %c0_i32_1 = arith.constant 0 : i32
    return %c0_i32, %c0_i32_0 : i32, i32
  }
  func.func @transform_3(%arg0: i32) -> (i32, i32) {
    %c0_i32 = arith.constant 0 : i32
    %c0_i32_0 = arith.constant 0 : i32
    %c0_i32_1 = arith.constant 0 : i32
    return %c0_i32, %c0_i32_0 : i32, i32
  }
  func.func @transform_4(%arg0: i32) -> (i32, i32) {
    %c0_i32 = arith.constant 0 : i32
    %c0_i32_0 = arith.constant 0 : i32
    return %arg0, %c0_i32 : i32, i32
  }
}

module attributes {stable_mosaic.version = 11 : i64} {
  func.func @_mha_kernel(%arg0: i32, %arg1: memref<1x16x64xf32, #tpu.memory_space<vmem>>, %arg2: memref<1x8x64xf32, #tpu.memory_space<vmem>>, %arg3: memref<64x64xf32, #tpu.memory_space<vmem>>, %arg4: memref<1x64xf32, #tpu.memory_space<vmem>>, %arg5: memref<64x128xf32, #tpu.memory_space<vmem>>, %arg6: memref<1x128xf32, #tpu.memory_space<vmem>>, %arg7: memref<64x64xf32, #tpu.memory_space<vmem>>, %arg8: memref<1x64xf32, #tpu.memory_space<vmem>>, %arg9: memref<1x64xf32, #tpu.memory_space<vmem>>, %arg10: memref<1x64xf32, #tpu.memory_space<vmem>>, %arg11: memref<1x16x64xf32, #tpu.memory_space<vmem>>) attributes {dimension_semantics = [#tpu.dimension_semantics<parallel>], iteration_bounds = array<i64: 2>, scalar_prefetch = 0 : i64, scratch_operands = 0 : i64, tpu.core_type = #tpu.core_type<tc>, window_params = [{transform_indices = @transform_0, window_bounds = array<i64: 1, 16, 64>}, {transform_indices = @transform_1, window_bounds = array<i64: 1, 8, 64>}, {pipeline_mode = #tpu.pipeline_mode<synchronous>, transform_indices = @transform_2, window_bounds = array<i64: 64, 64>}, {pipeline_mode = #tpu.pipeline_mode<synchronous>, transform_indices = @transform_3, window_bounds = array<i64: 1, 64>}, {pipeline_mode = #tpu.pipeline_mode<synchronous>, transform_indices = @transform_4, window_bounds = array<i64: 64, 128>}, {pipeline_mode = #tpu.pipeline_mode<synchronous>, transform_indices = @transform_5, window_bounds = array<i64: 1, 128>}, {pipeline_mode = #tpu.pipeline_mode<synchronous>, transform_indices = @transform_6, window_bounds = array<i64: 64, 64>}, {pipeline_mode = #tpu.pipeline_mode<synchronous>, transform_indices = @transform_7, window_bounds = array<i64: 1, 64>}, {pipeline_mode = #tpu.pipeline_mode<synchronous>, transform_indices = @transform_8, window_bounds = array<i64: 1, 64>}, {pipeline_mode = #tpu.pipeline_mode<synchronous>, transform_indices = @transform_9, window_bounds = array<i64: 1, 64>}, {transform_indices = @transform_10, window_bounds = array<i64: 1, 16, 64>}]} {
    %c0 = arith.constant 0 : index
    %c0_0 = arith.constant 0 : index
    %c0_1 = arith.constant 0 : index
    %0 = vector.load %arg1[%c0, %c0_0, %c0_1] : memref<1x16x64xf32, #tpu.memory_space<vmem>>, vector<1x16x64xf32>
    %1 = vector.shape_cast %0 : vector<1x16x64xf32> to vector<16x64xf32>
    %c0_2 = arith.constant 0 : index
    %c0_3 = arith.constant 0 : index
    %c0_4 = arith.constant 0 : index
    %2 = vector.load %arg2[%c0_2, %c0_3, %c0_4] : memref<1x8x64xf32, #tpu.memory_space<vmem>>, vector<1x8x64xf32>
    %3 = vector.shape_cast %2 : vector<1x8x64xf32> to vector<8x64xf32>
    %c0_5 = arith.constant 0 : index
    %c0_6 = arith.constant 0 : index
    %4 = vector.load %arg3[%c0_5, %c0_6] : memref<64x64xf32, #tpu.memory_space<vmem>>, vector<64x64xf32>
    %5 = arith.truncf %1 : vector<16x64xf32> to vector<16x64xbf16>
    %6 = arith.truncf %4 : vector<64x64xf32> to vector<64x64xbf16>
    %cst = arith.constant dense<0.000000e+00> : vector<16x64xf32>
    %7 = tpu.matmul %5, %6, %cst {dimension_numbers = #tpu.dot_dimension_numbers<[1], [0], [0], [1], [0, 0, 1, 1], [], []>} : vector<16x64xbf16>, vector<64x64xbf16>, vector<16x64xf32> -> vector<16x64xf32>
    %c0_7 = arith.constant 0 : index
    %c0_8 = arith.constant 0 : index
    %8 = vector.load %arg4[%c0_7, %c0_8] : memref<1x64xf32, #tpu.memory_space<vmem>>, vector<1x64xf32>
    %9 = vector.broadcast %8 : vector<1x64xf32> to vector<16x64xf32>
    %10 = arith.addf %7, %9 : vector<16x64xf32>
    %c0_9 = arith.constant 0 : index
    %c0_10 = arith.constant 0 : index
    %11 = vector.load %arg5[%c0_9, %c0_10] : memref<64x128xf32, #tpu.memory_space<vmem>>, vector<64x128xf32>
    %12 = arith.truncf %3 : vector<8x64xf32> to vector<8x64xbf16>
    %13 = arith.truncf %11 : vector<64x128xf32> to vector<64x128xbf16>
    %cst_11 = arith.constant dense<0.000000e+00> : vector<8x128xf32>
    %14 = tpu.matmul %12, %13, %cst_11 {dimension_numbers = #tpu.dot_dimension_numbers<[1], [0], [0], [1], [0, 0, 1, 1], [], []>} : vector<8x64xbf16>, vector<64x128xbf16>, vector<8x128xf32> -> vector<8x128xf32>
    %c0_12 = arith.constant 0 : index
    %c0_13 = arith.constant 0 : index
    %15 = vector.load %arg6[%c0_12, %c0_13] : memref<1x128xf32, #tpu.memory_space<vmem>>, vector<1x128xf32>
    %16 = vector.broadcast %15 : vector<1x128xf32> to vector<8x128xf32>
    %17 = arith.addf %14, %16 : vector<8x128xf32>
    %18 = vector.extract_strided_slice %17 {offsets = [0, 0], sizes = [8, 64], strides = [1, 1]} : vector<8x128xf32> to vector<8x64xf32>
    %19 = vector.extract_strided_slice %17 {offsets = [0, 64], sizes = [8, 64], strides = [1, 1]} : vector<8x128xf32> to vector<8x64xf32>
    %cst_14 = arith.constant 0.000000e+00 : f32
    %20 = vector.broadcast %cst_14 : f32 to vector<16x64xf32>
    %c0_15 = arith.constant 0 : index
    %c0_16 = arith.constant 0 : index
    %21 = vector.load %arg8[%c0_15, %c0_16] : memref<1x64xf32, #tpu.memory_space<vmem>>, vector<1x64xf32>
    %22 = vector.broadcast %21 : vector<1x64xf32> to vector<16x64xf32>
    %23 = arith.addf %20, %22 : vector<16x64xf32>
    %24 = vector.extract_strided_slice %10 {offsets = [0, 0], sizes = [16, 16], strides = [1, 1]} : vector<16x64xf32> to vector<16x16xf32>
    %25 = vector.extract_strided_slice %18 {offsets = [0, 0], sizes = [8, 16], strides = [1, 1]} : vector<8x64xf32> to vector<8x16xf32>
    %26 = vector.extract_strided_slice %19 {offsets = [0, 0], sizes = [8, 16], strides = [1, 1]} : vector<8x64xf32> to vector<8x16xf32>
    %cst_17 = arith.constant dense<0.000000e+00> : vector<16x8xf32>
    %27 = tpu.matmul %24, %25, %cst_17 {dimension_numbers = #tpu.dot_dimension_numbers<[1], [1], [0], [0], [0, 0, 1, 0], [], []>} : vector<16x16xf32>, vector<8x16xf32>, vector<16x8xf32> -> vector<16x8xf32>
    %cst_18 = arith.constant 2.500000e-01 : f32
    %28 = vector.broadcast %cst_18 : f32 to vector<16x8xf32>
    %29 = arith.mulf %27, %28 : vector<16x8xf32>
    %cst_19 = arith.constant dense<0xFF800000> : vector<16xf32>
    %30 = vector.multi_reduction <maximumf>, %29, %cst_19 [1] : vector<16x8xf32> to vector<16xf32>
    %31 = vector.shape_cast %30 : vector<16xf32> to vector<16x1xf32>
    %32 = vector.broadcast %31 : vector<16x1xf32> to vector<16x8xf32>
    %33 = arith.subf %29, %32 : vector<16x8xf32>
    %34 = math.exp %33 : vector<16x8xf32>
    %cst_20 = arith.constant dense<0.000000e+00> : vector<16xf32>
    %35 = vector.multi_reduction <add>, %34, %cst_20 [1] : vector<16x8xf32> to vector<16xf32>
    %36 = vector.shape_cast %35 : vector<16xf32> to vector<16x1xf32>
    %37 = tpu.reciprocal %36 {approx = true} : vector<16x1xf32> -> vector<16x1xf32>
    %38 = vector.broadcast %37 : vector<16x1xf32> to vector<16x8xf32>
    %39 = arith.mulf %34, %38 : vector<16x8xf32>
    %cst_21 = arith.constant dense<0.000000e+00> : vector<16x16xf32>
    %40 = tpu.matmul %39, %26, %cst_21 {dimension_numbers = #tpu.dot_dimension_numbers<[1], [0], [0], [1], [0, 0, 1, 1], [], []>} : vector<16x8xf32>, vector<8x16xf32>, vector<16x16xf32> -> vector<16x16xf32>
    %c0_22 = arith.constant 0 : index
    %c0_23 = arith.constant 0 : index
    %41 = vector.load %arg7[%c0_22, %c0_23] : memref<64x64xf32, #tpu.memory_space<vmem>>, vector<16x64xf32>
    %42 = arith.truncf %40 : vector<16x16xf32> to vector<16x16xbf16>
    %43 = arith.truncf %41 : vector<16x64xf32> to vector<16x64xbf16>
    %cst_24 = arith.constant dense<0.000000e+00> : vector<16x64xf32>
    %44 = tpu.matmul %42, %43, %cst_24 {dimension_numbers = #tpu.dot_dimension_numbers<[1], [0], [0], [1], [0, 0, 1, 1], [], []>} : vector<16x16xbf16>, vector<16x64xbf16>, vector<16x64xf32> -> vector<16x64xf32>
    %45 = arith.addf %23, %44 : vector<16x64xf32>
    %46 = vector.extract_strided_slice %10 {offsets = [0, 16], sizes = [16, 16], strides = [1, 1]} : vector<16x64xf32> to vector<16x16xf32>
    %47 = vector.extract_strided_slice %18 {offsets = [0, 16], sizes = [8, 16], strides = [1, 1]} : vector<8x64xf32> to vector<8x16xf32>
    %48 = vector.extract_strided_slice %19 {offsets = [0, 16], sizes = [8, 16], strides = [1, 1]} : vector<8x64xf32> to vector<8x16xf32>
    %cst_25 = arith.constant dense<0.000000e+00> : vector<16x8xf32>
    %49 = tpu.matmul %46, %47, %cst_25 {dimension_numbers = #tpu.dot_dimension_numbers<[1], [1], [0], [0], [0, 0, 1, 0], [], []>} : vector<16x16xf32>, vector<8x16xf32>, vector<16x8xf32> -> vector<16x8xf32>
    %cst_26 = arith.constant 2.500000e-01 : f32
    %50 = vector.broadcast %cst_26 : f32 to vector<16x8xf32>
    %51 = arith.mulf %49, %50 : vector<16x8xf32>
    %cst_27 = arith.constant dense<0xFF800000> : vector<16xf32>
    %52 = vector.multi_reduction <maximumf>, %51, %cst_27 [1] : vector<16x8xf32> to vector<16xf32>
    %53 = vector.shape_cast %52 : vector<16xf32> to vector<16x1xf32>
    %54 = vector.broadcast %53 : vector<16x1xf32> to vector<16x8xf32>
    %55 = arith.subf %51, %54 : vector<16x8xf32>
    %56 = math.exp %55 : vector<16x8xf32>
    %cst_28 = arith.constant dense<0.000000e+00> : vector<16xf32>
    %57 = vector.multi_reduction <add>, %56, %cst_28 [1] : vector<16x8xf32> to vector<16xf32>
    %58 = vector.shape_cast %57 : vector<16xf32> to vector<16x1xf32>
    %59 = tpu.reciprocal %58 {approx = true} : vector<16x1xf32> -> vector<16x1xf32>
    %60 = vector.broadcast %59 : vector<16x1xf32> to vector<16x8xf32>
    %61 = arith.mulf %56, %60 : vector<16x8xf32>
    %cst_29 = arith.constant dense<0.000000e+00> : vector<16x16xf32>
    %62 = tpu.matmul %61, %48, %cst_29 {dimension_numbers = #tpu.dot_dimension_numbers<[1], [0], [0], [1], [0, 0, 1, 1], [], []>} : vector<16x8xf32>, vector<8x16xf32>, vector<16x16xf32> -> vector<16x16xf32>
    %c16 = arith.constant 16 : index
    %c0_30 = arith.constant 0 : index
    %63 = vector.load %arg7[%c16, %c0_30] : memref<64x64xf32, #tpu.memory_space<vmem>>, vector<16x64xf32>
    %64 = arith.truncf %62 : vector<16x16xf32> to vector<16x16xbf16>
    %65 = arith.truncf %63 : vector<16x64xf32> to vector<16x64xbf16>
    %cst_31 = arith.constant dense<0.000000e+00> : vector<16x64xf32>
    %66 = tpu.matmul %64, %65, %cst_31 {dimension_numbers = #tpu.dot_dimension_numbers<[1], [0], [0], [1], [0, 0, 1, 1], [], []>} : vector<16x16xbf16>, vector<16x64xbf16>, vector<16x64xf32> -> vector<16x64xf32>
    %67 = arith.addf %45, %66 : vector<16x64xf32>
    %68 = vector.extract_strided_slice %10 {offsets = [0, 32], sizes = [16, 16], strides = [1, 1]} : vector<16x64xf32> to vector<16x16xf32>
    %69 = vector.extract_strided_slice %18 {offsets = [0, 32], sizes = [8, 16], strides = [1, 1]} : vector<8x64xf32> to vector<8x16xf32>
    %70 = vector.extract_strided_slice %19 {offsets = [0, 32], sizes = [8, 16], strides = [1, 1]} : vector<8x64xf32> to vector<8x16xf32>
    %cst_32 = arith.constant dense<0.000000e+00> : vector<16x8xf32>
    %71 = tpu.matmul %68, %69, %cst_32 {dimension_numbers = #tpu.dot_dimension_numbers<[1], [1], [0], [0], [0, 0, 1, 0], [], []>} : vector<16x16xf32>, vector<8x16xf32>, vector<16x8xf32> -> vector<16x8xf32>
    %cst_33 = arith.constant 2.500000e-01 : f32
    %72 = vector.broadcast %cst_33 : f32 to vector<16x8xf32>
    %73 = arith.mulf %71, %72 : vector<16x8xf32>
    %cst_34 = arith.constant dense<0xFF800000> : vector<16xf32>
    %74 = vector.multi_reduction <maximumf>, %73, %cst_34 [1] : vector<16x8xf32> to vector<16xf32>
    %75 = vector.shape_cast %74 : vector<16xf32> to vector<16x1xf32>
    %76 = vector.broadcast %75 : vector<16x1xf32> to vector<16x8xf32>
    %77 = arith.subf %73, %76 : vector<16x8xf32>
    %78 = math.exp %77 : vector<16x8xf32>
    %cst_35 = arith.constant dense<0.000000e+00> : vector<16xf32>
    %79 = vector.multi_reduction <add>, %78, %cst_35 [1] : vector<16x8xf32> to vector<16xf32>
    %80 = vector.shape_cast %79 : vector<16xf32> to vector<16x1xf32>
    %81 = tpu.reciprocal %80 {approx = true} : vector<16x1xf32> -> vector<16x1xf32>
    %82 = vector.broadcast %81 : vector<16x1xf32> to vector<16x8xf32>
    %83 = arith.mulf %78, %82 : vector<16x8xf32>
    %cst_36 = arith.constant dense<0.000000e+00> : vector<16x16xf32>
    %84 = tpu.matmul %83, %70, %cst_36 {dimension_numbers = #tpu.dot_dimension_numbers<[1], [0], [0], [1], [0, 0, 1, 1], [], []>} : vector<16x8xf32>, vector<8x16xf32>, vector<16x16xf32> -> vector<16x16xf32>
    %c32 = arith.constant 32 : index
    %c0_37 = arith.constant 0 : index
    %85 = vector.load %arg7[%c32, %c0_37] : memref<64x64xf32, #tpu.memory_space<vmem>>, vector<16x64xf32>
    %86 = arith.truncf %84 : vector<16x16xf32> to vector<16x16xbf16>
    %87 = arith.truncf %85 : vector<16x64xf32> to vector<16x64xbf16>
    %cst_38 = arith.constant dense<0.000000e+00> : vector<16x64xf32>
    %88 = tpu.matmul %86, %87, %cst_38 {dimension_numbers = #tpu.dot_dimension_numbers<[1], [0], [0], [1], [0, 0, 1, 1], [], []>} : vector<16x16xbf16>, vector<16x64xbf16>, vector<16x64xf32> -> vector<16x64xf32>
    %89 = arith.addf %67, %88 : vector<16x64xf32>
    %90 = vector.extract_strided_slice %10 {offsets = [0, 48], sizes = [16, 16], strides = [1, 1]} : vector<16x64xf32> to vector<16x16xf32>
    %91 = vector.extract_strided_slice %18 {offsets = [0, 48], sizes = [8, 16], strides = [1, 1]} : vector<8x64xf32> to vector<8x16xf32>
    %92 = vector.extract_strided_slice %19 {offsets = [0, 48], sizes = [8, 16], strides = [1, 1]} : vector<8x64xf32> to vector<8x16xf32>
    %cst_39 = arith.constant dense<0.000000e+00> : vector<16x8xf32>
    %93 = tpu.matmul %90, %91, %cst_39 {dimension_numbers = #tpu.dot_dimension_numbers<[1], [1], [0], [0], [0, 0, 1, 0], [], []>} : vector<16x16xf32>, vector<8x16xf32>, vector<16x8xf32> -> vector<16x8xf32>
    %cst_40 = arith.constant 2.500000e-01 : f32
    %94 = vector.broadcast %cst_40 : f32 to vector<16x8xf32>
    %95 = arith.mulf %93, %94 : vector<16x8xf32>
    %cst_41 = arith.constant dense<0xFF800000> : vector<16xf32>
    %96 = vector.multi_reduction <maximumf>, %95, %cst_41 [1] : vector<16x8xf32> to vector<16xf32>
    %97 = vector.shape_cast %96 : vector<16xf32> to vector<16x1xf32>
    %98 = vector.broadcast %97 : vector<16x1xf32> to vector<16x8xf32>
    %99 = arith.subf %95, %98 : vector<16x8xf32>
    %100 = math.exp %99 : vector<16x8xf32>
    %cst_42 = arith.constant dense<0.000000e+00> : vector<16xf32>
    %101 = vector.multi_reduction <add>, %100, %cst_42 [1] : vector<16x8xf32> to vector<16xf32>
    %102 = vector.shape_cast %101 : vector<16xf32> to vector<16x1xf32>
    %103 = tpu.reciprocal %102 {approx = true} : vector<16x1xf32> -> vector<16x1xf32>
    %104 = vector.broadcast %103 : vector<16x1xf32> to vector<16x8xf32>
    %105 = arith.mulf %100, %104 : vector<16x8xf32>
    %cst_43 = arith.constant dense<0.000000e+00> : vector<16x16xf32>
    %106 = tpu.matmul %105, %92, %cst_43 {dimension_numbers = #tpu.dot_dimension_numbers<[1], [0], [0], [1], [0, 0, 1, 1], [], []>} : vector<16x8xf32>, vector<8x16xf32>, vector<16x16xf32> -> vector<16x16xf32>
    %c48 = arith.constant 48 : index
    %c0_44 = arith.constant 0 : index
    %107 = vector.load %arg7[%c48, %c0_44] : memref<64x64xf32, #tpu.memory_space<vmem>>, vector<16x64xf32>
    %108 = arith.truncf %106 : vector<16x16xf32> to vector<16x16xbf16>
    %109 = arith.truncf %107 : vector<16x64xf32> to vector<16x64xbf16>
    %cst_45 = arith.constant dense<0.000000e+00> : vector<16x64xf32>
    %110 = tpu.matmul %108, %109, %cst_45 {dimension_numbers = #tpu.dot_dimension_numbers<[1], [0], [0], [1], [0, 0, 1, 1], [], []>} : vector<16x16xbf16>, vector<16x64xbf16>, vector<16x64xf32> -> vector<16x64xf32>
    %111 = arith.addf %89, %110 : vector<16x64xf32>
    %112 = arith.addf %111, %1 : vector<16x64xf32>
    %c0_46 = arith.constant 0 : index
    %c0_47 = arith.constant 0 : index
    %113 = vector.load %arg9[%c0_46, %c0_47] : memref<1x64xf32, #tpu.memory_space<vmem>>, vector<1x64xf32>
    %c0_48 = arith.constant 0 : index
    %c0_49 = arith.constant 0 : index
    %114 = vector.load %arg10[%c0_48, %c0_49] : memref<1x64xf32, #tpu.memory_space<vmem>>, vector<1x64xf32>
    %cst_50 = arith.constant dense<0.000000e+00> : vector<16xf32>
    %115 = vector.multi_reduction <add>, %112, %cst_50 [1] : vector<16x64xf32> to vector<16xf32>
    %116 = vector.shape_cast %115 : vector<16xf32> to vector<16x1xf32>
    %cst_51 = arith.constant 6.400000e+01 : f32
    %117 = vector.broadcast %cst_51 : f32 to vector<16x1xf32>
    %118 = arith.divf %116, %117 : vector<16x1xf32>
    %119 = vector.broadcast %118 : vector<16x1xf32> to vector<16x64xf32>
    %120 = arith.subf %112, %119 : vector<16x64xf32>
    %121 = arith.mulf %120, %120 : vector<16x64xf32>
    %cst_52 = arith.constant dense<0.000000e+00> : vector<16xf32>
    %122 = vector.multi_reduction <add>, %121, %cst_52 [1] : vector<16x64xf32> to vector<16xf32>
    %123 = vector.shape_cast %122 : vector<16xf32> to vector<16x1xf32>
    %cst_53 = arith.constant 6.400000e+01 : f32
    %124 = vector.broadcast %cst_53 : f32 to vector<16x1xf32>
    %125 = arith.divf %123, %124 : vector<16x1xf32>
    %cst_54 = arith.constant 9.99999974E-6 : f32
    %126 = vector.broadcast %cst_54 : f32 to vector<16x1xf32>
    %127 = arith.addf %125, %126 : vector<16x1xf32>
    %128 = math.rsqrt %127 : vector<16x1xf32>
    %129 = vector.broadcast %128 : vector<16x1xf32> to vector<16x64xf32>
    %130 = arith.mulf %120, %129 : vector<16x64xf32>
    %131 = vector.broadcast %113 : vector<1x64xf32> to vector<16x64xf32>
    %132 = arith.mulf %130, %131 : vector<16x64xf32>
    %133 = vector.broadcast %114 : vector<1x64xf32> to vector<16x64xf32>
    %134 = arith.addf %132, %133 : vector<16x64xf32>
    %c0_55 = arith.constant 0 : index
    %c0_56 = arith.constant 0 : index
    %c0_57 = arith.constant 0 : index
    %135 = vector.load %arg11[%c0_55, %c0_56, %c0_57] : memref<1x16x64xf32, #tpu.memory_space<vmem>>, vector<1x16x64xf32>
    %136 = vector.shape_cast %135 : vector<1x16x64xf32> to vector<16x64xf32>
    %137 = vector.shape_cast %134 : vector<16x64xf32> to vector<1x16x64xf32>
    tpu.vector_store %arg11[%c0_55, %c0_56, %c0_57], %137 {strides = array<i32>} : memref<1x16x64xf32, #tpu.memory_space<vmem>>, vector<1x16x64xf32>,
    return
  }
  func.func @transform_0(%arg0: i32) -> (i32, i32, i32) {
    %c0_i32 = arith.constant 0 : i32
    %c0_i32_0 = arith.constant 0 : i32
    %c0_i32_1 = arith.constant 0 : i32
    return %arg0, %c0_i32, %c0_i32_0 : i32, i32, i32
  }
  func.func @transform_1(%arg0: i32) -> (i32, i32, i32) {
    %c0_i32 = arith.constant 0 : i32
    %c0_i32_0 = arith.constant 0 : i32
    %c0_i32_1 = arith.constant 0 : i32
    return %arg0, %c0_i32, %c0_i32_0 : i32, i32, i32
  }
  func.func @transform_2(%arg0: i32) -> (i32, i32) {
    %c0_i32 = arith.constant 0 : i32
    %c0_i32_0 = arith.constant 0 : i32
    %c0_i32_1 = arith.constant 0 : i32
    return %c0_i32, %c0_i32_0 : i32, i32
  }
  func.func @transform_3(%arg0: i32) -> (i32, i32) {
    %c0_i32 = arith.constant 0 : i32
    %c0_i32_0 = arith.constant 0 : i32
    %c0_i32_1 = arith.constant 0 : i32
    return %c0_i32, %c0_i32_0 : i32, i32
  }
  func.func @transform_4(%arg0: i32) -> (i32, i32) {
    %c0_i32 = arith.constant 0 : i32
    %c0_i32_0 = arith.constant 0 : i32
    %c0_i32_1 = arith.constant 0 : i32
    return %c0_i32, %c0_i32_0 : i32, i32
  }
  func.func @transform_5(%arg0: i32) -> (i32, i32) {
    %c0_i32 = arith.constant 0 : i32
    %c0_i32_0 = arith.constant 0 : i32
    %c0_i32_1 = arith.constant 0 : i32
    return %c0_i32, %c0_i32_0 : i32, i32
  }
  func.func @transform_6(%arg0: i32) -> (i32, i32) {
    %c0_i32 = arith.constant 0 : i32
    %c0_i32_0 = arith.constant 0 : i32
    %c0_i32_1 = arith.constant 0 : i32
    return %c0_i32, %c0_i32_0 : i32, i32
  }
  func.func @transform_7(%arg0: i32) -> (i32, i32) {
    %c0_i32 = arith.constant 0 : i32
    %c0_i32_0 = arith.constant 0 : i32
    %c0_i32_1 = arith.constant 0 : i32
    return %c0_i32, %c0_i32_0 : i32, i32
  }
  func.func @transform_8(%arg0: i32) -> (i32, i32) {
    %c0_i32 = arith.constant 0 : i32
    %c0_i32_0 = arith.constant 0 : i32
    %c0_i32_1 = arith.constant 0 : i32
    return %c0_i32, %c0_i32_0 : i32, i32
  }
  func.func @transform_9(%arg0: i32) -> (i32, i32) {
    %c0_i32 = arith.constant 0 : i32
    %c0_i32_0 = arith.constant 0 : i32
    %c0_i32_1 = arith.constant 0 : i32
    return %c0_i32, %c0_i32_0 : i32, i32
  }
  func.func @transform_10(%arg0: i32) -> (i32, i32, i32) {
    %c0_i32 = arith.constant 0 : i32
    %c0_i32_0 = arith.constant 0 : i32
    %c0_i32_1 = arith.constant 0 : i32
    return %arg0, %c0_i32, %c0_i32_0 : i32, i32, i32
  }
}

module attributes {stable_mosaic.version = 11 : i64} {
  func.func @_add_ln_kernel(%arg0: i32, %arg1: memref<16x64xf32, #tpu.memory_space<vmem>>, %arg2: memref<16x64xf32, #tpu.memory_space<vmem>>, %arg3: memref<1x64xf32, #tpu.memory_space<vmem>>, %arg4: memref<1x64xf32, #tpu.memory_space<vmem>>, %arg5: memref<16x64xf32, #tpu.memory_space<vmem>>) attributes {dimension_semantics = [#tpu.dimension_semantics<parallel>], iteration_bounds = array<i64: 2>, scalar_prefetch = 0 : i64, scratch_operands = 0 : i64, tpu.core_type = #tpu.core_type<tc>, window_params = [{transform_indices = @transform_0, window_bounds = array<i64: 16, 64>}, {transform_indices = @transform_1, window_bounds = array<i64: 16, 64>}, {pipeline_mode = #tpu.pipeline_mode<synchronous>, transform_indices = @transform_2, window_bounds = array<i64: 1, 64>}, {pipeline_mode = #tpu.pipeline_mode<synchronous>, transform_indices = @transform_3, window_bounds = array<i64: 1, 64>}, {transform_indices = @transform_4, window_bounds = array<i64: 16, 64>}]} {
    %c0 = arith.constant 0 : index
    %c0_0 = arith.constant 0 : index
    %0 = vector.load %arg1[%c0, %c0_0] : memref<16x64xf32, #tpu.memory_space<vmem>>, vector<16x64xf32>
    %c0_1 = arith.constant 0 : index
    %c0_2 = arith.constant 0 : index
    %1 = vector.load %arg2[%c0_1, %c0_2] : memref<16x64xf32, #tpu.memory_space<vmem>>, vector<16x64xf32>
    %2 = arith.addf %0, %1 : vector<16x64xf32>
    %c0_3 = arith.constant 0 : index
    %c0_4 = arith.constant 0 : index
    %3 = vector.load %arg3[%c0_3, %c0_4] : memref<1x64xf32, #tpu.memory_space<vmem>>, vector<1x64xf32>
    %c0_5 = arith.constant 0 : index
    %c0_6 = arith.constant 0 : index
    %4 = vector.load %arg4[%c0_5, %c0_6] : memref<1x64xf32, #tpu.memory_space<vmem>>, vector<1x64xf32>
    %cst = arith.constant dense<0.000000e+00> : vector<16xf32>
    %5 = vector.multi_reduction <add>, %2, %cst [1] : vector<16x64xf32> to vector<16xf32>
    %6 = vector.shape_cast %5 : vector<16xf32> to vector<16x1xf32>
    %cst_7 = arith.constant 6.400000e+01 : f32
    %7 = vector.broadcast %cst_7 : f32 to vector<16x1xf32>
    %8 = arith.divf %6, %7 : vector<16x1xf32>
    %9 = vector.broadcast %8 : vector<16x1xf32> to vector<16x64xf32>
    %10 = arith.subf %2, %9 : vector<16x64xf32>
    %11 = arith.mulf %10, %10 : vector<16x64xf32>
    %cst_8 = arith.constant dense<0.000000e+00> : vector<16xf32>
    %12 = vector.multi_reduction <add>, %11, %cst_8 [1] : vector<16x64xf32> to vector<16xf32>
    %13 = vector.shape_cast %12 : vector<16xf32> to vector<16x1xf32>
    %cst_9 = arith.constant 6.400000e+01 : f32
    %14 = vector.broadcast %cst_9 : f32 to vector<16x1xf32>
    %15 = arith.divf %13, %14 : vector<16x1xf32>
    %cst_10 = arith.constant 9.99999974E-6 : f32
    %16 = vector.broadcast %cst_10 : f32 to vector<16x1xf32>
    %17 = arith.addf %15, %16 : vector<16x1xf32>
    %18 = math.rsqrt %17 : vector<16x1xf32>
    %19 = vector.broadcast %18 : vector<16x1xf32> to vector<16x64xf32>
    %20 = arith.mulf %10, %19 : vector<16x64xf32>
    %21 = vector.broadcast %3 : vector<1x64xf32> to vector<16x64xf32>
    %22 = arith.mulf %20, %21 : vector<16x64xf32>
    %23 = vector.broadcast %4 : vector<1x64xf32> to vector<16x64xf32>
    %24 = arith.addf %22, %23 : vector<16x64xf32>
    %c0_11 = arith.constant 0 : index
    %c0_12 = arith.constant 0 : index
    %25 = vector.load %arg5[%c0_11, %c0_12] : memref<16x64xf32, #tpu.memory_space<vmem>>, vector<16x64xf32>
    tpu.vector_store %arg5[%c0_11, %c0_12], %24 {strides = array<i32>} : memref<16x64xf32, #tpu.memory_space<vmem>>, vector<16x64xf32>,
    return
  }
  func.func @transform_0(%arg0: i32) -> (i32, i32) {
    %c0_i32 = arith.constant 0 : i32
    %c0_i32_0 = arith.constant 0 : i32
    return %arg0, %c0_i32 : i32, i32
  }
  func.func @transform_1(%arg0: i32) -> (i32, i32) {
    %c0_i32 = arith.constant 0 : i32
    %c0_i32_0 = arith.constant 0 : i32
    return %arg0, %c0_i32 : i32, i32
  }
  func.func @transform_2(%arg0: i32) -> (i32, i32) {
    %c0_i32 = arith.constant 0 : i32
    %c0_i32_0 = arith.constant 0 : i32
    %c0_i32_1 = arith.constant 0 : i32
    return %c0_i32, %c0_i32_0 : i32, i32
  }
  func.func @transform_3(%arg0: i32) -> (i32, i32) {
    %c0_i32 = arith.constant 0 : i32
    %c0_i32_0 = arith.constant 0 : i32
    %c0_i32_1 = arith.constant 0 : i32
    return %c0_i32, %c0_i32_0 : i32, i32
  }
  func.func @transform_4(%arg0: i32) -> (i32, i32) {
    %c0_i32 = arith.constant 0 : i32
    %c0_i32_0 = arith.constant 0 : i32
    return %arg0, %c0_i32 : i32, i32
  }
}

</mosaic_0001>

<llo_original>
// kernel: encoder_forward.14
$region0: #{encoder_forward.14}
  #allocation0 [shape = 'u32[]', space=smem, size = 0x4, offset = 0x4, fixed_abs, tag = 'smem constant byte address 0x4 - core index']
  #allocation1 [shape = 'u32[72,128]{1,0:T(1,128)}', space=vmem, size = 0x9000, scoped, tag = 'internal scratch']
  %s0 = inlined_call_operand.vmem [shape: f32[32,64], index: 0, kind: input, shape index: {}]
  %s1 = inlined_call_operand.vmem [shape: f32[64,24], index: 1, kind: input, shape index: {}]
  %s2 = inlined_call_operand.vmem [shape: f32[1,24], index: 2, kind: input, shape index: {}]
  %s3 = inlined_call_operand.vmem [shape: f32[32,24], index: 3, kind: output, shape index: {}]
  %s4 = sld [smem:[#allocation0]]
  $region45: #{encoder_forward.14} parent=0
    _
  %s6 = ssub.s32 1, %s4
  %s7 = scalar_select 0, %s6, %s4
  loop: start=0, step=1, limit=4
  $region2: #{encoder_forward.14} parent=0 // loop_pre_header
    _
  $region3: #{encoder_forward.14} parent=0 // loop_header
    %s9 = sphi 0, %s13
    %p10 = scmp.ge.s32.totalorder %s9, 4
    %s19 = sphi 0, %s21
    %s22 = sphi 0, %s19
    %s23 = sphi 0, %s22
    %s39 = sphi 0, %s23
    %s43 = sphi 0, %s43
    %s45 = sphi 0, %s43
    %s46 = sphi 0, %s45
    %s60 = sphi 0, %s46
    %s64 = sphi 0, %s64
    %s66 = sphi 0, %s64
    %s67 = sphi 0, %s66
    %s81 = sphi 0, %s67
    %s87 = sphi 0, %s89
    %s90 = sphi 0, %s87
    %s91 = sphi 0, %s90
    %s107 = sphi 0, %s91
  $region4: #{encoder_forward.14} parent=0 // loop_header_branch
    %12 = sbr.rel (%p10) target = $region8
  $region5: #{encoder_forward.14} parent=0 // loop_body
    %s14 = ssub.s32 %s9, 1
    %s15 = ssub.s32 %s9, 2
    %s16 = sadd.s32 %s9, 1
    %s17 = ssub.s32 %s9, %s16
    %p18 = scmp.eq.s32.totalorder %s17, 0
    %s20 = sadd.s32 %s19, 1
    %s21 = scalar_select %p18, %s19, %s20
    %p24 = pneg %p18
    %p25 = scmp.eq.s32.totalorder %s9, 1
    %p26 = por %p24, %p25
    %p27 = scmp.ne.s32.totalorder %s19, %s22
    %p28 = scmp.eq.s32.totalorder %s9, 0
    %p29 = por %p27, %p28
    %p30 = scmp.ne.s32.totalorder %s19, %s22
    %p31 = scmp.eq.s32.totalorder %s14, 1
    %p32 = por %p30, %p31
    %p33 = scmp.ne.s32.totalorder %s22, %s23
    %p34 = scmp.eq.s32.totalorder %s14, 0
    %p35 = por %p33, %p34
    %p36 = scmp.ne.s32.totalorder %s22, %s23
    %p37 = scmp.eq.s32.totalorder %s15, 1
    %p38 = por %p36, %p37
    %p40 = scmp.ne.s32.totalorder %s23, %s39
    %p41 = scmp.eq.s32.totalorder %s15, 0
    %p42 = por %p40, %p41
    %s44 = sadd.s32 %s43, 1
    %p47 = scmp.eq.s32.totalorder %s9, 1
    %p48 = scmp.ne.s32.totalorder %s43, %s45
    %p49 = scmp.eq.s32.totalorder %s9, 0
    %p50 = por %p48, %p49
    %p51 = scmp.ne.s32.totalorder %s43, %s45
    %p52 = scmp.eq.s32.totalorder %s14, 1
    %p53 = por %p51, %p52
    %p54 = scmp.ne.s32.totalorder %s45, %s46
    %p55 = scmp.eq.s32.totalorder %s14, 0
    %p56 = por %p54, %p55
    %p57 = scmp.ne.s32.totalorder %s45, %s46
    %p58 = scmp.eq.s32.totalorder %s15, 1
    %p59 = por %p57, %p58
    %p61 = scmp.ne.s32.totalorder %s46, %s60
    %p62 = scmp.eq.s32.totalorder %s15, 0
    %p63 = por %p61, %p62
    %s65 = sadd.s32 %s64, 1
    %p68 = scmp.eq.s32.totalorder %s9, 1
    %p69 = scmp.ne.s32.totalorder %s64, %s66
    %p70 = scmp.eq.s32.totalorder %s9, 0
    %p71 = por %p69, %p70
    %p72 = scmp.ne.s32.totalorder %s64, %s66
    %p73 = scmp.eq.s32.totalorder %s14, 1
    %p74 = por %p72, %p73
    %p75 = scmp.ne.s32.totalorder %s66, %s67
    %p76 = scmp.eq.s32.totalorder %s14, 0
    %p77 = por %p75, %p76
    %p78 = scmp.ne.s32.totalorder %s66, %s67
    %p79 = scmp.eq.s32.totalorder %s15, 1
    %p80 = por %p78, %p79
    %p82 = scmp.ne.s32.totalorder %s67, %s81
    %p83 = scmp.eq.s32.totalorder %s15, 0
    %p84 = por %p82, %p83
    %s85 = ssub.s32 %s9, %s16
    %p86 = scmp.eq.s32.totalorder %s85, 0
    %s88 = sadd.s32 %s87, 1
    %s89 = scalar_select %p86, %s87, %s88
    %p92 = pneg %p86
    %p93 = scmp.eq.s32.totalorder %s9, 1
    %p94 = por %p92, %p93
    %p95 = scmp.ne.s32.totalorder %s87, %s90
    %p96 = scmp.eq.s32.totalorder %s9, 0
    %p97 = por %p95, %p96
    %p98 = scmp.ne.s32.totalorder %s87, %s90
    %p99 = scmp.eq.s32.totalorder %s14, 1
    %p100 = por %p98, %p99
    %p101 = scmp.ne.s32.totalorder %s90, %s91
    %p102 = scmp.eq.s32.totalorder %s14, 0
    %p103 = por %p101, %p102
    %p104 = scmp.ne.s32.totalorder %s90, %s91
    %p105 = scmp.eq.s32.totalorder %s15, 1
    %p106 = por %p104, %p105
    %p108 = scmp.ne.s32.totalorder %s91, %s107
    %p109 = scmp.eq.s32.totalorder %s15, 0
    %p110 = por %p108, %p109
    %p111 = scmp.le.s32.totalorder 1, %s9
    %p112 = scmp.lt.s32.totalorder %s9, 3
    %p113 = pnand %p111, %p112
    %p114 = pneg %p113
    // Predicated region
    $region9: #{encoder_forward.14} parent=5 // pred_check
      _
    $region10: #{encoder_forward.14} parent=5 // pred_check_branch
      %116 = sbr.rel (%p113) target = $region12
    $region11: #{encoder_forward.14} parent=5 // pred_region
      %s117 = ssub.s32 %s9, 1
      // Predicated region
      $region13: #{encoder_forward.14} parent=11 // pred_check
        %p118 = pneg %p56
      $region14: #{encoder_forward.14} parent=11 // pred_check_branch
        %120 = sbr.rel (%p118) target = $region16
      $region15: #{encoder_forward.14} parent=11 // pred_region
        _
      $region16: #{encoder_forward.14} parent=11 // pred_fallthru
        _
      // Predicated region
      $region17: #{encoder_forward.14} parent=11 // pred_check
        %p121 = pneg %p77
      $region18: #{encoder_forward.14} parent=11 // pred_check_branch
        %123 = sbr.rel (%p121) target = $region20
      $region19: #{encoder_forward.14} parent=11 // pred_region
        _
      $region20: #{encoder_forward.14} parent=11 // pred_fallthru
        _
    $region12: #{encoder_forward.14} parent=5 // pred_fallthru
      _
    %p124 = scmp.lt.s32.totalorder %s9, 2
    // Predicated region
    $region21: #{encoder_forward.14} parent=5 // pred_check
      %p125 = pneg %p124
    $region22: #{encoder_forward.14} parent=5 // pred_check_branch
      %127 = sbr.rel (%p125) target = $region24
    $region23: #{encoder_forward.14} parent=5 // pred_region
      // Predicated region
      $region25: #{encoder_forward.14} parent=23 // pred_check
        %p128 = pneg %p29
      $region26: #{encoder_forward.14} parent=23 // pred_check_branch
        %130 = sbr.rel (%p128) target = $region28
      $region27: #{encoder_forward.14} parent=23 // pred_region
        %s131 = smul.u32 2, %s9
        %p132 = scmp.lt.s32.totalorder %s131, 3
        %s133 = scalar_select %p132, %s131, 3
        %s134 = smul.addr %s133, 8
        %s135 = scalar_lea.vmem %s0, %s134
        %s136 = smul.u32 2, %s9
      $region28: #{encoder_forward.14} parent=23 // pred_fallthru
        _
    $region24: #{encoder_forward.14} parent=5 // pred_fallthru
      _
    %p137 = scmp.le.s32.totalorder 1, %s9
    %p138 = scmp.lt.s32.totalorder %s9, 3
    %p139 = pnand %p137, %p138
    %p140 = pneg %p139
    // Predicated region
    $region29: #{encoder_forward.14} parent=5 // pred_check
      _
    $region30: #{encoder_forward.14} parent=5 // pred_check_branch
      %142 = sbr.rel (%p139) target = $region32
    $region31: #{encoder_forward.14} parent=5 // pred_region
      %s143 = ssub.s32 %s9, 1
      %s144 = smul.u32 2, %s14
      %p145 = scmp.lt.s32.totalorder %s144, 3
      %s146 = scalar_select %p145, %s144, 3
      %s147 = smul.addr %s146, 8
      %s148 = scalar_lea.vmem %s0, %s147
      %p149 = pneg %p35
      %p150 = pneg %p32
      %p151 = pneg %p56
      %p152 = pneg %p53
      %p153 = pneg %p77
      %p154 = pneg %p74
      %p155 = pneg %p103
      %p156 = pneg %p100
      %s157 = smul.u32 2, %s14
      %p158 = scmp.lt.s32.totalorder %s157, 3
      %s159 = scalar_select %p158, %s157, 3
      %s160 = smul.addr %s159, 8
      %s161 = scalar_lea.vmem %s3, %s160
      %s162 = smul.u32 2, %s14
      %p163 = scmp.lt.s32.totalorder %s162, 3
      %s164 = scalar_select %p163, %s162, 3
      %s165 = smul.addr %s164, 8
      %s166 = scalar_lea.vmem %s0, %s165
      %s167 = smul.u32 2, %s14
      %s168 = smul.u32 2, %s14
      %p169 = scmp.lt.s32.totalorder %s168, 3
      %s170 = scalar_select %p169, %s168, 3
      %s171 = smul.addr %s170, 8
      %s172 = scalar_lea.vmem %s3, %s171
      %s173 = smul.u32 2, %s14
      %v175 = vld [vmem:[%s166] sm:$0xff]
      %v176 = vld [vmem:[%s166 + $0x8] sm:$0xff]
      %v177 = vld [vmem:[%s1] sm:$0xff]
      %v178 = vld [vmem:[%s1 + $0x8] sm:$0xff]
      %v179 = vld [vmem:[%s1 + $0x10] sm:$0xff]
      %v180 = vld [vmem:[%s1 + $0x18] sm:$0xff]
      %v181 = vld [vmem:[%s1 + $0x20] sm:$0xff]
      %v182 = vld [vmem:[%s1 + $0x28] sm:$0xff]
      %v183 = vld [vmem:[%s1 + $0x30] sm:$0xff]
      %v184 = vld [vmem:[%s1 + $0x38] sm:$0xff]
      %v185 = vpack.c.bf16 %v176, %v175
      %v186 = vpack.c.bf16 %v178, %v177
      %v187 = vpack.c.bf16 %v180, %v179
      %v188 = vpack.c.bf16 %v182, %v181
      %v189 = vpack.c.bf16 %v184, %v183
      %v190 = vld [vmem:[%s2] sm:$0x1]
      %v192 = vperm.slane %v190, 0
      %vm194 = vcmask 523264
      %v196 = vsel %vm194, %v185, 0
      %198 = vmatpush.bf16.msra.mxu0 0
      %199 = vmatpush.bf16.msra.mxu0 0
      %200 = vmatpush.bf16.msra.mxu0 0
      %201 = vmatpush.bf16.msra.mxu0 0
      %202 = vmatpush.bf16.msra.mxu0 %v189
      %203 = vmatpush.bf16.msra.mxu0 %v188
      %204 = vmatpush.bf16.msra.mxu0 %v187
      %205 = vmatpush.bf16.msra.mxu0 %v186
      %206 = vmatmul.bf16.gmra.mxu0 %v196
      %v207 = vpop.f32.mrf.mxu0
      %v208 = vadd.f32 %v192, %v207
      %v209 = vpop.f32.mrf.mxu0
      %v210 = vadd.f32 %v192, %v209
      %211 = vdwg.mxu0
      %vm212 = vcmask 195584
      %213 = vst.msk [vmem:[%s172] sm:$0xff] %vm212, %v208
      %214 = vst.msk [vmem:[%s172 + $0x8] sm:$0xff] %vm212, %v210
      %s215 = smul.u32 2, %s14
      %p216 = scmp.lt.s32.totalorder %s215, 3
      %s217 = scalar_select %p216, %s215, 3
      %s218 = smul.addr %s217, 8
      %s219 = scalar_lea.vmem %s3, %s218
      // Predicated region
      $region33: #{encoder_forward.14} parent=31 // pred_check
        %p220 = pneg %p100
      $region34: #{encoder_forward.14} parent=31 // pred_check_branch
        %222 = sbr.rel (%p220) target = $region36
      $region35: #{encoder_forward.14} parent=31 // pred_region
        %s223 = smul.u32 2, %s14
      $region36: #{encoder_forward.14} parent=31 // pred_fallthru
        _
    $region32: #{encoder_forward.14} parent=5 // pred_fallthru
      _
    %p224 = scmp.le.s32.totalorder 2, %s9
    // Predicated region
    $region37: #{encoder_forward.14} parent=5 // pred_check
      %p225 = pneg %p224
    $region38: #{encoder_forward.14} parent=5 // pred_check_branch
      %227 = sbr.rel (%p225) target = $region40
    $region39: #{encoder_forward.14} parent=5 // pred_region
      %s228 = ssub.s32 %s9, 2
      // Predicated region
      $region41: #{encoder_forward.14} parent=39 // pred_check
        %p229 = pneg %p106
      $region42: #{encoder_forward.14} parent=39 // pred_check_branch
        %231 = sbr.rel (%p229) target = $region44
      $region43: #{encoder_forward.14} parent=39 // pred_region
        %s232 = smul.u32 2, %s15
        %p233 = scmp.lt.s32.totalorder %s232, 3
        %s234 = scalar_select %p233, %s232, 3
        %s235 = smul.addr %s234, 8
        %s236 = scalar_lea.vmem %s3, %s235
      $region44: #{encoder_forward.14} parent=39 // pred_fallthru
        _
    $region40: #{encoder_forward.14} parent=5 // pred_fallthru
      _
  $region6: #{encoder_forward.14} parent=0 // loop_footer
    %s13 = sadd.s32 1, %s9
  $region7: #{encoder_forward.14} parent=0 // loop_footer_branch
    %8 = sbr.rel target = $region3
  $region8: #{encoder_forward.14} parent=0 // loop_exit
    _

// kernel: encoder_forward.13
$region0: #{encoder_forward.13}
  #allocation0 [shape = 'u32[]', space=smem, size = 0x4, offset = 0x4, fixed_abs, tag = 'smem constant byte address 0x4 - core index']
  #allocation1 [shape = 'u32[72,128]{1,0:T(1,128)}', space=vmem, size = 0x9000, scoped, tag = 'internal scratch']
  %s0 = inlined_call_operand.vmem [shape: f32[32,64], index: 0, kind: input, shape index: {}]
  %s1 = inlined_call_operand.vmem [shape: f32[64,128], index: 1, kind: input, shape index: {}]
  %s2 = inlined_call_operand.vmem [shape: f32[1,128], index: 2, kind: input, shape index: {}]
  %s3 = inlined_call_operand.vmem [shape: f32[128,64], index: 3, kind: input, shape index: {}]
  %s4 = inlined_call_operand.vmem [shape: f32[1,64], index: 4, kind: input, shape index: {}]
  %s5 = inlined_call_operand.vmem [shape: f32[1,64], index: 5, kind: input, shape index: {}]
  %s6 = inlined_call_operand.vmem [shape: f32[1,64], index: 6, kind: input, shape index: {}]
  %s7 = inlined_call_operand.vmem [shape: f32[32,64], index: 7, kind: output, shape index: {}]
  %s8 = sld [smem:[#allocation0]]
  $region61: #{encoder_forward.13} parent=0
    _
  %s10 = ssub.s32 1, %s8
  %s11 = scalar_select 0, %s10, %s8
  loop: start=0, step=1, limit=4
  $region2: #{encoder_forward.13} parent=0 // loop_pre_header
    _
  $region3: #{encoder_forward.13} parent=0 // loop_header
    %s13 = sphi 0, %s17
    %p14 = scmp.ge.s32.totalorder %s13, 4
    %s23 = sphi 0, %s25
    %s26 = sphi 0, %s23
    %s27 = sphi 0, %s26
    %s43 = sphi 0, %s27
    %s47 = sphi 0, %s47
    %s49 = sphi 0, %s47
    %s50 = sphi 0, %s49
    %s64 = sphi 0, %s50
    %s68 = sphi 0, %s68
    %s70 = sphi 0, %s68
    %s71 = sphi 0, %s70
    %s85 = sphi 0, %s71
    %s89 = sphi 0, %s89
    %s91 = sphi 0, %s89
    %s92 = sphi 0, %s91
    %s106 = sphi 0, %s92
    %s110 = sphi 0, %s110
    %s112 = sphi 0, %s110
    %s113 = sphi 0, %s112
    %s127 = sphi 0, %s113
    %s131 = sphi 0, %s131
    %s133 = sphi 0, %s131
    %s134 = sphi 0, %s133
    %s148 = sphi 0, %s134
    %s152 = sphi 0, %s152
    %s154 = sphi 0, %s152
    %s155 = sphi 0, %s154
    %s169 = sphi 0, %s155
    %s175 = sphi 0, %s177
    %s178 = sphi 0, %s175
    %s179 = sphi 0, %s178
    %s195 = sphi 0, %s179
  $region4: #{encoder_forward.13} parent=0 // loop_header_branch
    %16 = sbr.rel (%p14) target = $region8
  $region5: #{encoder_forward.13} parent=0 // loop_body
    %s18 = ssub.s32 %s13, 1
    %s19 = ssub.s32 %s13, 2
    %s20 = sadd.s32 %s13, 1
    %s21 = ssub.s32 %s13, %s20
    %p22 = scmp.eq.s32.totalorder %s21, 0
    %s24 = sadd.s32 %s23, 1
    %s25 = scalar_select %p22, %s23, %s24
    %p28 = pneg %p22
    %p29 = scmp.eq.s32.totalorder %s13, 1
    %p30 = por %p28, %p29
    %p31 = scmp.ne.s32.totalorder %s23, %s26
    %p32 = scmp.eq.s32.totalorder %s13, 0
    %p33 = por %p31, %p32
    %p34 = scmp.ne.s32.totalorder %s23, %s26
    %p35 = scmp.eq.s32.totalorder %s18, 1
    %p36 = por %p34, %p35
    %p37 = scmp.ne.s32.totalorder %s26, %s27
    %p38 = scmp.eq.s32.totalorder %s18, 0
    %p39 = por %p37, %p38
    %p40 = scmp.ne.s32.totalorder %s26, %s27
    %p41 = scmp.eq.s32.totalorder %s19, 1
    %p42 = por %p40, %p41
    %p44 = scmp.ne.s32.totalorder %s27, %s43
    %p45 = scmp.eq.s32.totalorder %s19, 0
    %p46 = por %p44, %p45
    %s48 = sadd.s32 %s47, 1
    %p51 = scmp.eq.s32.totalorder %s13, 1
    %p52 = scmp.ne.s32.totalorder %s47, %s49
    %p53 = scmp.eq.s32.totalorder %s13, 0
    %p54 = por %p52, %p53
    %p55 = scmp.ne.s32.totalorder %s47, %s49
    %p56 = scmp.eq.s32.totalorder %s18, 1
    %p57 = por %p55, %p56
    %p58 = scmp.ne.s32.totalorder %s49, %s50
    %p59 = scmp.eq.s32.totalorder %s18, 0
    %p60 = por %p58, %p59
    %p61 = scmp.ne.s32.totalorder %s49, %s50
    %p62 = scmp.eq.s32.totalorder %s19, 1
    %p63 = por %p61, %p62
    %p65 = scmp.ne.s32.totalorder %s50, %s64
    %p66 = scmp.eq.s32.totalorder %s19, 0
    %p67 = por %p65, %p66
    %s69 = sadd.s32 %s68, 1
    %p72 = scmp.eq.s32.totalorder %s13, 1
    %p73 = scmp.ne.s32.totalorder %s68, %s70
    %p74 = scmp.eq.s32.totalorder %s13, 0
    %p75 = por %p73, %p74
    %p76 = scmp.ne.s32.totalorder %s68, %s70
    %p77 = scmp.eq.s32.totalorder %s18, 1
    %p78 = por %p76, %p77
    %p79 = scmp.ne.s32.totalorder %s70, %s71
    %p80 = scmp.eq.s32.totalorder %s18, 0
    %p81 = por %p79, %p80
    %p82 = scmp.ne.s32.totalorder %s70, %s71
    %p83 = scmp.eq.s32.totalorder %s19, 1
    %p84 = por %p82, %p83
    %p86 = scmp.ne.s32.totalorder %s71, %s85
    %p87 = scmp.eq.s32.totalorder %s19, 0
    %p88 = por %p86, %p87
    %s90 = sadd.s32 %s89, 1
    %p93 = scmp.eq.s32.totalorder %s13, 1
    %p94 = scmp.ne.s32.totalorder %s89, %s91
    %p95 = scmp.eq.s32.totalorder %s13, 0
    %p96 = por %p94, %p95
    %p97 = scmp.ne.s32.totalorder %s89, %s91
    %p98 = scmp.eq.s32.totalorder %s18, 1
    %p99 = por %p97, %p98
    %p100 = scmp.ne.s32.totalorder %s91, %s92
    %p101 = scmp.eq.s32.totalorder %s18, 0
    %p102 = por %p100, %p101
    %p103 = scmp.ne.s32.totalorder %s91, %s92
    %p104 = scmp.eq.s32.totalorder %s19, 1
    %p105 = por %p103, %p104
    %p107 = scmp.ne.s32.totalorder %s92, %s106
    %p108 = scmp.eq.s32.totalorder %s19, 0
    %p109 = por %p107, %p108
    %s111 = sadd.s32 %s110, 1
    %p114 = scmp.eq.s32.totalorder %s13, 1
    %p115 = scmp.ne.s32.totalorder %s110, %s112
    %p116 = scmp.eq.s32.totalorder %s13, 0
    %p117 = por %p115, %p116
    %p118 = scmp.ne.s32.totalorder %s110, %s112
    %p119 = scmp.eq.s32.totalorder %s18, 1
    %p120 = por %p118, %p119
    %p121 = scmp.ne.s32.totalorder %s112, %s113
    %p122 = scmp.eq.s32.totalorder %s18, 0
    %p123 = por %p121, %p122
    %p124 = scmp.ne.s32.totalorder %s112, %s113
    %p125 = scmp.eq.s32.totalorder %s19, 1
    %p126 = por %p124, %p125
    %p128 = scmp.ne.s32.totalorder %s113, %s127
    %p129 = scmp.eq.s32.totalorder %s19, 0
    %p130 = por %p128, %p129
    %s132 = sadd.s32 %s131, 1
    %p135 = scmp.eq.s32.totalorder %s13, 1
    %p136 = scmp.ne.s32.totalorder %s131, %s133
    %p137 = scmp.eq.s32.totalorder %s13, 0
    %p138 = por %p136, %p137
    %p139 = scmp.ne.s32.totalorder %s131, %s133
    %p140 = scmp.eq.s32.totalorder %s18, 1
    %p141 = por %p139, %p140
    %p142 = scmp.ne.s32.totalorder %s133, %s134
    %p143 = scmp.eq.s32.totalorder %s18, 0
    %p144 = por %p142, %p143
    %p145 = scmp.ne.s32.totalorder %s133, %s134
    %p146 = scmp.eq.s32.totalorder %s19, 1
    %p147 = por %p145, %p146
    %p149 = scmp.ne.s32.totalorder %s134, %s148
    %p150 = scmp.eq.s32.totalorder %s19, 0
    %p151 = por %p149, %p150
    %s153 = sadd.s32 %s152, 1
    %p156 = scmp.eq.s32.totalorder %s13, 1
    %p157 = scmp.ne.s32.totalorder %s152, %s154
    %p158 = scmp.eq.s32.totalorder %s13, 0
    %p159 = por %p157, %p158
    %p160 = scmp.ne.s32.totalorder %s152, %s154
    %p161 = scmp.eq.s32.totalorder %s18, 1
    %p162 = por %p160, %p161
    %p163 = scmp.ne.s32.totalorder %s154, %s155
    %p164 = scmp.eq.s32.totalorder %s18, 0
    %p165 = por %p163, %p164
    %p166 = scmp.ne.s32.totalorder %s154, %s155
    %p167 = scmp.eq.s32.totalorder %s19, 1
    %p168 = por %p166, %p167
    %p170 = scmp.ne.s32.totalorder %s155, %s169
    %p171 = scmp.eq.s32.totalorder %s19, 0
    %p172 = por %p170, %p171
    %s173 = ssub.s32 %s13, %s20
    %p174 = scmp.eq.s32.totalorder %s173, 0
    %s176 = sadd.s32 %s175, 1
    %s177 = scalar_select %p174, %s175, %s176
    %p180 = pneg %p174
    %p181 = scmp.eq.s32.totalorder %s13, 1
    %p182 = por %p180, %p181
    %p183 = scmp.ne.s32.totalorder %s175, %s178
    %p184 = scmp.eq.s32.totalorder %s13, 0
    %p185 = por %p183, %p184
    %p186 = scmp.ne.s32.totalorder %s175, %s178
    %p187 = scmp.eq.s32.totalorder %s18, 1
    %p188 = por %p186, %p187
    %p189 = scmp.ne.s32.totalorder %s178, %s179
    %p190 = scmp.eq.s32.totalorder %s18, 0
    %p191 = por %p189, %p190
    %p192 = scmp.ne.s32.totalorder %s178, %s179
    %p193 = scmp.eq.s32.totalorder %s19, 1
    %p194 = por %p192, %p193
    %p196 = scmp.ne.s32.totalorder %s179, %s195
    %p197 = scmp.eq.s32.totalorder %s19, 0
    %p198 = por %p196, %p197
    %p199 = scmp.le.s32.totalorder 1, %s13
    %p200 = scmp.lt.s32.totalorder %s13, 3
    %p201 = pnand %p199, %p200
    %p202 = pneg %p201
    // Predicated region
    $region9: #{encoder_forward.13} parent=5 // pred_check
      _
    $region10: #{encoder_forward.13} parent=5 // pred_check_branch
      %204 = sbr.rel (%p201) target = $region12
    $region11: #{encoder_forward.13} parent=5 // pred_region
      %s205 = ssub.s32 %s13, 1
      // Predicated region
      $region13: #{encoder_forward.13} parent=11 // pred_check
        %p206 = pneg %p60
      $region14: #{encoder_forward.13} parent=11 // pred_check_branch
        %208 = sbr.rel (%p206) target = $region16
      $region15: #{encoder_forward.13} parent=11 // pred_region
        _
      $region16: #{encoder_forward.13} parent=11 // pred_fallthru
        _
      // Predicated region
      $region17: #{encoder_forward.13} parent=11 // pred_check
        %p209 = pneg %p81
      $region18: #{encoder_forward.13} parent=11 // pred_check_branch
        %211 = sbr.rel (%p209) target = $region20
      $region19: #{encoder_forward.13} parent=11 // pred_region
        _
      $region20: #{encoder_forward.13} parent=11 // pred_fallthru
        _
      // Predicated region
      $region21: #{encoder_forward.13} parent=11 // pred_check
        %p212 = pneg %p102
      $region22: #{encoder_forward.13} parent=11 // pred_check_branch
        %214 = sbr.rel (%p212) target = $region24
      $region23: #{encoder_forward.13} parent=11 // pred_region
        _
      $region24: #{encoder_forward.13} parent=11 // pred_fallthru
        _
      // Predicated region
      $region25: #{encoder_forward.13} parent=11 // pred_check
        %p215 = pneg %p123
      $region26: #{encoder_forward.13} parent=11 // pred_check_branch
        %217 = sbr.rel (%p215) target = $region28
      $region27: #{encoder_forward.13} parent=11 // pred_region
        _
      $region28: #{encoder_forward.13} parent=11 // pred_fallthru
        _
      // Predicated region
      $region29: #{encoder_forward.13} parent=11 // pred_check
        %p218 = pneg %p144
      $region30: #{encoder_forward.13} parent=11 // pred_check_branch
        %220 = sbr.rel (%p218) target = $region32
      $region31: #{encoder_forward.13} parent=11 // pred_region
        _
      $region32: #{encoder_forward.13} parent=11 // pred_fallthru
        _
      // Predicated region
      $region33: #{encoder_forward.13} parent=11 // pred_check
        %p221 = pneg %p165
      $region34: #{encoder_forward.13} parent=11 // pred_check_branch
        %223 = sbr.rel (%p221) target = $region36
      $region35: #{encoder_forward.13} parent=11 // pred_region
        _
      $region36: #{encoder_forward.13} parent=11 // pred_fallthru
        _
    $region12: #{encoder_forward.13} parent=5 // pred_fallthru
      _
    %p224 = scmp.lt.s32.totalorder %s13, 2
    // Predicated region
    $region37: #{encoder_forward.13} parent=5 // pred_check
      %p225 = pneg %p224
    $region38: #{encoder_forward.13} parent=5 // pred_check_branch
      %227 = sbr.rel (%p225) target = $region40
    $region39: #{encoder_forward.13} parent=5 // pred_region
      // Predicated region
      $region41: #{encoder_forward.13} parent=39 // pred_check
        %p228 = pneg %p33
      $region42: #{encoder_forward.13} parent=39 // pred_check_branch
        %230 = sbr.rel (%p228) target = $region44
      $region43: #{encoder_forward.13} parent=39 // pred_region
        %s231 = smul.u32 2, %s13
        %p232 = scmp.lt.s32.totalorder %s231, 3
        %s233 = scalar_select %p232, %s231, 3
        %s234 = smul.addr %s233, 8
        %s235 = scalar_lea.vmem %s0, %s234
        %s236 = smul.u32 2, %s13
      $region44: #{encoder_forward.13} parent=39 // pred_fallthru
        _
    $region40: #{encoder_forward.13} parent=5 // pred_fallthru
      _
    %p237 = scmp.le.s32.totalorder 1, %s13
    %p238 = scmp.lt.s32.totalorder %s13, 3
    %p239 = pnand %p237, %p238
    %p240 = pneg %p239
    // Predicated region
    $region45: #{encoder_forward.13} parent=5 // pred_check
      _
    $region46: #{encoder_forward.13} parent=5 // pred_check_branch
      %242 = sbr.rel (%p239) target = $region48
    $region47: #{encoder_forward.13} parent=5 // pred_region
      %s243 = ssub.s32 %s13, 1
      %s244 = smul.u32 2, %s18
      %p245 = scmp.lt.s32.totalorder %s244, 3
      %s246 = scalar_select %p245, %s244, 3
      %s247 = smul.addr %s246, 8
      %s248 = scalar_lea.vmem %s0, %s247
      %p249 = pneg %p39
      %p250 = pneg %p36
      %p251 = pneg %p60
      %p252 = pneg %p57
      %p253 = pneg %p81
      %p254 = pneg %p78
      %p255 = pneg %p102
      %p256 = pneg %p99
      %p257 = pneg %p123
      %p258 = pneg %p120
      %p259 = pneg %p144
      %p260 = pneg %p141
      %p261 = pneg %p165
      %p262 = pneg %p162
      %p263 = pneg %p191
      %p264 = pneg %p188
      %s265 = smul.u32 2, %s18
      %p266 = scmp.lt.s32.totalorder %s265, 3
      %s267 = scalar_select %p266, %s265, 3
      %s268 = smul.addr %s267, 8
      %s269 = scalar_lea.vmem %s7, %s268
      %s270 = smul.u32 2, %s18
      %p271 = scmp.lt.s32.totalorder %s270, 3
      %s272 = scalar_select %p271, %s270, 3
      %s273 = smul.addr %s272, 8
      %s274 = scalar_lea.vmem %s0, %s273
      %s275 = smul.u32 2, %s18
      %s276 = smul.u32 2, %s18
      %p277 = scmp.lt.s32.totalorder %s276, 3
      %s278 = scalar_select %p277, %s276, 3
      %s279 = smul.addr %s278, 8
      %s280 = scalar_lea.vmem %s7, %s279
      %s281 = smul.u32 2, %s18
      %v283 = vld [vmem:[%s274] sm:$0xff]
      %v284 = vld [vmem:[%s274 + $0x8] sm:$0xff]
      %v285 = vld [vmem:[%s1] sm:$0xff]
      %v286 = vld [vmem:[%s1 + $0x8] sm:$0xff]
      %v287 = vld [vmem:[%s1 + $0x10] sm:$0xff]
      %v288 = vld [vmem:[%s1 + $0x18] sm:$0xff]
      %v289 = vld [vmem:[%s1 + $0x20] sm:$0xff]
      %v290 = vld [vmem:[%s1 + $0x28] sm:$0xff]
      %v291 = vld [vmem:[%s1 + $0x30] sm:$0xff]
      %v292 = vld [vmem:[%s1 + $0x38] sm:$0xff]
      %v293 = vpack.c.bf16 %v284, %v283
      %v294 = vpack.c.bf16 %v286, %v285
      %v295 = vpack.c.bf16 %v288, %v287
      %v296 = vpack.c.bf16 %v290, %v289
      %v297 = vpack.c.bf16 %v292, %v291
      %v298 = vld [vmem:[%s2] sm:$0x1]
      %v300 = vperm.slane %v298, 0
      %vm302 = vcmask 523264
      %v304 = vsel %vm302, %v293, 0
      %306 = vmatpush.bf16.msra.mxu0 0
      %307 = vmatpush.bf16.msra.mxu0 0
      %308 = vmatpush.bf16.msra.mxu0 0
      %309 = vmatpush.bf16.msra.mxu0 0
      %310 = vmatpush.bf16.msra.mxu0 %v297
      %311 = vmatpush.bf16.msra.mxu0 %v296
      %312 = vmatpush.bf16.msra.mxu0 %v295
      %313 = vmatpush.bf16.msra.mxu0 %v294
      %314 = vmatmul.bf16.gmra.mxu0 %v304
      %v315 = vpop.f32.mrf.mxu0
      %v316 = vadd.f32 %v300, %v315
      %v317 = vpop.f32.mrf.mxu0
      %v318 = vadd.f32 %v300, %v317
      %319 = vdwg.mxu0
      %v320 = vmax.f32 %v316, 0.0
      %v321 = vmax.f32 %v318, 0.0
      %v322 = vld [vmem:[%s3] sm:$0xff]
      %v323 = vld [vmem:[%s3 + $0x8] sm:$0xff]
      %v324 = vld [vmem:[%s3 + $0x10] sm:$0xff]
      %v325 = vld [vmem:[%s3 + $0x18] sm:$0xff]
      %v326 = vld [vmem:[%s3 + $0x20] sm:$0xff]
      %v327 = vld [vmem:[%s3 + $0x28] sm:$0xff]
      %v328 = vld [vmem:[%s3 + $0x30] sm:$0xff]
      %v329 = vld [vmem:[%s3 + $0x38] sm:$0xff]
      %v330 = vld [vmem:[%s3 + $0x40] sm:$0xff]
      %v331 = vld [vmem:[%s3 + $0x48] sm:$0xff]
      %v332 = vld [vmem:[%s3 + $0x50] sm:$0xff]
      %v333 = vld [vmem:[%s3 + $0x58] sm:$0xff]
      %v334 = vld [vmem:[%s3 + $0x60] sm:$0xff]
      %v335 = vld [vmem:[%s3 + $0x68] sm:$0xff]
      %v336 = vld [vmem:[%s3 + $0x70] sm:$0xff]
      %v337 = vld [vmem:[%s3 + $0x78] sm:$0xff]
      %v338 = vpack.c.bf16 %v321, %v320
      %v339 = vpack.c.bf16 %v323, %v322
      %v340 = vpack.c.bf16 %v325, %v324
      %v341 = vpack.c.bf16 %v327, %v326
      %v342 = vpack.c.bf16 %v329, %v328
      %v343 = vpack.c.bf16 %v331, %v330
      %v344 = vpack.c.bf16 %v333, %v332
      %v345 = vpack.c.bf16 %v335, %v334
      %v346 = vpack.c.bf16 %v337, %v336
      %v347 = vld [vmem:[%s4] sm:$0x1]
      %v349 = vperm.slane %v347, 0
      %351 = vmatpush.bf16.msra.mxu0 %v346
      %352 = vmatpush.bf16.msra.mxu0 %v345
      %353 = vmatpush.bf16.msra.mxu0 %v344
      %354 = vmatpush.bf16.msra.mxu0 %v343
      %355 = vmatpush.bf16.msra.mxu0 %v342
      %356 = vmatpush.bf16.msra.mxu0 %v341
      %357 = vmatpush.bf16.msra.mxu0 %v340
      %358 = vmatpush.bf16.msra.mxu0 %v339
      %359 = vmatmul.bf16.gmra.mxu0 %v338
      %v360 = vpop.f32.mrf.mxu0
      %v361 = vadd.f32 %v349, %v360
      %v362 = vpop.f32.mrf.mxu0
      %v363 = vadd.f32 %v349, %v362
      %364 = vdwg.mxu0
      %v365 = vadd.f32 %v361, %v283
      %v366 = vadd.f32 %v363, %v284
      %v367 = vld [vmem:[%s5] sm:$0x1]
      %v368 = vld [vmem:[%s6] sm:$0x1]
      %v369 = vsel %vm302, %v365, 0.0
      %370 = vadd.xlane.f32.xlu0 %v369
      %v371 = vpop.xlane.xlu0 %370
      %v372 = vsel %vm302, %v366, 0.0
      %373 = vadd.xlane.f32.xlu0 %v372
      %v374 = vpop.xlane.xlu0 %373
      %v375 = vrcp.pop 64.0
      %v376 = vmul.f32 64.0, %v375
      %v377 = vsub.f32 1.0, %v376
      %v378 = vmul.f32 %v375, %v377
      %v379 = vadd.f32 %v375, %v378
      %vm380 = vweird.f32 %v375
      %v381 = vsel %vm380, %v375, %v379
      %v382 = vmul.f32 %v371, %v381
      %v383 = vmul.f32 %v374, %v381
      %v384 = vsub.f32 %v365, %v382
      %v385 = vsub.f32 %v366, %v383
      %v386 = vmul.f32 %v384, %v384
      %v387 = vmul.f32 %v385, %v385
      %v388 = vsel %vm302, %v386, 0.0
      %389 = vadd.xlane.f32.xlu0 %v388
      %v390 = vpop.xlane.xlu0 %389
      %v391 = vsel %vm302, %v387, 0.0
      %392 = vadd.xlane.f32.xlu0 %v391
      %v393 = vpop.xlane.xlu0 %392
      %v394 = vmul.f32 %v390, %v381
      %v395 = vmul.f32 %v393, %v381
      %v396 = vadd.f32 %v394, 1e-05
      %v397 = vadd.f32 %v395, 1e-05
      %v398 = vrsqrt.pop %v396
      %v399 = vmul.f32 %v398, %v396
      %v400 = vmul.f32 %v399, %v398
      %v401 = vmul.f32 0.5, %v400
      %v402 = vsub.f32 1.5, %v401
      %v403 = vmul.f32 %v398, %v402
      %vm404 = vweird.f32 %v396
      %vm405 = vweird.f32 %v398
      %vm406 = vmor %vm404, %vm405
      %v407 = vsel %vm406, %v398, %v403
      %v408 = vrsqrt.pop %v397
      %v409 = vmul.f32 %v408, %v397
      %v410 = vmul.f32 %v409, %v408
      %v411 = vmul.f32 0.5, %v410
      %v412 = vsub.f32 1.5, %v411
      %v413 = vmul.f32 %v408, %v412
      %vm414 = vweird.f32 %v397
      %vm415 = vweird.f32 %v408
      %vm416 = vmor %vm414, %vm415
      %v417 = vsel %vm416, %v408, %v413
      %v418 = vmul.f32 %v384, %v407
      %v419 = vmul.f32 %v385, %v417
      %v421 = vperm.slane %v367, 0
      %v423 = vmul.f32 %v418, %v421
      %v424 = vmul.f32 %v419, %v421
      %v426 = vperm.slane %v368, 0
      %v428 = vadd.f32 %v423, %v426
      %v429 = vadd.f32 %v424, %v426
      %430 = vst.msk [vmem:[%s280] sm:$0xff] %vm302, %v428
      %431 = vst.msk [vmem:[%s280 + $0x8] sm:$0xff] %vm302, %v429
      %s432 = smul.u32 2, %s18
      %p433 = scmp.lt.s32.totalorder %s432, 3
      %s434 = scalar_select %p433, %s432, 3
      %s435 = smul.addr %s434, 8
      %s436 = scalar_lea.vmem %s7, %s435
      // Predicated region
      $region49: #{encoder_forward.13} parent=47 // pred_check
        %p437 = pneg %p188
      $region50: #{encoder_forward.13} parent=47 // pred_check_branch
        %439 = sbr.rel (%p437) target = $region52
      $region51: #{encoder_forward.13} parent=47 // pred_region
        %s440 = smul.u32 2, %s18
      $region52: #{encoder_forward.13} parent=47 // pred_fallthru
        _
    $region48: #{encoder_forward.13} parent=5 // pred_fallthru
      _
    %p441 = scmp.le.s32.totalorder 2, %s13
    // Predicated region
    $region53: #{encoder_forward.13} parent=5 // pred_check
      %p442 = pneg %p441
    $region54: #{encoder_forward.13} parent=5 // pred_check_branch
      %444 = sbr.rel (%p442) target = $region56
    $region55: #{encoder_forward.13} parent=5 // pred_region
      %s445 = ssub.s32 %s13, 2
      // Predicated region
      $region57: #{encoder_forward.13} parent=55 // pred_check
        %p446 = pneg %p194
      $region58: #{encoder_forward.13} parent=55 // pred_check_branch
        %448 = sbr.rel (%p446) target = $region60
      $region59: #{encoder_forward.13} parent=55 // pred_region
        %s449 = smul.u32 2, %s19
        %p450 = scmp.lt.s32.totalorder %s449, 3
        %s451 = scalar_select %p450, %s449, 3
        %s452 = smul.addr %s451, 8
        %s453 = scalar_lea.vmem %s7, %s452
      $region60: #{encoder_forward.13} parent=55 // pred_fallthru
        _
    $region56: #{encoder_forward.13} parent=5 // pred_fallthru
      _
  $region6: #{encoder_forward.13} parent=0 // loop_footer
    %s17 = sadd.s32 1, %s13
  $region7: #{encoder_forward.13} parent=0 // loop_footer_branch
    %12 = sbr.rel target = $region3
  $region8: #{encoder_forward.13} parent=0 // loop_exit
    _

// kernel: encoder_forward.12
$region0: #{encoder_forward.12}
  #allocation0 [shape = 'u32[]', space=smem, size = 0x4, offset = 0x4, fixed_abs, tag = 'smem constant byte address 0x4 - core index']
  #allocation1 [shape = 'u32[72,128]{1,0:T(1,128)}', space=vmem, size = 0x9000, scoped, tag = 'internal scratch']
  %s0 = inlined_call_operand.vmem [shape: f32[2,16,64], index: 0, kind: input, shape index: {}]
  %s1 = inlined_call_operand.vmem [shape: f32[2,8,64], index: 1, kind: input, shape index: {}]
  %s2 = inlined_call_operand.hbm [shape: f32[64,64], index: 2, kind: input, shape index: {}]
  %s3 = inlined_call_operand.vmem [shape: f32[1,64], index: 3, kind: input, shape index: {}]
  %s4 = inlined_call_operand.hbm [shape: f32[64,128], index: 4, kind: input, shape index: {}]
  %s5 = inlined_call_operand.vmem [shape: f32[1,128], index: 5, kind: input, shape index: {}]
  %s6 = inlined_call_operand.hbm [shape: f32[64,64], index: 6, kind: input, shape index: {}]
  %s7 = inlined_call_operand.vmem [shape: f32[1,64], index: 7, kind: input, shape index: {}]
  %s8 = inlined_call_operand.vmem [shape: f32[1,64], index: 8, kind: input, shape index: {}]
  %s9 = inlined_call_operand.vmem [shape: f32[1,64], index: 9, kind: input, shape index: {}]
  %s10 = inlined_call_operand.vmem [shape: f32[2,16,64], index: 10, kind: output, shape index: {}]
  %s11 = sld [smem:[#allocation0]]
  $region85: #{encoder_forward.12} parent=0
    _
  %s13 = ssub.s32 1, %s11
  %s14 = scalar_select 0, %s13, %s11
  $region1: #{encoder_forward.12} parent=0
    #allocation2 [shape = 'u8[32768]{0}', space=vmem, size = 0x8000, scoped, tag = 'input window, operand 2, single buffered']
    #allocation3 [shape = 's32[2]{0}', space=sflag, size = 0x8, scoped, tag = 'scoped memory for encoder_forward.12']
    #allocation4 [shape = 'u8[32768]{0}', space=vmem, size = 0x8000, scoped, tag = 'input window, operand 4, single buffered']
    #allocation5 [shape = 's32[1]{0}', space=sflag, size = 0x4, scoped, tag = 'scoped memory for encoder_forward.12']
    #allocation6 [shape = 'u8[32768]{0}', space=vmem, size = 0x8000, scoped, tag = 'input window, operand 6, single buffered']
    %15 = vsyncpa [#allocation3], 0
    %16 = vsyncpa [#allocation5], 0
    loop: start=0, step=1, limit=4
    $region2: #{encoder_forward.12} parent=1 // loop_pre_header
      _
    $region3: #{encoder_forward.12} parent=1 // loop_header
      %s18 = sphi 0, %s22
      %p19 = scmp.ge.s32.totalorder %s18, 4
      %s28 = sphi 0, %s30
      %s31 = sphi 0, %s28
      %s32 = sphi 0, %s31
      %s48 = sphi 0, %s32
      %s54 = sphi 0, %s56
      %s57 = sphi 0, %s54
      %s58 = sphi 0, %s57
      %s74 = sphi 0, %s58
      %s78 = sphi 0, %s78
      %s80 = sphi 0, %s78
      %s81 = sphi 0, %s80
      %s95 = sphi 0, %s81
      %s99 = sphi 0, %s99
      %s101 = sphi 0, %s99
      %s102 = sphi 0, %s101
      %s116 = sphi 0, %s102
      %s120 = sphi 0, %s120
      %s122 = sphi 0, %s120
      %s123 = sphi 0, %s122
      %s137 = sphi 0, %s123
      %s141 = sphi 0, %s141
      %s143 = sphi 0, %s141
      %s144 = sphi 0, %s143
      %s158 = sphi 0, %s144
      %s162 = sphi 0, %s162
      %s164 = sphi 0, %s162
      %s165 = sphi 0, %s164
      %s179 = sphi 0, %s165
      %s183 = sphi 0, %s183
      %s185 = sphi 0, %s183
      %s186 = sphi 0, %s185
      %s200 = sphi 0, %s186
      %s204 = sphi 0, %s204
      %s206 = sphi 0, %s204
      %s207 = sphi 0, %s206
      %s221 = sphi 0, %s207
      %s225 = sphi 0, %s225
      %s227 = sphi 0, %s225
      %s228 = sphi 0, %s227
      %s242 = sphi 0, %s228
      %s248 = sphi 0, %s250
      %s251 = sphi 0, %s248
      %s252 = sphi 0, %s251
      %s268 = sphi 0, %s252
    $region4: #{encoder_forward.12} parent=1 // loop_header_branch
      %21 = sbr.rel (%p19) target = $region8
    $region5: #{encoder_forward.12} parent=1 // loop_body
      %s23 = ssub.s32 %s18, 1
      %s24 = ssub.s32 %s18, 2
      %s25 = sadd.s32 %s18, 1
      %s26 = ssub.s32 %s18, %s25
      %p27 = scmp.eq.s32.totalorder %s26, 0
      %s29 = sadd.s32 %s28, 1
      %s30 = scalar_select %p27, %s28, %s29
      %p33 = pneg %p27
      %p34 = scmp.eq.s32.totalorder %s18, 1
      %p35 = por %p33, %p34
      %p36 = scmp.ne.s32.totalorder %s28, %s31
      %p37 = scmp.eq.s32.totalorder %s18, 0
      %p38 = por %p36, %p37
      %p39 = scmp.ne.s32.totalorder %s28, %s31
      %p40 = scmp.eq.s32.totalorder %s23, 1
      %p41 = por %p39, %p40
      %p42 = scmp.ne.s32.totalorder %s31, %s32
      %p43 = scmp.eq.s32.totalorder %s23, 0
      %p44 = por %p42, %p43
      %p45 = scmp.ne.s32.totalorder %s31, %s32
      %p46 = scmp.eq.s32.totalorder %s24, 1
      %p47 = por %p45, %p46
      %p49 = scmp.ne.s32.totalorder %s32, %s48
      %p50 = scmp.eq.s32.totalorder %s24, 0
      %p51 = por %p49, %p50
      %s52 = ssub.s32 %s18, %s25
      %p53 = scmp.eq.s32.totalorder %s52, 0
      %s55 = sadd.s32 %s54, 1
      %s56 = scalar_select %p53, %s54, %s55
      %p59 = pneg %p53
      %p60 = scmp.eq.s32.totalorder %s18, 1
      %p61 = por %p59, %p60
      %p62 = scmp.ne.s32.totalorder %s54, %s57
      %p63 = scmp.eq.s32.totalorder %s18, 0
      %p64 = por %p62, %p63
      %p65 = scmp.ne.s32.totalorder %s54, %s57
      %p66 = scmp.eq.s32.totalorder %s23, 1
      %p67 = por %p65, %p66
      %p68 = scmp.ne.s32.totalorder %s57, %s58
      %p69 = scmp.eq.s32.totalorder %s23, 0
      %p70 = por %p68, %p69
      %p71 = scmp.ne.s32.totalorder %s57, %s58
      %p72 = scmp.eq.s32.totalorder %s24, 1
      %p73 = por %p71, %p72
      %p75 = scmp.ne.s32.totalorder %s58, %s74
      %p76 = scmp.eq.s32.totalorder %s24, 0
      %p77 = por %p75, %p76
      %s79 = sadd.s32 %s78, 1
      %p82 = scmp.eq.s32.totalorder %s18, 1
      %p83 = scmp.ne.s32.totalorder %s78, %s80
      %p84 = scmp.eq.s32.totalorder %s18, 0
      %p85 = por %p83, %p84
      %p86 = scmp.ne.s32.totalorder %s78, %s80
      %p87 = scmp.eq.s32.totalorder %s23, 1
      %p88 = por %p86, %p87
      %p89 = scmp.ne.s32.totalorder %s80, %s81
      %p90 = scmp.eq.s32.totalorder %s23, 0
      %p91 = por %p89, %p90
      %p92 = scmp.ne.s32.totalorder %s80, %s81
      %p93 = scmp.eq.s32.totalorder %s24, 1
      %p94 = por %p92, %p93
      %p96 = scmp.ne.s32.totalorder %s81, %s95
      %p97 = scmp.eq.s32.totalorder %s24, 0
      %p98 = por %p96, %p97
      %s100 = sadd.s32 %s99, 1
      %p103 = scmp.eq.s32.totalorder %s18, 1
      %p104 = scmp.ne.s32.totalorder %s99, %s101
      %p105 = scmp.eq.s32.totalorder %s18, 0
      %p106 = por %p104, %p105
      %p107 = scmp.ne.s32.totalorder %s99, %s101
      %p108 = scmp.eq.s32.totalorder %s23, 1
      %p109 = por %p107, %p108
      %p110 = scmp.ne.s32.totalorder %s101, %s102
      %p111 = scmp.eq.s32.totalorder %s23, 0
      %p112 = por %p110, %p111
      %p113 = scmp.ne.s32.totalorder %s101, %s102
      %p114 = scmp.eq.s32.totalorder %s24, 1
      %p115 = por %p113, %p114
      %p117 = scmp.ne.s32.totalorder %s102, %s116
      %p118 = scmp.eq.s32.totalorder %s24, 0
      %p119 = por %p117, %p118
      %s121 = sadd.s32 %s120, 1
      %p124 = scmp.eq.s32.totalorder %s18, 1
      %p125 = scmp.ne.s32.totalorder %s120, %s122
      %p126 = scmp.eq.s32.totalorder %s18, 0
      %p127 = por %p125, %p126
      %p128 = scmp.ne.s32.totalorder %s120, %s122
      %p129 = scmp.eq.s32.totalorder %s23, 1
      %p130 = por %p128, %p129
      %p131 = scmp.ne.s32.totalorder %s122, %s123
      %p132 = scmp.eq.s32.totalorder %s23, 0
      %p133 = por %p131, %p132
      %p134 = scmp.ne.s32.totalorder %s122, %s123
      %p135 = scmp.eq.s32.totalorder %s24, 1
      %p136 = por %p134, %p135
      %p138 = scmp.ne.s32.totalorder %s123, %s137
      %p139 = scmp.eq.s32.totalorder %s24, 0
      %p140 = por %p138, %p139
      %s142 = sadd.s32 %s141, 1
      %p145 = scmp.eq.s32.totalorder %s18, 1
      %p146 = scmp.ne.s32.totalorder %s141, %s143
      %p147 = scmp.eq.s32.totalorder %s18, 0
      %p148 = por %p146, %p147
      %p149 = scmp.ne.s32.totalorder %s141, %s143
      %p150 = scmp.eq.s32.totalorder %s23, 1
      %p151 = por %p149, %p150
      %p152 = scmp.ne.s32.totalorder %s143, %s144
      %p153 = scmp.eq.s32.totalorder %s23, 0
      %p154 = por %p152, %p153
      %p155 = scmp.ne.s32.totalorder %s143, %s144
      %p156 = scmp.eq.s32.totalorder %s24, 1
      %p157 = por %p155, %p156
      %p159 = scmp.ne.s32.totalorder %s144, %s158
      %p160 = scmp.eq.s32.totalorder %s24, 0
      %p161 = por %p159, %p160
      %s163 = sadd.s32 %s162, 1
      %p166 = scmp.eq.s32.totalorder %s18, 1
      %p167 = scmp.ne.s32.totalorder %s162, %s164
      %p168 = scmp.eq.s32.totalorder %s18, 0
      %p169 = por %p167, %p168
      %p170 = scmp.ne.s32.totalorder %s162, %s164
      %p171 = scmp.eq.s32.totalorder %s23, 1
      %p172 = por %p170, %p171
      %p173 = scmp.ne.s32.totalorder %s164, %s165
      %p174 = scmp.eq.s32.totalorder %s23, 0
      %p175 = por %p173, %p174
      %p176 = scmp.ne.s32.totalorder %s164, %s165
      %p177 = scmp.eq.s32.totalorder %s24, 1
      %p178 = por %p176, %p177
      %p180 = scmp.ne.s32.totalorder %s165, %s179
      %p181 = scmp.eq.s32.totalorder %s24, 0
      %p182 = por %p180, %p181
      %s184 = sadd.s32 %s183, 1
      %p187 = scmp.eq.s32.totalorder %s18, 1
      %p188 = scmp.ne.s32.totalorder %s183, %s185
      %p189 = scmp.eq.s32.totalorder %s18, 0
      %p190 = por %p188, %p189
      %p191 = scmp.ne.s32.totalorder %s183, %s185
      %p192 = scmp.eq.s32.totalorder %s23, 1
      %p193 = por %p191, %p192
      %p194 = scmp.ne.s32.totalorder %s185, %s186
      %p195 = scmp.eq.s32.totalorder %s23, 0
      %p196 = por %p194, %p195
      %p197 = scmp.ne.s32.totalorder %s185, %s186
      %p198 = scmp.eq.s32.totalorder %s24, 1
      %p199 = por %p197, %p198
      %p201 = scmp.ne.s32.totalorder %s186, %s200
      %p202 = scmp.eq.s32.totalorder %s24, 0
      %p203 = por %p201, %p202
      %s205 = sadd.s32 %s204, 1
      %p208 = scmp.eq.s32.totalorder %s18, 1
      %p209 = scmp.ne.s32.totalorder %s204, %s206
      %p210 = scmp.eq.s32.totalorder %s18, 0
      %p211 = por %p209, %p210
      %p212 = scmp.ne.s32.totalorder %s204, %s206
      %p213 = scmp.eq.s32.totalorder %s23, 1
      %p214 = por %p212, %p213
      %p215 = scmp.ne.s32.totalorder %s206, %s207
      %p216 = scmp.eq.s32.totalorder %s23, 0
      %p217 = por %p215, %p216
      %p218 = scmp.ne.s32.totalorder %s206, %s207
      %p219 = scmp.eq.s32.totalorder %s24, 1
      %p220 = por %p218, %p219
      %p222 = scmp.ne.s32.totalorder %s207, %s221
      %p223 = scmp.eq.s32.totalorder %s24, 0
      %p224 = por %p222, %p223
      %s226 = sadd.s32 %s225, 1
      %p229 = scmp.eq.s32.totalorder %s18, 1
      %p230 = scmp.ne.s32.totalorder %s225, %s227
      %p231 = scmp.eq.s32.totalorder %s18, 0
      %p232 = por %p230, %p231
      %p233 = scmp.ne.s32.totalorder %s225, %s227
      %p234 = scmp.eq.s32.totalorder %s23, 1
      %p235 = por %p233, %p234
      %p236 = scmp.ne.s32.totalorder %s227, %s228
      %p237 = scmp.eq.s32.totalorder %s23, 0
      %p238 = por %p236, %p237
      %p239 = scmp.ne.s32.totalorder %s227, %s228
      %p240 = scmp.eq.s32.totalorder %s24, 1
      %p241 = por %p239, %p240
      %p243 = scmp.ne.s32.totalorder %s228, %s242
      %p244 = scmp.eq.s32.totalorder %s24, 0
      %p245 = por %p243, %p244
      %s246 = ssub.s32 %s18, %s25
      %p247 = scmp.eq.s32.totalorder %s246, 0
      %s249 = sadd.s32 %s248, 1
      %s250 = scalar_select %p247, %s248, %s249
      %p253 = pneg %p247
      %p254 = scmp.eq.s32.totalorder %s18, 1
      %p255 = por %p253, %p254
      %p256 = scmp.ne.s32.totalorder %s248, %s251
      %p257 = scmp.eq.s32.totalorder %s18, 0
      %p258 = por %p256, %p257
      %p259 = scmp.ne.s32.totalorder %s248, %s251
      %p260 = scmp.eq.s32.totalorder %s23, 1
      %p261 = por %p259, %p260
      %p262 = scmp.ne.s32.totalorder %s251, %s252
      %p263 = scmp.eq.s32.totalorder %s23, 0
      %p264 = por %p262, %p263
      %p265 = scmp.ne.s32.totalorder %s251, %s252
      %p266 = scmp.eq.s32.totalorder %s24, 1
      %p267 = por %p265, %p266
      %p269 = scmp.ne.s32.totalorder %s252, %s268
      %p270 = scmp.eq.s32.totalorder %s24, 0
      %p271 = por %p269, %p270
      %p272 = scmp.le.s32.totalorder 1, %s18
      %p273 = scmp.lt.s32.totalorder %s18, 3
      %p274 = pnand %p272, %p273
      %p275 = pneg %p274
      // Predicated region
      $region9: #{encoder_forward.12} parent=5 // pred_check
        _
      $region10: #{encoder_forward.12} parent=5 // pred_check_branch
        %277 = sbr.rel (%p274) target = $region12
      $region11: #{encoder_forward.12} parent=5 // pred_region
        %s278 = ssub.s32 %s18, 1
        // Predicated region
        $region13: #{encoder_forward.12} parent=11 // pred_check
          %p279 = pneg %p91
        $region14: #{encoder_forward.12} parent=11 // pred_check_branch
          %281 = sbr.rel (%p279) target = $region16
        $region15: #{encoder_forward.12} parent=11 // pred_region
          %283 = vsyncadd [#allocation3], 0
          %s284 = sshll.u32 %s2, 4
          %s285 = int_to_ptr.hbm [resolvable:$true] %s284
          %s286 = sshll.u32 [#allocation2], 4
          %s287 = int_to_ptr.vmem [resolvable:$true] %s286
          %292 = dma.hbm_to_vmem [thread:$0]  %s285, 1024, %s287, [#allocation3], 128, 128, 8
        $region16: #{encoder_forward.12} parent=11 // pred_fallthru
          _
        // Predicated region
        $region17: #{encoder_forward.12} parent=11 // pred_check
          %p293 = pneg %p112
        $region18: #{encoder_forward.12} parent=11 // pred_check_branch
          %295 = sbr.rel (%p293) target = $region20
        $region19: #{encoder_forward.12} parent=11 // pred_region
          _
        $region20: #{encoder_forward.12} parent=11 // pred_fallthru
          _
        // Predicated region
        $region21: #{encoder_forward.12} parent=11 // pred_check
          %p296 = pneg %p133
        $region22: #{encoder_forward.12} parent=11 // pred_check_branch
          %298 = sbr.rel (%p296) target = $region24
        $region23: #{encoder_forward.12} parent=11 // pred_region
          %300 = vsyncadd [#allocation5], 0
          %s301 = sshll.u32 %s4, 4
          %s302 = int_to_ptr.hbm [resolvable:$true] %s301
          %s303 = sshll.u32 [#allocation4], 4
          %s304 = int_to_ptr.vmem [resolvable:$true] %s303
          %309 = dma.hbm_to_vmem [thread:$0]  %s302, 1024, %s304, [#allocation5], 128, 128, 8
        $region24: #{encoder_forward.12} parent=11 // pred_fallthru
          _
        // Predicated region
        $region25: #{encoder_forward.12} parent=11 // pred_check
          %p310 = pneg %p154
        $region26: #{encoder_forward.12} parent=11 // pred_check_branch
          %312 = sbr.rel (%p310) target = $region28
        $region27: #{encoder_forward.12} parent=11 // pred_region
          _
        $region28: #{encoder_forward.12} parent=11 // pred_fallthru
          _
        // Predicated region
        $region29: #{encoder_forward.12} parent=11 // pred_check
          %p313 = pneg %p175
        $region30: #{encoder_forward.12} parent=11 // pred_check_branch
          %315 = sbr.rel (%p313) target = $region32
        $region31: #{encoder_forward.12} parent=11 // pred_region
          %317 = vsyncadd [#allocation5], 0
          %s318 = sshll.u32 %s6, 4
          %s319 = int_to_ptr.hbm [resolvable:$true] %s318
          %s320 = sshll.u32 [#allocation6], 4
          %s321 = int_to_ptr.vmem [resolvable:$true] %s320
          %326 = dma.hbm_to_vmem [thread:$0]  %s319, 1024, %s321, [#allocation5], 128, 128, 8
        $region32: #{encoder_forward.12} parent=11 // pred_fallthru
          _
        // Predicated region
        $region33: #{encoder_forward.12} parent=11 // pred_check
          %p327 = pneg %p196
        $region34: #{encoder_forward.12} parent=11 // pred_check_branch
          %329 = sbr.rel (%p327) target = $region36
        $region35: #{encoder_forward.12} parent=11 // pred_region
          _
        $region36: #{encoder_forward.12} parent=11 // pred_fallthru
          _
        // Predicated region
        $region37: #{encoder_forward.12} parent=11 // pred_check
          %p330 = pneg %p217
        $region38: #{encoder_forward.12} parent=11 // pred_check_branch
          %332 = sbr.rel (%p330) target = $region40
        $region39: #{encoder_forward.12} parent=11 // pred_region
          _
        $region40: #{encoder_forward.12} parent=11 // pred_fallthru
          _
        // Predicated region
        $region41: #{encoder_forward.12} parent=11 // pred_check
          %p333 = pneg %p238
        $region42: #{encoder_forward.12} parent=11 // pred_check_branch
          %335 = sbr.rel (%p333) target = $region44
        $region43: #{encoder_forward.12} parent=11 // pred_region
          _
        $region44: #{encoder_forward.12} parent=11 // pred_fallthru
          _
      $region12: #{encoder_forward.12} parent=5 // pred_fallthru
        _
      %p336 = scmp.lt.s32.totalorder %s18, 2
      // Predicated region
      $region45: #{encoder_forward.12} parent=5 // pred_check
        %p337 = pneg %p336
      $region46: #{encoder_forward.12} parent=5 // pred_check_branch
        %339 = sbr.rel (%p337) target = $region48
      $region47: #{encoder_forward.12} parent=5 // pred_region
        // Predicated region
        $region49: #{encoder_forward.12} parent=47 // pred_check
          %p340 = pneg %p38
        $region50: #{encoder_forward.12} parent=47 // pred_check_branch
          %342 = sbr.rel (%p340) target = $region52
        $region51: #{encoder_forward.12} parent=47 // pred_region
          %p343 = scmp.lt.s32.totalorder %s18, 1
          %s344 = scalar_select %p343, %s18, 1
          %s345 = smul.addr %s344, 2
          %s346 = smul.addr %s345, 8
          %s347 = scalar_lea.vmem %s0, %s346
        $region52: #{encoder_forward.12} parent=47 // pred_fallthru
          _
        // Predicated region
        $region53: #{encoder_forward.12} parent=47 // pred_check
          %p348 = pneg %p64
        $region54: #{encoder_forward.12} parent=47 // pred_check_branch
          %350 = sbr.rel (%p348) target = $region56
        $region55: #{encoder_forward.12} parent=47 // pred_region
          %p351 = scmp.lt.s32.totalorder %s18, 1
          %s352 = scalar_select %p351, %s18, 1
          %s353 = smul.addr %s352, 8
          %s354 = scalar_lea.vmem %s1, %s353
        $region56: #{encoder_forward.12} parent=47 // pred_fallthru
          _
      $region48: #{encoder_forward.12} parent=5 // pred_fallthru
        _
      %p355 = scmp.le.s32.totalorder 1, %s18
      %p356 = scmp.lt.s32.totalorder %s18, 3
      %p357 = pnand %p355, %p356
      %p358 = pneg %p357
      // Predicated region
      $region57: #{encoder_forward.12} parent=5 // pred_check
        _
      $region58: #{encoder_forward.12} parent=5 // pred_check_branch
        %360 = sbr.rel (%p357) target = $region60
      $region59: #{encoder_forward.12} parent=5 // pred_region
        %s361 = ssub.s32 %s18, 1
        // Predicated region
        $region61: #{encoder_forward.12} parent=59 // pred_check
          %p362 = pneg %p91
        $region62: #{encoder_forward.12} parent=59 // pred_check_branch
          %364 = sbr.rel (%p362) target = $region64
        $region63: #{encoder_forward.12} parent=59 // pred_region
          %366 = dma.done [#allocation3], 1024
        $region64: #{encoder_forward.12} parent=59 // pred_fallthru
          _
        // Predicated region
        $region65: #{encoder_forward.12} parent=59 // pred_check
          %p367 = pneg %p133
        $region66: #{encoder_forward.12} parent=59 // pred_check_branch
          %369 = sbr.rel (%p367) target = $region68
        $region67: #{encoder_forward.12} parent=59 // pred_region
          %371 = dma.done [#allocation5], 1024
        $region68: #{encoder_forward.12} parent=59 // pred_fallthru
          _
        // Predicated region
        $region69: #{encoder_forward.12} parent=59 // pred_check
          %p372 = pneg %p175
        $region70: #{encoder_forward.12} parent=59 // pred_check_branch
          %374 = sbr.rel (%p372) target = $region72
        $region71: #{encoder_forward.12} parent=59 // pred_region
          %376 = dma.done [#allocation5], 1024
        $region72: #{encoder_forward.12} parent=59 // pred_fallthru
          _
        %p377 = scmp.lt.s32.totalorder %s23, 1
        %s378 = scalar_select %p377, %s23, 1
        %s379 = smul.addr %s378, 2
        %s380 = smul.addr %s379, 8
        %s381 = scalar_lea.vmem %s0, %s380
        %p382 = pneg %p44
        %p383 = pneg %p41
        %p384 = scmp.lt.s32.totalorder %s23, 1
        %s385 = scalar_select %p384, %s23, 1
        %s386 = smul.addr %s385, 8
        %s387 = scalar_lea.vmem %s1, %s386
        %p388 = pneg %p70
        %p389 = pneg %p67
        %p390 = pneg %p91
        %p391 = pneg %p88
        %p392 = pneg %p112
        %p393 = pneg %p109
        %p394 = pneg %p133
        %p395 = pneg %p130
        %p396 = pneg %p154
        %p397 = pneg %p151
        %p398 = pneg %p175
        %p399 = pneg %p172
        %p400 = pneg %p196
        %p401 = pneg %p193
        %p402 = pneg %p217
        %p403 = pneg %p214
        %p404 = pneg %p238
        %p405 = pneg %p235
        %p406 = pneg %p264
        %p407 = pneg %p261
        %p408 = scmp.lt.s32.totalorder %s23, 1
        %s409 = scalar_select %p408, %s23, 1
        %s410 = smul.addr %s409, 2
        %s411 = smul.addr %s410, 8
        %s412 = scalar_lea.vmem %s10, %s411
        %p413 = scmp.lt.s32.totalorder %s23, 1
        %s414 = scalar_select %p413, %s23, 1
        %s415 = smul.addr %s414, 2
        %s416 = smul.addr %s415, 8
        %s417 = scalar_lea.vmem %s0, %s416
        %p418 = scmp.lt.s32.totalorder %s23, 1
        %s419 = scalar_select %p418, %s23, 1
        %s420 = smul.addr %s419, 8
        %s421 = scalar_lea.vmem %s1, %s420
        %p422 = scmp.lt.s32.totalorder %s23, 1
        %s423 = scalar_select %p422, %s23, 1
        %s424 = smul.addr %s423, 2
        %s425 = smul.addr %s424, 8
        %s426 = scalar_lea.vmem %s10, %s425
        %v428 = vld [vmem:[%s417] sm:$0xff]
        %v429 = vld [vmem:[%s417 + $0x8] sm:$0xff]
        %v430 = vld [vmem:[%s421] sm:$0xff]
        %v431 = vld [vmem:[#allocation2] sm:$0xff]
        %v432 = vld [vmem:[#allocation2 + $0x8] sm:$0xff]
        %v433 = vld [vmem:[#allocation2 + $0x10] sm:$0xff]
        %v434 = vld [vmem:[#allocation2 + $0x18] sm:$0xff]
        %v435 = vld [vmem:[#allocation2 + $0x20] sm:$0xff]
        %v436 = vld [vmem:[#allocation2 + $0x28] sm:$0xff]
        %v437 = vld [vmem:[#allocation2 + $0x30] sm:$0xff]
        %v438 = vld [vmem:[#allocation2 + $0x38] sm:$0xff]
        %v439 = vpack.c.bf16 %v429, %v428
        %v440 = vpack.c.bf16 %v432, %v431
        %v441 = vpack.c.bf16 %v434, %v433
        %v442 = vpack.c.bf16 %v436, %v435
        %v443 = vpack.c.bf16 %v438, %v437
        %v444 = vld [vmem:[%s3] sm:$0x1]
        %v446 = vperm.slane %v444, 0
        %vm448 = vcmask 523264
        %v450 = vsel %vm448, %v439, 0
        %452 = vmatpush.bf16.msra.mxu0 0
        %453 = vmatpush.bf16.msra.mxu0 0
        %454 = vmatpush.bf16.msra.mxu0 0
        %455 = vmatpush.bf16.msra.mxu0 0
        %456 = vmatpush.bf16.msra.mxu0 %v443
        %457 = vmatpush.bf16.msra.mxu0 %v442
        %458 = vmatpush.bf16.msra.mxu0 %v441
        %459 = vmatpush.bf16.msra.mxu0 %v440
        %460 = vmatmul.bf16.gmra.mxu0 %v450
        %v461 = vpop.f32.mrf.mxu0
        %v462 = vadd.f32 %v446, %v461
        %v463 = vpop.f32.mrf.mxu0
        %v464 = vadd.f32 %v446, %v463
        %465 = vdwg.mxu0
        %v466 = vld [vmem:[#allocation4] sm:$0xff]
        %v467 = vld [vmem:[#allocation4 + $0x8] sm:$0xff]
        %v468 = vld [vmem:[#allocation4 + $0x10] sm:$0xff]
        %v469 = vld [vmem:[#allocation4 + $0x18] sm:$0xff]
        %v470 = vld [vmem:[#allocation4 + $0x20] sm:$0xff]
        %v471 = vld [vmem:[#allocation4 + $0x28] sm:$0xff]
        %v472 = vld [vmem:[#allocation4 + $0x30] sm:$0xff]
        %v473 = vld [vmem:[#allocation4 + $0x38] sm:$0xff]
        %v474 = vpack.c.bf16 %v430, %v430
        %v475 = vpack.c.bf16 %v467, %v466
        %v476 = vpack.c.bf16 %v469, %v468
        %v477 = vpack.c.bf16 %v471, %v470
        %v478 = vpack.c.bf16 %v473, %v472
        %v479 = vld [vmem:[%s5] sm:$0x1]
        %v481 = vperm.slane %v479, 0
        %v484 = vsel %vm448, %v474, 0
        %486 = vmatpush.bf16.msra.mxu0 0
        %487 = vmatpush.bf16.msra.mxu0 0
        %488 = vmatpush.bf16.msra.mxu0 0
        %489 = vmatpush.bf16.msra.mxu0 0
        %490 = vmatpush.bf16.msra.mxu0 %v478
        %491 = vmatpush.bf16.msra.mxu0 %v477
        %492 = vmatpush.bf16.msra.mxu0 %v476
        %493 = vmatpush.bf16.msra.mxu0 %v475
        %494 = vmatmul.bf16.gmra.mxu0 %v484
        %v495 = vpop.f32.mrf.mxu0
        %v496 = vadd.f32 %v481, %v495
        %v497 = vpop.f32.mrf.mxu0
        %498 = vdwg.mxu0
        %v499 = vld [vmem:[%s7] sm:$0x1]
        %v501 = vperm.slane %v499, 0
        %v503 = vadd.f32 %v501, 0.0
        %vm504 = vcmask 130048
        %v506 = vsel %vm504, %v462, 0
        %v509 = vsel %vm504, %v464, 0
        %v512 = vsel %vm504, %v496, 0
        %514 = vmatpush.xpose.msra.mxu0 0.0
        %515 = vmatpush.xpose.msra.mxu0 0.0
        %516 = vmatpush.xpose.msra.mxu0 0.0
        %517 = vmatpush.xpose.msra.mxu0 0.0
        %518 = vmatpush.xpose.msra.mxu0 0.0
        %519 = vmatpush.xpose.msra.mxu0 0.0
        %520 = vmatpush.xpose.msra.mxu0 0.0
        %521 = vmatpush.xpose.msra.mxu0 0.0
        %522 = vmatpush.xpose.msra.mxu0 0.0
        %523 = vmatpush.xpose.msra.mxu0 0.0
        %524 = vmatpush.xpose.msra.mxu0 0.0
        %525 = vmatpush.xpose.msra.mxu0 0.0
        %526 = vmatpush.xpose.msra.mxu0 0.0
        %527 = vmatpush.xpose.msra.mxu0 0.0
        %528 = vmatpush.xpose.msra.mxu0 0.0
        %529 = vmatpush.xpose.msra.mxu0 %v512
        %530 = vmatmul.f32.gmra.mxu0 %v506
        %v531 = vpop.f32.mrf.mxu0
        %v532 = vadd.f32 0.0, %v531
        %533 = vmatmul.f32.gmra.mxu0 %v509
        %v534 = vpop.f32.mrf.mxu0
        %v535 = vadd.f32 0.0, %v534
        %536 = vdwg.mxu0
        %v537 = vmul.f32 %v532, 0.25
        %v538 = vmul.f32 %v535, 0.25
        %vm539 = vcmask 64512
        %v540 = vsel %vm539, %v537, -inf
        %541 = vmax.xlane.f32.xlu0 %v540
        %v542 = vpop.xlane.xlu0 %541
        %v543 = vsel %vm539, %v538, -inf
        %544 = vmax.xlane.f32.xlu0 %v543
        %v545 = vpop.xlane.xlu0 %544
        %v546 = vsub.f32 %v537, %v542
        %v547 = vsub.f32 %v538, %v545
        %v548 = vmul.f32 %v546, 1.442695
        %v549 = vpow.pop %v548
        %v550 = vmul.f32 %v547, 1.442695
        %v551 = vpow.pop %v550
        %v552 = vsel %vm539, %v549, 0.0
        %553 = vadd.xlane.f32.xlu0 %v552
        %v554 = vpop.xlane.xlu0 %553
        %v555 = vsel %vm539, %v551, 0.0
        %556 = vadd.xlane.f32.xlu0 %v555
        %v557 = vpop.xlane.xlu0 %556
        %v558 = vrcp.pop %v554
        %v559 = vrcp.pop %v557
        %v560 = vmul.f32 %v549, %v558
        %v561 = vmul.f32 %v551, %v559
        %562 = vrot.lane.b32.xlu0 %v496, 64
        %v563 = vpop.permute.xlu0 %562
        %v566 = vsel %vm539, %v560, 0
        %v569 = vsel %vm539, %v561, 0
        %571 = vmatpush.msra.mxu0 0.0
        %572 = vmatpush.msra.mxu0 0.0
        %573 = vmatpush.msra.mxu0 0.0
        %574 = vmatpush.msra.mxu0 0.0
        %575 = vmatpush.msra.mxu0 0.0
        %576 = vmatpush.msra.mxu0 0.0
        %577 = vmatpush.msra.mxu0 0.0
        %578 = vmatpush.msra.mxu0 0.0
        %579 = vmatpush.msra.mxu0 0.0
        %580 = vmatpush.msra.mxu0 0.0
        %581 = vmatpush.msra.mxu0 0.0
        %582 = vmatpush.msra.mxu0 0.0
        %583 = vmatpush.msra.mxu0 0.0
        %584 = vmatpush.msra.mxu0 0.0
        %585 = vmatpush.msra.mxu0 0.0
        %586 = vmatpush.msra.mxu0 %v563
        %587 = vmatmul.f32.gmra.mxu0 %v566
        %v588 = vpop.f32.mrf.mxu0
        %v589 = vadd.f32 0.0, %v588
        %590 = vmatmul.f32.gmra.mxu0 %v569
        %v591 = vpop.f32.mrf.mxu0
        %v592 = vadd.f32 0.0, %v591
        %593 = vdwg.mxu0
        %v594 = vld [vmem:[#allocation6] sm:$0xff]
        %v595 = vld [vmem:[#allocation6 + $0x8] sm:$0xff]
        %v596 = vpack.c.bf16 %v592, %v589
        %v597 = vpack.c.bf16 %v595, %v594
        %v599 = vsel %vm504, %v596, 0
        %601 = vmatpush.bf16.msra.mxu0 0
        %602 = vmatpush.bf16.msra.mxu0 0
        %603 = vmatpush.bf16.msra.mxu0 0
        %604 = vmatpush.bf16.msra.mxu0 0
        %605 = vmatpush.bf16.msra.mxu0 0
        %606 = vmatpush.bf16.msra.mxu0 0
        %607 = vmatpush.bf16.msra.mxu0 0
        %608 = vmatpush.bf16.msra.mxu0 %v597
        %609 = vmatmul.bf16.gmra.mxu0 %v599
        %v610 = vpop.f32.mrf.mxu0
        %v611 = vadd.f32 0.0, %v610
        %v612 = vpop.f32.mrf.mxu0
        %v613 = vadd.f32 0.0, %v612
        %614 = vdwg.mxu0
        %v615 = vadd.f32 %v503, %v611
        %v616 = vadd.f32 %v503, %v613
        %617 = vrot.lane.b32.xlu0 %v462, 112
        %v618 = vpop.permute.xlu0 %617
        %619 = vrot.lane.b32.xlu0 %v464, 112
        %v620 = vpop.permute.xlu0 %619
        %621 = vrot.lane.b32.xlu0 %v496, 112
        %v622 = vpop.permute.xlu0 %621
        %v623 = vsel %vm504, %v618, 0
        %v625 = vsel %vm504, %v620, 0
        %v627 = vsel %vm504, %v622, 0
        %629 = vmatpush.xpose.msra.mxu0 0.0
        %630 = vmatpush.xpose.msra.mxu0 0.0
        %631 = vmatpush.xpose.msra.mxu0 0.0
        %632 = vmatpush.xpose.msra.mxu0 0.0
        %633 = vmatpush.xpose.msra.mxu0 0.0
        %634 = vmatpush.xpose.msra.mxu0 0.0
        %635 = vmatpush.xpose.msra.mxu0 0.0
        %636 = vmatpush.xpose.msra.mxu0 0.0
        %637 = vmatpush.xpose.msra.mxu0 0.0
        %638 = vmatpush.xpose.msra.mxu0 0.0
        %639 = vmatpush.xpose.msra.mxu0 0.0
        %640 = vmatpush.xpose.msra.mxu0 0.0
        %641 = vmatpush.xpose.msra.mxu0 0.0
        %642 = vmatpush.xpose.msra.mxu0 0.0
        %643 = vmatpush.xpose.msra.mxu0 0.0
        %644 = vmatpush.xpose.msra.mxu0 %v627
        %645 = vmatmul.f32.gmra.mxu0 %v623
        %v646 = vpop.f32.mrf.mxu0
        %v647 = vadd.f32 0.0, %v646
        %648 = vmatmul.f32.gmra.mxu0 %v625
        %v649 = vpop.f32.mrf.mxu0
        %v650 = vadd.f32 0.0, %v649
        %651 = vdwg.mxu0
        %v652 = vmul.f32 %v647, 0.25
        %v653 = vmul.f32 %v650, 0.25
        %v654 = vsel %vm539, %v652, -inf
        %655 = vmax.xlane.f32.xlu0 %v654
        %v656 = vpop.xlane.xlu0 %655
        %v657 = vsel %vm539, %v653, -inf
        %658 = vmax.xlane.f32.xlu0 %v657
        %v659 = vpop.xlane.xlu0 %658
        %v660 = vsub.f32 %v652, %v656
        %v661 = vsub.f32 %v653, %v659
        %v662 = vmul.f32 %v660, 1.442695
        %v663 = vpow.pop %v662
        %v664 = vmul.f32 %v661, 1.442695
        %v665 = vpow.pop %v664
        %v666 = vsel %vm539, %v663, 0.0
        %667 = vadd.xlane.f32.xlu0 %v666
        %v668 = vpop.xlane.xlu0 %667
        %v669 = vsel %vm539, %v665, 0.0
        %670 = vadd.xlane.f32.xlu0 %v669
        %v671 = vpop.xlane.xlu0 %670
        %v672 = vrcp.pop %v668
        %v673 = vrcp.pop %v671
        %v674 = vmul.f32 %v663, %v672
        %v675 = vmul.f32 %v665, %v673
        %676 = vrot.lane.b32.xlu0 %v496, 48
        %v677 = vpop.permute.xlu0 %676
        %v680 = vsel %vm539, %v674, 0
        %v683 = vsel %vm539, %v675, 0
        %685 = vmatpush.msra.mxu0 0.0
        %686 = vmatpush.msra.mxu0 0.0
        %687 = vmatpush.msra.mxu0 0.0
        %688 = vmatpush.msra.mxu0 0.0
        %689 = vmatpush.msra.mxu0 0.0
        %690 = vmatpush.msra.mxu0 0.0
        %691 = vmatpush.msra.mxu0 0.0
        %692 = vmatpush.msra.mxu0 0.0
        %693 = vmatpush.msra.mxu0 0.0
        %694 = vmatpush.msra.mxu0 0.0
        %695 = vmatpush.msra.mxu0 0.0
        %696 = vmatpush.msra.mxu0 0.0
        %697 = vmatpush.msra.mxu0 0.0
        %698 = vmatpush.msra.mxu0 0.0
        %699 = vmatpush.msra.mxu0 0.0
        %700 = vmatpush.msra.mxu0 %v677
        %701 = vmatmul.f32.gmra.mxu0 %v680
        %v702 = vpop.f32.mrf.mxu0
        %v703 = vadd.f32 0.0, %v702
        %704 = vmatmul.f32.gmra.mxu0 %v683
        %v705 = vpop.f32.mrf.mxu0
        %v706 = vadd.f32 0.0, %v705
        %707 = vdwg.mxu0
        %v708 = vld [vmem:[#allocation6 + $0x10] sm:$0xff]
        %v709 = vld [vmem:[#allocation6 + $0x18] sm:$0xff]
        %v710 = vpack.c.bf16 %v706, %v703
        %v711 = vpack.c.bf16 %v709, %v708
        %v713 = vsel %vm504, %v710, 0
        %715 = vmatpush.bf16.msra.mxu0 0
        %716 = vmatpush.bf16.msra.mxu0 0
        %717 = vmatpush.bf16.msra.mxu0 0
        %718 = vmatpush.bf16.msra.mxu0 0
        %719 = vmatpush.bf16.msra.mxu0 0
        %720 = vmatpush.bf16.msra.mxu0 0
        %721 = vmatpush.bf16.msra.mxu0 0
        %722 = vmatpush.bf16.msra.mxu0 %v711
        %723 = vmatmul.bf16.gmra.mxu0 %v713
        %v724 = vpop.f32.mrf.mxu0
        %v725 = vadd.f32 0.0, %v724
        %v726 = vpop.f32.mrf.mxu0
        %v727 = vadd.f32 0.0, %v726
        %728 = vdwg.mxu0
        %v729 = vadd.f32 %v615, %v725
        %v730 = vadd.f32 %v616, %v727
        %731 = vrot.lane.b32.xlu0 %v462, 96
        %v732 = vpop.permute.xlu0 %731
        %733 = vrot.lane.b32.xlu0 %v464, 96
        %v734 = vpop.permute.xlu0 %733
        %735 = vrot.lane.b32.xlu0 %v496, 96
        %v736 = vpop.permute.xlu0 %735
        %v737 = vsel %vm504, %v732, 0
        %v739 = vsel %vm504, %v734, 0
        %v741 = vsel %vm504, %v736, 0
        %743 = vmatpush.xpose.msra.mxu0 0.0
        %744 = vmatpush.xpose.msra.mxu0 0.0
        %745 = vmatpush.xpose.msra.mxu0 0.0
        %746 = vmatpush.xpose.msra.mxu0 0.0
        %747 = vmatpush.xpose.msra.mxu0 0.0
        %748 = vmatpush.xpose.msra.mxu0 0.0
        %749 = vmatpush.xpose.msra.mxu0 0.0
        %750 = vmatpush.xpose.msra.mxu0 0.0
        %751 = vmatpush.xpose.msra.mxu0 0.0
        %752 = vmatpush.xpose.msra.mxu0 0.0
        %753 = vmatpush.xpose.msra.mxu0 0.0
        %754 = vmatpush.xpose.msra.mxu0 0.0
        %755 = vmatpush.xpose.msra.mxu0 0.0
        %756 = vmatpush.xpose.msra.mxu0 0.0
        %757 = vmatpush.xpose.msra.mxu0 0.0
        %758 = vmatpush.xpose.msra.mxu0 %v741
        %759 = vmatmul.f32.gmra.mxu0 %v737
        %v760 = vpop.f32.mrf.mxu0
        %v761 = vadd.f32 0.0, %v760
        %762 = vmatmul.f32.gmra.mxu0 %v739
        %v763 = vpop.f32.mrf.mxu0
        %v764 = vadd.f32 0.0, %v763
        %765 = vdwg.mxu0
        %v766 = vmul.f32 %v761, 0.25
        %v767 = vmul.f32 %v764, 0.25
        %v768 = vsel %vm539, %v766, -inf
        %769 = vmax.xlane.f32.xlu0 %v768
        %v770 = vpop.xlane.xlu0 %769
        %v771 = vsel %vm539, %v767, -inf
        %772 = vmax.xlane.f32.xlu0 %v771
        %v773 = vpop.xlane.xlu0 %772
        %v774 = vsub.f32 %v766, %v770
        %v775 = vsub.f32 %v767, %v773
        %v776 = vmul.f32 %v774, 1.442695
        %v777 = vpow.pop %v776
        %v778 = vmul.f32 %v775, 1.442695
        %v779 = vpow.pop %v778
        %v780 = vsel %vm539, %v777, 0.0
        %781 = vadd.xlane.f32.xlu0 %v780
        %v782 = vpop.xlane.xlu0 %781
        %v783 = vsel %vm539, %v779, 0.0
        %784 = vadd.xlane.f32.xlu0 %v783
        %v785 = vpop.xlane.xlu0 %784
        %v786 = vrcp.pop %v782
        %v787 = vrcp.pop %v785
        %v788 = vmul.f32 %v777, %v786
        %v789 = vmul.f32 %v779, %v787
        %790 = vrot.lane.b32.xlu0 %v496, 32
        %v791 = vpop.permute.xlu0 %790
        %v794 = vsel %vm539, %v788, 0
        %v797 = vsel %vm539, %v789, 0
        %799 = vmatpush.msra.mxu0 0.0
        %800 = vmatpush.msra.mxu0 0.0
        %801 = vmatpush.msra.mxu0 0.0
        %802 = vmatpush.msra.mxu0 0.0
        %803 = vmatpush.msra.mxu0 0.0
        %804 = vmatpush.msra.mxu0 0.0
        %805 = vmatpush.msra.mxu0 0.0
        %806 = vmatpush.msra.mxu0 0.0
        %807 = vmatpush.msra.mxu0 0.0
        %808 = vmatpush.msra.mxu0 0.0
        %809 = vmatpush.msra.mxu0 0.0
        %810 = vmatpush.msra.mxu0 0.0
        %811 = vmatpush.msra.mxu0 0.0
        %812 = vmatpush.msra.mxu0 0.0
        %813 = vmatpush.msra.mxu0 0.0
        %814 = vmatpush.msra.mxu0 %v791
        %815 = vmatmul.f32.gmra.mxu0 %v794
        %v816 = vpop.f32.mrf.mxu0
        %v817 = vadd.f32 0.0, %v816
        %818 = vmatmul.f32.gmra.mxu0 %v797
        %v819 = vpop.f32.mrf.mxu0
        %v820 = vadd.f32 0.0, %v819
        %821 = vdwg.mxu0
        %v822 = vld [vmem:[#allocation6 + $0x20] sm:$0xff]
        %v823 = vld [vmem:[#allocation6 + $0x28] sm:$0xff]
        %v824 = vpack.c.bf16 %v820, %v817
        %v825 = vpack.c.bf16 %v823, %v822
        %v827 = vsel %vm504, %v824, 0
        %829 = vmatpush.bf16.msra.mxu0 0
        %830 = vmatpush.bf16.msra.mxu0 0
        %831 = vmatpush.bf16.msra.mxu0 0
        %832 = vmatpush.bf16.msra.mxu0 0
        %833 = vmatpush.bf16.msra.mxu0 0
        %834 = vmatpush.bf16.msra.mxu0 0
        %835 = vmatpush.bf16.msra.mxu0 0
        %836 = vmatpush.bf16.msra.mxu0 %v825
        %837 = vmatmul.bf16.gmra.mxu0 %v827
        %v838 = vpop.f32.mrf.mxu0
        %v839 = vadd.f32 0.0, %v838
        %v840 = vpop.f32.mrf.mxu0
        %v841 = vadd.f32 0.0, %v840
        %842 = vdwg.mxu0
        %v843 = vadd.f32 %v729, %v839
        %v844 = vadd.f32 %v730, %v841
        %845 = vrot.lane.b32.xlu0 %v462, 80
        %v846 = vpop.permute.xlu0 %845
        %847 = vrot.lane.b32.xlu0 %v464, 80
        %v848 = vpop.permute.xlu0 %847
        %849 = vrot.lane.b32.xlu0 %v496, 80
        %v850 = vpop.permute.xlu0 %849
        %v851 = vsel %vm504, %v846, 0
        %v853 = vsel %vm504, %v848, 0
        %v855 = vsel %vm504, %v850, 0
        %857 = vmatpush.xpose.msra.mxu0 0.0
        %858 = vmatpush.xpose.msra.mxu0 0.0
        %859 = vmatpush.xpose.msra.mxu0 0.0
        %860 = vmatpush.xpose.msra.mxu0 0.0
        %861 = vmatpush.xpose.msra.mxu0 0.0
        %862 = vmatpush.xpose.msra.mxu0 0.0
        %863 = vmatpush.xpose.msra.mxu0 0.0
        %864 = vmatpush.xpose.msra.mxu0 0.0
        %865 = vmatpush.xpose.msra.mxu0 0.0
        %866 = vmatpush.xpose.msra.mxu0 0.0
        %867 = vmatpush.xpose.msra.mxu0 0.0
        %868 = vmatpush.xpose.msra.mxu0 0.0
        %869 = vmatpush.xpose.msra.mxu0 0.0
        %870 = vmatpush.xpose.msra.mxu0 0.0
        %871 = vmatpush.xpose.msra.mxu0 0.0
        %872 = vmatpush.xpose.msra.mxu0 %v855
        %873 = vmatmul.f32.gmra.mxu0 %v851
        %v874 = vpop.f32.mrf.mxu0
        %v875 = vadd.f32 0.0, %v874
        %876 = vmatmul.f32.gmra.mxu0 %v853
        %v877 = vpop.f32.mrf.mxu0
        %v878 = vadd.f32 0.0, %v877
        %879 = vdwg.mxu0
        %v880 = vmul.f32 %v875, 0.25
        %v881 = vmul.f32 %v878, 0.25
        %v882 = vsel %vm539, %v880, -inf
        %883 = vmax.xlane.f32.xlu0 %v882
        %v884 = vpop.xlane.xlu0 %883
        %v885 = vsel %vm539, %v881, -inf
        %886 = vmax.xlane.f32.xlu0 %v885
        %v887 = vpop.xlane.xlu0 %886
        %v888 = vsub.f32 %v880, %v884
        %v889 = vsub.f32 %v881, %v887
        %v890 = vmul.f32 %v888, 1.442695
        %v891 = vpow.pop %v890
        %v892 = vmul.f32 %v889, 1.442695
        %v893 = vpow.pop %v892
        %v894 = vsel %vm539, %v891, 0.0
        %895 = vadd.xlane.f32.xlu0 %v894
        %v896 = vpop.xlane.xlu0 %895
        %v897 = vsel %vm539, %v893, 0.0
        %898 = vadd.xlane.f32.xlu0 %v897
        %v899 = vpop.xlane.xlu0 %898
        %v900 = vrcp.pop %v896
        %v901 = vrcp.pop %v899
        %v902 = vmul.f32 %v891, %v900
        %v903 = vmul.f32 %v893, %v901
        %904 = vrot.lane.b32.xlu0 %v496, 16
        %v905 = vpop.permute.xlu0 %904
        %v908 = vsel %vm539, %v902, 0
        %v911 = vsel %vm539, %v903, 0
        %913 = vmatpush.msra.mxu0 0.0
        %914 = vmatpush.msra.mxu0 0.0
        %915 = vmatpush.msra.mxu0 0.0
        %916 = vmatpush.msra.mxu0 0.0
        %917 = vmatpush.msra.mxu0 0.0
        %918 = vmatpush.msra.mxu0 0.0
        %919 = vmatpush.msra.mxu0 0.0
        %920 = vmatpush.msra.mxu0 0.0
        %921 = vmatpush.msra.mxu0 0.0
        %922 = vmatpush.msra.mxu0 0.0
        %923 = vmatpush.msra.mxu0 0.0
        %924 = vmatpush.msra.mxu0 0.0
        %925 = vmatpush.msra.mxu0 0.0
        %926 = vmatpush.msra.mxu0 0.0
        %927 = vmatpush.msra.mxu0 0.0
        %928 = vmatpush.msra.mxu0 %v905
        %929 = vmatmul.f32.gmra.mxu0 %v908
        %v930 = vpop.f32.mrf.mxu0
        %v931 = vadd.f32 0.0, %v930
        %932 = vmatmul.f32.gmra.mxu0 %v911
        %v933 = vpop.f32.mrf.mxu0
        %v934 = vadd.f32 0.0, %v933
        %935 = vdwg.mxu0
        %v936 = vld [vmem:[#allocation6 + $0x30] sm:$0xff]
        %v937 = vld [vmem:[#allocation6 + $0x38] sm:$0xff]
        %v938 = vpack.c.bf16 %v934, %v931
        %v939 = vpack.c.bf16 %v937, %v936
        %v941 = vsel %vm504, %v938, 0
        %943 = vmatpush.bf16.msra.mxu0 0
        %944 = vmatpush.bf16.msra.mxu0 0
        %945 = vmatpush.bf16.msra.mxu0 0
        %946 = vmatpush.bf16.msra.mxu0 0
        %947 = vmatpush.bf16.msra.mxu0 0
        %948 = vmatpush.bf16.msra.mxu0 0
        %949 = vmatpush.bf16.msra.mxu0 0
        %950 = vmatpush.bf16.msra.mxu0 %v939
        %951 = vmatmul.bf16.gmra.mxu0 %v941
        %v952 = vpop.f32.mrf.mxu0
        %v953 = vadd.f32 0.0, %v952
        %v954 = vpop.f32.mrf.mxu0
        %v955 = vadd.f32 0.0, %v954
        %956 = vdwg.mxu0
        %v957 = vadd.f32 %v843, %v953
        %v958 = vadd.f32 %v844, %v955
        %v959 = vadd.f32 %v957, %v428
        %v960 = vadd.f32 %v958, %v429
        %v961 = vld [vmem:[%s8] sm:$0x1]
        %v962 = vld [vmem:[%s9] sm:$0x1]
        %v963 = vsel %vm448, %v959, 0.0
        %964 = vadd.xlane.f32.xlu0 %v963
        %v965 = vpop.xlane.xlu0 %964
        %v966 = vsel %vm448, %v960, 0.0
        %967 = vadd.xlane.f32.xlu0 %v966
        %v968 = vpop.xlane.xlu0 %967
        %v969 = vrcp.pop 64.0
        %v970 = vmul.f32 64.0, %v969
        %v971 = vsub.f32 1.0, %v970
        %v972 = vmul.f32 %v969, %v971
        %v973 = vadd.f32 %v969, %v972
        %vm974 = vweird.f32 %v969
        %v975 = vsel %vm974, %v969, %v973
        %v976 = vmul.f32 %v965, %v975
        %v977 = vmul.f32 %v968, %v975
        %v978 = vsub.f32 %v959, %v976
        %v979 = vsub.f32 %v960, %v977
        %v980 = vmul.f32 %v978, %v978
        %v981 = vmul.f32 %v979, %v979
        %v982 = vsel %vm448, %v980, 0.0
        %983 = vadd.xlane.f32.xlu0 %v982
        %v984 = vpop.xlane.xlu0 %983
        %v985 = vsel %vm448, %v981, 0.0
        %986 = vadd.xlane.f32.xlu0 %v985
        %v987 = vpop.xlane.xlu0 %986
        %v988 = vmul.f32 %v984, %v975
        %v989 = vmul.f32 %v987, %v975
        %v990 = vadd.f32 %v988, 1e-05
        %v991 = vadd.f32 %v989, 1e-05
        %v992 = vrsqrt.pop %v990
        %v993 = vmul.f32 %v992, %v990
        %v994 = vmul.f32 %v993, %v992
        %v995 = vmul.f32 0.5, %v994
        %v996 = vsub.f32 1.5, %v995
        %v997 = vmul.f32 %v992, %v996
        %vm998 = vweird.f32 %v990
        %vm999 = vweird.f32 %v992
        %vm1000 = vmor %vm998, %vm999
        %v1001 = vsel %vm1000, %v992, %v997
        %v1002 = vrsqrt.pop %v991
        %v1003 = vmul.f32 %v1002, %v991
        %v1004 = vmul.f32 %v1003, %v1002
        %v1005 = vmul.f32 0.5, %v1004
        %v1006 = vsub.f32 1.5, %v1005
        %v1007 = vmul.f32 %v1002, %v1006
        %vm1008 = vweird.f32 %v991
        %vm1009 = vweird.f32 %v1002
        %vm1010 = vmor %vm1008, %vm1009
        %v1011 = vsel %vm1010, %v1002, %v1007
        %v1012 = vmul.f32 %v978, %v1001
        %v1013 = vmul.f32 %v979, %v1011
        %v1015 = vperm.slane %v961, 0
        %v1017 = vmul.f32 %v1012, %v1015
        %v1018 = vmul.f32 %v1013, %v1015
        %v1020 = vperm.slane %v962, 0
        %v1022 = vadd.f32 %v1017, %v1020
        %v1023 = vadd.f32 %v1018, %v1020
        %1024 = vst.msk [vmem:[%s426] sm:$0xff] %vm448, %v1022
        %1025 = vst.msk [vmem:[%s426 + $0x8] sm:$0xff] %vm448, %v1023
        %p1026 = scmp.lt.s32.totalorder %s23, 1
        %s1027 = scalar_select %p1026, %s23, 1
        %s1028 = smul.addr %s1027, 2
        %s1029 = smul.addr %s1028, 8
        %s1030 = scalar_lea.vmem %s10, %s1029
        // Predicated region
        $region73: #{encoder_forward.12} parent=59 // pred_check
          %p1031 = pneg %p261
        $region74: #{encoder_forward.12} parent=59 // pred_check_branch
          %1033 = sbr.rel (%p1031) target = $region76
        $region75: #{encoder_forward.12} parent=59 // pred_region
          _
        $region76: #{encoder_forward.12} parent=59 // pred_fallthru
          _
      $region60: #{encoder_forward.12} parent=5 // pred_fallthru
        _
      %p1034 = scmp.le.s32.totalorder 2, %s18
      // Predicated region
      $region77: #{encoder_forward.12} parent=5 // pred_check
        %p1035 = pneg %p1034
      $region78: #{encoder_forward.12} parent=5 // pred_check_branch
        %1037 = sbr.rel (%p1035) target = $region80
      $region79: #{encoder_forward.12} parent=5 // pred_region
        %s1038 = ssub.s32 %s18, 2
        // Predicated region
        $region81: #{encoder_forward.12} parent=79 // pred_check
          %p1039 = pneg %p267
        $region82: #{encoder_forward.12} parent=79 // pred_check_branch
          %1041 = sbr.rel (%p1039) target = $region84
        $region83: #{encoder_forward.12} parent=79 // pred_region
          %p1042 = scmp.lt.s32.totalorder %s24, 1
          %s1043 = scalar_select %p1042, %s24, 1
          %s1044 = smul.addr %s1043, 2
          %s1045 = smul.addr %s1044, 8
          %s1046 = scalar_lea.vmem %s10, %s1045
        $region84: #{encoder_forward.12} parent=79 // pred_fallthru
          _
      $region80: #{encoder_forward.12} parent=5 // pred_fallthru
        _
    $region6: #{encoder_forward.12} parent=1 // loop_footer
      %s22 = sadd.s32 1, %s18
    $region7: #{encoder_forward.12} parent=1 // loop_footer_branch
      %17 = sbr.rel target = $region3
    $region8: #{encoder_forward.12} parent=1 // loop_exit
      _
    %1047 = vsyncpa [#allocation3], 1
    %s1048 = scalar_lea.sflag [#allocation3], 1
    %1049 = vsyncpa %s1048, 1
    %1050 = vsyncpa [#allocation5], 1

// kernel: encoder_forward.15
$region0: #{encoder_forward.15}
  #allocation0 [shape = 'u32[]', space=smem, size = 0x4, offset = 0x4, fixed_abs, tag = 'smem constant byte address 0x4 - core index']
  #allocation1 [shape = 'u32[72,128]{1,0:T(1,128)}', space=vmem, size = 0x9000, scoped, tag = 'internal scratch']
  %s0 = inlined_call_operand.vmem [shape: f32[2,16,64], index: 0, kind: input, shape index: {}, may-alias: {0,1}]
  %s1 = inlined_call_operand.vmem [shape: f32[2,16,64], index: 1, kind: input, shape index: {}, may-alias: {0,1}]
  %s2 = inlined_call_operand.vmem [shape: f32[2,64,16], index: 2, kind: input, shape index: {}]
  %s3 = inlined_call_operand.vmem [shape: f32[64,64], index: 3, kind: input, shape index: {}]
  %s4 = inlined_call_operand.vmem [shape: f32[1,64], index: 4, kind: input, shape index: {}]
  %s5 = inlined_call_operand.vmem [shape: f32[64,64], index: 5, kind: input, shape index: {}]
  %s6 = inlined_call_operand.vmem [shape: f32[1,64], index: 6, kind: input, shape index: {}]
  %s7 = inlined_call_operand.vmem [shape: f32[1,64], index: 7, kind: input, shape index: {}]
  %s8 = inlined_call_operand.vmem [shape: f32[1,64], index: 8, kind: input, shape index: {}]
  %s9 = inlined_call_operand.vmem [shape: f32[2,16,64], index: 9, kind: output, shape index: {}]
  %s10 = sld [smem:[#allocation0]]
  $region69: #{encoder_forward.15} parent=0
    _
  %s12 = ssub.s32 1, %s10
  %s13 = scalar_select 0, %s12, %s10
  loop: start=0, step=1, limit=4
  $region2: #{encoder_forward.15} parent=0 // loop_pre_header
    _
  $region3: #{encoder_forward.15} parent=0 // loop_header
    %s15 = sphi 0, %s19
    %p16 = scmp.ge.s32.totalorder %s15, 4
    %s25 = sphi 0, %s27
    %s28 = sphi 0, %s25
    %s29 = sphi 0, %s28
    %s45 = sphi 0, %s29
    %s51 = sphi 0, %s53
    %s54 = sphi 0, %s51
    %s55 = sphi 0, %s54
    %s71 = sphi 0, %s55
    %s77 = sphi 0, %s79
    %s80 = sphi 0, %s77
    %s81 = sphi 0, %s80
    %s97 = sphi 0, %s81
    %s101 = sphi 0, %s101
    %s103 = sphi 0, %s101
    %s104 = sphi 0, %s103
    %s118 = sphi 0, %s104
    %s122 = sphi 0, %s122
    %s124 = sphi 0, %s122
    %s125 = sphi 0, %s124
    %s139 = sphi 0, %s125
    %s143 = sphi 0, %s143
    %s145 = sphi 0, %s143
    %s146 = sphi 0, %s145
    %s160 = sphi 0, %s146
    %s164 = sphi 0, %s164
    %s166 = sphi 0, %s164
    %s167 = sphi 0, %s166
    %s181 = sphi 0, %s167
    %s185 = sphi 0, %s185
    %s187 = sphi 0, %s185
    %s188 = sphi 0, %s187
    %s202 = sphi 0, %s188
    %s206 = sphi 0, %s206
    %s208 = sphi 0, %s206
    %s209 = sphi 0, %s208
    %s223 = sphi 0, %s209
    %s229 = sphi 0, %s231
    %s232 = sphi 0, %s229
    %s233 = sphi 0, %s232
    %s249 = sphi 0, %s233
  $region4: #{encoder_forward.15} parent=0 // loop_header_branch
    %18 = sbr.rel (%p16) target = $region8
  $region5: #{encoder_forward.15} parent=0 // loop_body
    %s20 = ssub.s32 %s15, 1
    %s21 = ssub.s32 %s15, 2
    %s22 = sadd.s32 %s15, 1
    %s23 = ssub.s32 %s15, %s22
    %p24 = scmp.eq.s32.totalorder %s23, 0
    %s26 = sadd.s32 %s25, 1
    %s27 = scalar_select %p24, %s25, %s26
    %p30 = pneg %p24
    %p31 = scmp.eq.s32.totalorder %s15, 1
    %p32 = por %p30, %p31
    %p33 = scmp.ne.s32.totalorder %s25, %s28
    %p34 = scmp.eq.s32.totalorder %s15, 0
    %p35 = por %p33, %p34
    %p36 = scmp.ne.s32.totalorder %s25, %s28
    %p37 = scmp.eq.s32.totalorder %s20, 1
    %p38 = por %p36, %p37
    %p39 = scmp.ne.s32.totalorder %s28, %s29
    %p40 = scmp.eq.s32.totalorder %s20, 0
    %p41 = por %p39, %p40
    %p42 = scmp.ne.s32.totalorder %s28, %s29
    %p43 = scmp.eq.s32.totalorder %s21, 1
    %p44 = por %p42, %p43
    %p46 = scmp.ne.s32.totalorder %s29, %s45
    %p47 = scmp.eq.s32.totalorder %s21, 0
    %p48 = por %p46, %p47
    %s49 = ssub.s32 %s15, %s22
    %p50 = scmp.eq.s32.totalorder %s49, 0
    %s52 = sadd.s32 %s51, 1
    %s53 = scalar_select %p50, %s51, %s52
    %p56 = pneg %p50
    %p57 = scmp.eq.s32.totalorder %s15, 1
    %p58 = por %p56, %p57
    %p59 = scmp.ne.s32.totalorder %s51, %s54
    %p60 = scmp.eq.s32.totalorder %s15, 0
    %p61 = por %p59, %p60
    %p62 = scmp.ne.s32.totalorder %s51, %s54
    %p63 = scmp.eq.s32.totalorder %s20, 1
    %p64 = por %p62, %p63
    %p65 = scmp.ne.s32.totalorder %s54, %s55
    %p66 = scmp.eq.s32.totalorder %s20, 0
    %p67 = por %p65, %p66
    %p68 = scmp.ne.s32.totalorder %s54, %s55
    %p69 = scmp.eq.s32.totalorder %s21, 1
    %p70 = por %p68, %p69
    %p72 = scmp.ne.s32.totalorder %s55, %s71
    %p73 = scmp.eq.s32.totalorder %s21, 0
    %p74 = por %p72, %p73
    %s75 = ssub.s32 %s15, %s22
    %p76 = scmp.eq.s32.totalorder %s75, 0
    %s78 = sadd.s32 %s77, 1
    %s79 = scalar_select %p76, %s77, %s78
    %p82 = pneg %p76
    %p83 = scmp.eq.s32.totalorder %s15, 1
    %p84 = por %p82, %p83
    %p85 = scmp.ne.s32.totalorder %s77, %s80
    %p86 = scmp.eq.s32.totalorder %s15, 0
    %p87 = por %p85, %p86
    %p88 = scmp.ne.s32.totalorder %s77, %s80
    %p89 = scmp.eq.s32.totalorder %s20, 1
    %p90 = por %p88, %p89
    %p91 = scmp.ne.s32.totalorder %s80, %s81
    %p92 = scmp.eq.s32.totalorder %s20, 0
    %p93 = por %p91, %p92
    %p94 = scmp.ne.s32.totalorder %s80, %s81
    %p95 = scmp.eq.s32.totalorder %s21, 1
    %p96 = por %p94, %p95
    %p98 = scmp.ne.s32.totalorder %s81, %s97
    %p99 = scmp.eq.s32.totalorder %s21, 0
    %p100 = por %p98, %p99
    %s102 = sadd.s32 %s101, 1
    %p105 = scmp.eq.s32.totalorder %s15, 1
    %p106 = scmp.ne.s32.totalorder %s101, %s103
    %p107 = scmp.eq.s32.totalorder %s15, 0
    %p108 = por %p106, %p107
    %p109 = scmp.ne.s32.totalorder %s101, %s103
    %p110 = scmp.eq.s32.totalorder %s20, 1
    %p111 = por %p109, %p110
    %p112 = scmp.ne.s32.totalorder %s103, %s104
    %p113 = scmp.eq.s32.totalorder %s20, 0
    %p114 = por %p112, %p113
    %p115 = scmp.ne.s32.totalorder %s103, %s104
    %p116 = scmp.eq.s32.totalorder %s21, 1
    %p117 = por %p115, %p116
    %p119 = scmp.ne.s32.totalorder %s104, %s118
    %p120 = scmp.eq.s32.totalorder %s21, 0
    %p121 = por %p119, %p120
    %s123 = sadd.s32 %s122, 1
    %p126 = scmp.eq.s32.totalorder %s15, 1
    %p127 = scmp.ne.s32.totalorder %s122, %s124
    %p128 = scmp.eq.s32.totalorder %s15, 0
    %p129 = por %p127, %p128
    %p130 = scmp.ne.s32.totalorder %s122, %s124
    %p131 = scmp.eq.s32.totalorder %s20, 1
    %p132 = por %p130, %p131
    %p133 = scmp.ne.s32.totalorder %s124, %s125
    %p134 = scmp.eq.s32.totalorder %s20, 0
    %p135 = por %p133, %p134
    %p136 = scmp.ne.s32.totalorder %s124, %s125
    %p137 = scmp.eq.s32.totalorder %s21, 1
    %p138 = por %p136, %p137
    %p140 = scmp.ne.s32.totalorder %s125, %s139
    %p141 = scmp.eq.s32.totalorder %s21, 0
    %p142 = por %p140, %p141
    %s144 = sadd.s32 %s143, 1
    %p147 = scmp.eq.s32.totalorder %s15, 1
    %p148 = scmp.ne.s32.totalorder %s143, %s145
    %p149 = scmp.eq.s32.totalorder %s15, 0
    %p150 = por %p148, %p149
    %p151 = scmp.ne.s32.totalorder %s143, %s145
    %p152 = scmp.eq.s32.totalorder %s20, 1
    %p153 = por %p151, %p152
    %p154 = scmp.ne.s32.totalorder %s145, %s146
    %p155 = scmp.eq.s32.totalorder %s20, 0
    %p156 = por %p154, %p155
    %p157 = scmp.ne.s32.totalorder %s145, %s146
    %p158 = scmp.eq.s32.totalorder %s21, 1
    %p159 = por %p157, %p158
    %p161 = scmp.ne.s32.totalorder %s146, %s160
    %p162 = scmp.eq.s32.totalorder %s21, 0
    %p163 = por %p161, %p162
    %s165 = sadd.s32 %s164, 1
    %p168 = scmp.eq.s32.totalorder %s15, 1
    %p169 = scmp.ne.s32.totalorder %s164, %s166
    %p170 = scmp.eq.s32.totalorder %s15, 0
    %p171 = por %p169, %p170
    %p172 = scmp.ne.s32.totalorder %s164, %s166
    %p173 = scmp.eq.s32.totalorder %s20, 1
    %p174 = por %p172, %p173
    %p175 = scmp.ne.s32.totalorder %s166, %s167
    %p176 = scmp.eq.s32.totalorder %s20, 0
    %p177 = por %p175, %p176
    %p178 = scmp.ne.s32.totalorder %s166, %s167
    %p179 = scmp.eq.s32.totalorder %s21, 1
    %p180 = por %p178, %p179
    %p182 = scmp.ne.s32.totalorder %s167, %s181
    %p183 = scmp.eq.s32.totalorder %s21, 0
    %p184 = por %p182, %p183
    %s186 = sadd.s32 %s185, 1
    %p189 = scmp.eq.s32.totalorder %s15, 1
    %p190 = scmp.ne.s32.totalorder %s185, %s187
    %p191 = scmp.eq.s32.totalorder %s15, 0
    %p192 = por %p190, %p191
    %p193 = scmp.ne.s32.totalorder %s185, %s187
    %p194 = scmp.eq.s32.totalorder %s20, 1
    %p195 = por %p193, %p194
    %p196 = scmp.ne.s32.totalorder %s187, %s188
    %p197 = scmp.eq.s32.totalorder %s20, 0
    %p198 = por %p196, %p197
    %p199 = scmp.ne.s32.totalorder %s187, %s188
    %p200 = scmp.eq.s32.totalorder %s21, 1
    %p201 = por %p199, %p200
    %p203 = scmp.ne.s32.totalorder %s188, %s202
    %p204 = scmp.eq.s32.totalorder %s21, 0
    %p205 = por %p203, %p204
    %s207 = sadd.s32 %s206, 1
    %p210 = scmp.eq.s32.totalorder %s15, 1
    %p211 = scmp.ne.s32.totalorder %s206, %s208
    %p212 = scmp.eq.s32.totalorder %s15, 0
    %p213 = por %p211, %p212
    %p214 = scmp.ne.s32.totalorder %s206, %s208
    %p215 = scmp.eq.s32.totalorder %s20, 1
    %p216 = por %p214, %p215
    %p217 = scmp.ne.s32.totalorder %s208, %s209
    %p218 = scmp.eq.s32.totalorder %s20, 0
    %p219 = por %p217, %p218
    %p220 = scmp.ne.s32.totalorder %s208, %s209
    %p221 = scmp.eq.s32.totalorder %s21, 1
    %p222 = por %p220, %p221
    %p224 = scmp.ne.s32.totalorder %s209, %s223
    %p225 = scmp.eq.s32.totalorder %s21, 0
    %p226 = por %p224, %p225
    %s227 = ssub.s32 %s15, %s22
    %p228 = scmp.eq.s32.totalorder %s227, 0
    %s230 = sadd.s32 %s229, 1
    %s231 = scalar_select %p228, %s229, %s230
    %p234 = pneg %p228
    %p235 = scmp.eq.s32.totalorder %s15, 1
    %p236 = por %p234, %p235
    %p237 = scmp.ne.s32.totalorder %s229, %s232
    %p238 = scmp.eq.s32.totalorder %s15, 0
    %p239 = por %p237, %p238
    %p240 = scmp.ne.s32.totalorder %s229, %s232
    %p241 = scmp.eq.s32.totalorder %s20, 1
    %p242 = por %p240, %p241
    %p243 = scmp.ne.s32.totalorder %s232, %s233
    %p244 = scmp.eq.s32.totalorder %s20, 0
    %p245 = por %p243, %p244
    %p246 = scmp.ne.s32.totalorder %s232, %s233
    %p247 = scmp.eq.s32.totalorder %s21, 1
    %p248 = por %p246, %p247
    %p250 = scmp.ne.s32.totalorder %s233, %s249
    %p251 = scmp.eq.s32.totalorder %s21, 0
    %p252 = por %p250, %p251
    %p253 = scmp.le.s32.totalorder 1, %s15
    %p254 = scmp.lt.s32.totalorder %s15, 3
    %p255 = pnand %p253, %p254
    %p256 = pneg %p255
    // Predicated region
    $region9: #{encoder_forward.15} parent=5 // pred_check
      _
    $region10: #{encoder_forward.15} parent=5 // pred_check_branch
      %258 = sbr.rel (%p255) target = $region12
    $region11: #{encoder_forward.15} parent=5 // pred_region
      %s259 = ssub.s32 %s15, 1
      // Predicated region
      $region13: #{encoder_forward.15} parent=11 // pred_check
        %p260 = pneg %p114
      $region14: #{encoder_forward.15} parent=11 // pred_check_branch
        %262 = sbr.rel (%p260) target = $region16
      $region15: #{encoder_forward.15} parent=11 // pred_region
        _
      $region16: #{encoder_forward.15} parent=11 // pred_fallthru
        _
      // Predicated region
      $region17: #{encoder_forward.15} parent=11 // pred_check
        %p263 = pneg %p135
      $region18: #{encoder_forward.15} parent=11 // pred_check_branch
        %265 = sbr.rel (%p263) target = $region20
      $region19: #{encoder_forward.15} parent=11 // pred_region
        _
      $region20: #{encoder_forward.15} parent=11 // pred_fallthru
        _
      // Predicated region
      $region21: #{encoder_forward.15} parent=11 // pred_check
        %p266 = pneg %p156
      $region22: #{encoder_forward.15} parent=11 // pred_check_branch
        %268 = sbr.rel (%p266) target = $region24
      $region23: #{encoder_forward.15} parent=11 // pred_region
        _
      $region24: #{encoder_forward.15} parent=11 // pred_fallthru
        _
      // Predicated region
      $region25: #{encoder_forward.15} parent=11 // pred_check
        %p269 = pneg %p177
      $region26: #{encoder_forward.15} parent=11 // pred_check_branch
        %271 = sbr.rel (%p269) target = $region28
      $region27: #{encoder_forward.15} parent=11 // pred_region
        _
      $region28: #{encoder_forward.15} parent=11 // pred_fallthru
        _
      // Predicated region
      $region29: #{encoder_forward.15} parent=11 // pred_check
        %p272 = pneg %p198
      $region30: #{encoder_forward.15} parent=11 // pred_check_branch
        %274 = sbr.rel (%p272) target = $region32
      $region31: #{encoder_forward.15} parent=11 // pred_region
        _
      $region32: #{encoder_forward.15} parent=11 // pred_fallthru
        _
      // Predicated region
      $region33: #{encoder_forward.15} parent=11 // pred_check
        %p275 = pneg %p219
      $region34: #{encoder_forward.15} parent=11 // pred_check_branch
        %277 = sbr.rel (%p275) target = $region36
      $region35: #{encoder_forward.15} parent=11 // pred_region
        _
      $region36: #{encoder_forward.15} parent=11 // pred_fallthru
        _
    $region12: #{encoder_forward.15} parent=5 // pred_fallthru
      _
    %p278 = scmp.lt.s32.totalorder %s15, 2
    // Predicated region
    $region37: #{encoder_forward.15} parent=5 // pred_check
      %p279 = pneg %p278
    $region38: #{encoder_forward.15} parent=5 // pred_check_branch
      %281 = sbr.rel (%p279) target = $region40
    $region39: #{encoder_forward.15} parent=5 // pred_region
      // Predicated region
      $region41: #{encoder_forward.15} parent=39 // pred_check
        %p282 = pneg %p35
      $region42: #{encoder_forward.15} parent=39 // pred_check_branch
        %284 = sbr.rel (%p282) target = $region44
      $region43: #{encoder_forward.15} parent=39 // pred_region
        %p285 = scmp.lt.s32.totalorder %s15, 1
        %s286 = scalar_select %p285, %s15, 1
        %s287 = smul.addr %s286, 2
        %s288 = smul.addr %s287, 8
        %s289 = scalar_lea.vmem %s0, %s288
      $region44: #{encoder_forward.15} parent=39 // pred_fallthru
        _
      // Predicated region
      $region45: #{encoder_forward.15} parent=39 // pred_check
        %p290 = pneg %p61
      $region46: #{encoder_forward.15} parent=39 // pred_check_branch
        %292 = sbr.rel (%p290) target = $region48
      $region47: #{encoder_forward.15} parent=39 // pred_region
        %p293 = scmp.lt.s32.totalorder %s15, 1
        %s294 = scalar_select %p293, %s15, 1
        %s295 = smul.addr %s294, 2
        %s296 = smul.addr %s295, 8
        %s297 = scalar_lea.vmem %s1, %s296
      $region48: #{encoder_forward.15} parent=39 // pred_fallthru
        _
      // Predicated region
      $region49: #{encoder_forward.15} parent=39 // pred_check
        %p298 = pneg %p87
      $region50: #{encoder_forward.15} parent=39 // pred_check_branch
        %300 = sbr.rel (%p298) target = $region52
      $region51: #{encoder_forward.15} parent=39 // pred_region
        %p301 = scmp.lt.s32.totalorder %s15, 1
        %s302 = scalar_select %p301, %s15, 1
        %s303 = smul.addr %s302, 8
        %s304 = smul.addr %s303, 8
        %s305 = scalar_lea.vmem %s2, %s304
      $region52: #{encoder_forward.15} parent=39 // pred_fallthru
        _
    $region40: #{encoder_forward.15} parent=5 // pred_fallthru
      _
    %p306 = scmp.le.s32.totalorder 1, %s15
    %p307 = scmp.lt.s32.totalorder %s15, 3
    %p308 = pnand %p306, %p307
    %p309 = pneg %p308
    // Predicated region
    $region53: #{encoder_forward.15} parent=5 // pred_check
      _
    $region54: #{encoder_forward.15} parent=5 // pred_check_branch
      %311 = sbr.rel (%p308) target = $region56
    $region55: #{encoder_forward.15} parent=5 // pred_region
      %s312 = ssub.s32 %s15, 1
      %p313 = scmp.lt.s32.totalorder %s20, 1
      %s314 = scalar_select %p313, %s20, 1
      %s315 = smul.addr %s314, 2
      %s316 = smul.addr %s315, 8
      %s317 = scalar_lea.vmem %s0, %s316
      %p318 = pneg %p41
      %p319 = pneg %p38
      %p320 = scmp.lt.s32.totalorder %s20, 1
      %s321 = scalar_select %p320, %s20, 1
      %s322 = smul.addr %s321, 2
      %s323 = smul.addr %s322, 8
      %s324 = scalar_lea.vmem %s1, %s323
      %p325 = pneg %p67
      %p326 = pneg %p64
      %p327 = scmp.lt.s32.totalorder %s20, 1
      %s328 = scalar_select %p327, %s20, 1
      %s329 = smul.addr %s328, 8
      %s330 = smul.addr %s329, 8
      %s331 = scalar_lea.vmem %s2, %s330
      %p332 = pneg %p93
      %p333 = pneg %p90
      %p334 = pneg %p114
      %p335 = pneg %p111
      %p336 = pneg %p135
      %p337 = pneg %p132
      %p338 = pneg %p156
      %p339 = pneg %p153
      %p340 = pneg %p177
      %p341 = pneg %p174
      %p342 = pneg %p198
      %p343 = pneg %p195
      %p344 = pneg %p219
      %p345 = pneg %p216
      %p346 = pneg %p245
      %p347 = pneg %p242
      %p348 = scmp.lt.s32.totalorder %s20, 1
      %s349 = scalar_select %p348, %s20, 1
      %s350 = smul.addr %s349, 2
      %s351 = smul.addr %s350, 8
      %s352 = scalar_lea.vmem %s9, %s351
      %p353 = scmp.lt.s32.totalorder %s20, 1
      %s354 = scalar_select %p353, %s20, 1
      %s355 = smul.addr %s354, 2
      %s356 = smul.addr %s355, 8
      %s357 = scalar_lea.vmem %s0, %s356
      %p358 = scmp.lt.s32.totalorder %s20, 1
      %s359 = scalar_select %p358, %s20, 1
      %s360 = smul.addr %s359, 2
      %s361 = smul.addr %s360, 8
      %s362 = scalar_lea.vmem %s1, %s361
      %p363 = scmp.lt.s32.totalorder %s20, 1
      %s364 = scalar_select %p363, %s20, 1
      %s365 = smul.addr %s364, 8
      %s366 = smul.addr %s365, 8
      %s367 = scalar_lea.vmem %s2, %s366
      %p368 = scmp.lt.s32.totalorder %s20, 1
      %s369 = scalar_select %p368, %s20, 1
      %s370 = smul.addr %s369, 2
      %s371 = smul.addr %s370, 8
      %s372 = scalar_lea.vmem %s9, %s371
      %v374 = vld [vmem:[%s357] sm:$0xff]
      %v375 = vld [vmem:[%s357 + $0x8] sm:$0xff]
      %v376 = vld [vmem:[%s362] sm:$0xff]
      %v377 = vld [vmem:[%s362 + $0x8] sm:$0xff]
      %v378 = vld [vmem:[%s367] sm:$0xff]
      %v379 = vld [vmem:[%s367 + $0x8] sm:$0xff]
      %v380 = vld [vmem:[%s367 + $0x10] sm:$0xff]
      %v381 = vld [vmem:[%s367 + $0x18] sm:$0xff]
      %v382 = vld [vmem:[%s367 + $0x20] sm:$0xff]
      %v383 = vld [vmem:[%s367 + $0x28] sm:$0xff]
      %v384 = vld [vmem:[%s367 + $0x30] sm:$0xff]
      %v385 = vld [vmem:[%s367 + $0x38] sm:$0xff]
      %v386 = vld [vmem:[%s3] sm:$0xff]
      %v387 = vld [vmem:[%s3 + $0x8] sm:$0xff]
      %v388 = vld [vmem:[%s3 + $0x10] sm:$0xff]
      %v389 = vld [vmem:[%s3 + $0x18] sm:$0xff]
      %v390 = vld [vmem:[%s3 + $0x20] sm:$0xff]
      %v391 = vld [vmem:[%s3 + $0x28] sm:$0xff]
      %v392 = vld [vmem:[%s3 + $0x30] sm:$0xff]
      %v393 = vld [vmem:[%s3 + $0x38] sm:$0xff]
      %v394 = vpack.c.bf16 %v377, %v376
      %v395 = vpack.c.bf16 %v387, %v386
      %v396 = vpack.c.bf16 %v389, %v388
      %v397 = vpack.c.bf16 %v391, %v390
      %v398 = vpack.c.bf16 %v393, %v392
      %v399 = vld [vmem:[%s4] sm:$0x1]
      %v401 = vperm.slane %v399, 0
      %vm403 = vcmask 523264
      %v405 = vsel %vm403, %v394, 0
      %407 = vmatpush.bf16.msra.mxu0 0
      %408 = vmatpush.bf16.msra.mxu0 0
      %409 = vmatpush.bf16.msra.mxu0 0
      %410 = vmatpush.bf16.msra.mxu0 0
      %411 = vmatpush.bf16.msra.mxu0 %v398
      %412 = vmatpush.bf16.msra.mxu0 %v397
      %413 = vmatpush.bf16.msra.mxu0 %v396
      %414 = vmatpush.bf16.msra.mxu0 %v395
      %415 = vmatmul.bf16.gmra.mxu0 %v405
      %v416 = vpop.f32.mrf.mxu0
      %v417 = vadd.f32 %v401, %v416
      %v418 = vpop.f32.mrf.mxu0
      %v419 = vadd.f32 %v401, %v418
      %420 = vdwg.mxu0
      %v421 = vld [vmem:[%s6] sm:$0x1]
      %v423 = vperm.slane %v421, 0
      %v425 = vadd.f32 %v423, 0.0
      %vm426 = vcmask 130048
      %v428 = vsel %vm426, %v378, 0
      %v431 = vsel %vm426, %v379, 0
      %433 = vmatpush.msra.mxu0 0.0
      %434 = vmatpush.msra.mxu0 0.0
      %435 = vmatpush.msra.mxu0 0.0
      %436 = vmatpush.msra.mxu0 0.0
      %437 = vmatpush.msra.mxu0 0.0
      %438 = vmatpush.msra.mxu0 0.0
      %439 = vmatpush.msra.mxu0 0.0
      %440 = vmatpush.msra.mxu0 0.0
      %441 = vmatpush.msra.mxu0 0.0
      %442 = vmatpush.msra.mxu0 0.0
      %443 = vmatpush.msra.mxu0 0.0
      %444 = vmatpush.msra.mxu0 0.0
      %445 = vmatpush.msra.mxu0 0.0
      %446 = vmatpush.msra.mxu0 0.0
      %447 = vmatpush.msra.mxu0 %v419
      %448 = vmatpush.msra.mxu0 %v417
      %449 = vmatmul.f32.gmra.mxu0 %v428
      %v450 = vpop.f32.mrf.mxu0
      %v451 = vadd.f32 0.0, %v450
      %452 = vmatmul.f32.gmra.mxu0 %v431
      %v453 = vpop.f32.mrf.mxu0
      %v454 = vadd.f32 0.0, %v453
      %455 = vdwg.mxu0
      %v456 = vld [vmem:[%s5] sm:$0xff]
      %v457 = vld [vmem:[%s5 + $0x8] sm:$0xff]
      %v458 = vpack.c.bf16 %v454, %v451
      %v459 = vpack.c.bf16 %v457, %v456
      %v461 = vsel %vm426, %v458, 0
      %463 = vmatpush.bf16.msra.mxu0 0
      %464 = vmatpush.bf16.msra.mxu0 0
      %465 = vmatpush.bf16.msra.mxu0 0
      %466 = vmatpush.bf16.msra.mxu0 0
      %467 = vmatpush.bf16.msra.mxu0 0
      %468 = vmatpush.bf16.msra.mxu0 0
      %469 = vmatpush.bf16.msra.mxu0 0
      %470 = vmatpush.bf16.msra.mxu0 %v459
      %471 = vmatmul.bf16.gmra.mxu0 %v461
      %v472 = vpop.f32.mrf.mxu0
      %v473 = vadd.f32 0.0, %v472
      %v474 = vpop.f32.mrf.mxu0
      %v475 = vadd.f32 0.0, %v474
      %476 = vdwg.mxu0
      %v477 = vadd.f32 %v425, %v473
      %v478 = vadd.f32 %v425, %v475
      %481 = vrot.lane.b32.xlu0 %v417, 112
      %v482 = vpop.permute.xlu0 %481
      %483 = vrot.lane.b32.xlu0 %v419, 112
      %v484 = vpop.permute.xlu0 %483
      %v488 = vsel %vm426, %v380, 0
      %v491 = vsel %vm426, %v381, 0
      %493 = vmatpush.msra.mxu0 0.0
      %494 = vmatpush.msra.mxu0 0.0
      %495 = vmatpush.msra.mxu0 0.0
      %496 = vmatpush.msra.mxu0 0.0
      %497 = vmatpush.msra.mxu0 0.0
      %498 = vmatpush.msra.mxu0 0.0
      %499 = vmatpush.msra.mxu0 0.0
      %500 = vmatpush.msra.mxu0 0.0
      %501 = vmatpush.msra.mxu0 0.0
      %502 = vmatpush.msra.mxu0 0.0
      %503 = vmatpush.msra.mxu0 0.0
      %504 = vmatpush.msra.mxu0 0.0
      %505 = vmatpush.msra.mxu0 0.0
      %506 = vmatpush.msra.mxu0 0.0
      %507 = vmatpush.msra.mxu0 %v484
      %508 = vmatpush.msra.mxu0 %v482
      %509 = vmatmul.f32.gmra.mxu0 %v488
      %v510 = vpop.f32.mrf.mxu0
      %v511 = vadd.f32 0.0, %v510
      %512 = vmatmul.f32.gmra.mxu0 %v491
      %v513 = vpop.f32.mrf.mxu0
      %v514 = vadd.f32 0.0, %v513
      %515 = vdwg.mxu0
      %v516 = vld [vmem:[%s5 + $0x10] sm:$0xff]
      %v517 = vld [vmem:[%s5 + $0x18] sm:$0xff]
      %v518 = vpack.c.bf16 %v514, %v511
      %v519 = vpack.c.bf16 %v517, %v516
      %v521 = vsel %vm426, %v518, 0
      %523 = vmatpush.bf16.msra.mxu0 0
      %524 = vmatpush.bf16.msra.mxu0 0
      %525 = vmatpush.bf16.msra.mxu0 0
      %526 = vmatpush.bf16.msra.mxu0 0
      %527 = vmatpush.bf16.msra.mxu0 0
      %528 = vmatpush.bf16.msra.mxu0 0
      %529 = vmatpush.bf16.msra.mxu0 0
      %530 = vmatpush.bf16.msra.mxu0 %v519
      %531 = vmatmul.bf16.gmra.mxu0 %v521
      %v532 = vpop.f32.mrf.mxu0
      %v533 = vadd.f32 0.0, %v532
      %v534 = vpop.f32.mrf.mxu0
      %v535 = vadd.f32 0.0, %v534
      %536 = vdwg.mxu0
      %v537 = vadd.f32 %v477, %v533
      %v538 = vadd.f32 %v478, %v535
      %539 = vrot.lane.b32.xlu0 %v417, 96
      %v540 = vpop.permute.xlu0 %539
      %541 = vrot.lane.b32.xlu0 %v419, 96
      %v542 = vpop.permute.xlu0 %541
      %v546 = vsel %vm426, %v382, 0
      %v549 = vsel %vm426, %v383, 0
      %551 = vmatpush.msra.mxu0 0.0
      %552 = vmatpush.msra.mxu0 0.0
      %553 = vmatpush.msra.mxu0 0.0
      %554 = vmatpush.msra.mxu0 0.0
      %555 = vmatpush.msra.mxu0 0.0
      %556 = vmatpush.msra.mxu0 0.0
      %557 = vmatpush.msra.mxu0 0.0
      %558 = vmatpush.msra.mxu0 0.0
      %559 = vmatpush.msra.mxu0 0.0
      %560 = vmatpush.msra.mxu0 0.0
      %561 = vmatpush.msra.mxu0 0.0
      %562 = vmatpush.msra.mxu0 0.0
      %563 = vmatpush.msra.mxu0 0.0
      %564 = vmatpush.msra.mxu0 0.0
      %565 = vmatpush.msra.mxu0 %v542
      %566 = vmatpush.msra.mxu0 %v540
      %567 = vmatmul.f32.gmra.mxu0 %v546
      %v568 = vpop.f32.mrf.mxu0
      %v569 = vadd.f32 0.0, %v568
      %570 = vmatmul.f32.gmra.mxu0 %v549
      %v571 = vpop.f32.mrf.mxu0
      %v572 = vadd.f32 0.0, %v571
      %573 = vdwg.mxu0
      %v574 = vld [vmem:[%s5 + $0x20] sm:$0xff]
      %v575 = vld [vmem:[%s5 + $0x28] sm:$0xff]
      %v576 = vpack.c.bf16 %v572, %v569
      %v577 = vpack.c.bf16 %v575, %v574
      %v579 = vsel %vm426, %v576, 0
      %581 = vmatpush.bf16.msra.mxu0 0
      %582 = vmatpush.bf16.msra.mxu0 0
      %583 = vmatpush.bf16.msra.mxu0 0
      %584 = vmatpush.bf16.msra.mxu0 0
      %585 = vmatpush.bf16.msra.mxu0 0
      %586 = vmatpush.bf16.msra.mxu0 0
      %587 = vmatpush.bf16.msra.mxu0 0
      %588 = vmatpush.bf16.msra.mxu0 %v577
      %589 = vmatmul.bf16.gmra.mxu0 %v579
      %v590 = vpop.f32.mrf.mxu0
      %v591 = vadd.f32 0.0, %v590
      %v592 = vpop.f32.mrf.mxu0
      %v593 = vadd.f32 0.0, %v592
      %594 = vdwg.mxu0
      %v595 = vadd.f32 %v537, %v591
      %v596 = vadd.f32 %v538, %v593
      %597 = vrot.lane.b32.xlu0 %v417, 80
      %v598 = vpop.permute.xlu0 %597
      %599 = vrot.lane.b32.xlu0 %v419, 80
      %v600 = vpop.permute.xlu0 %599
      %v604 = vsel %vm426, %v384, 0
      %v607 = vsel %vm426, %v385, 0
      %609 = vmatpush.msra.mxu0 0.0
      %610 = vmatpush.msra.mxu0 0.0
      %611 = vmatpush.msra.mxu0 0.0
      %612 = vmatpush.msra.mxu0 0.0
      %613 = vmatpush.msra.mxu0 0.0
      %614 = vmatpush.msra.mxu0 0.0
      %615 = vmatpush.msra.mxu0 0.0
      %616 = vmatpush.msra.mxu0 0.0
      %617 = vmatpush.msra.mxu0 0.0
      %618 = vmatpush.msra.mxu0 0.0
      %619 = vmatpush.msra.mxu0 0.0
      %620 = vmatpush.msra.mxu0 0.0
      %621 = vmatpush.msra.mxu0 0.0
      %622 = vmatpush.msra.mxu0 0.0
      %623 = vmatpush.msra.mxu0 %v600
      %624 = vmatpush.msra.mxu0 %v598
      %625 = vmatmul.f32.gmra.mxu0 %v604
      %v626 = vpop.f32.mrf.mxu0
      %v627 = vadd.f32 0.0, %v626
      %628 = vmatmul.f32.gmra.mxu0 %v607
      %v629 = vpop.f32.mrf.mxu0
      %v630 = vadd.f32 0.0, %v629
      %631 = vdwg.mxu0
      %v632 = vld [vmem:[%s5 + $0x30] sm:$0xff]
      %v633 = vld [vmem:[%s5 + $0x38] sm:$0xff]
      %v634 = vpack.c.bf16 %v630, %v627
      %v635 = vpack.c.bf16 %v633, %v632
      %v637 = vsel %vm426, %v634, 0
      %639 = vmatpush.bf16.msra.mxu0 0
      %640 = vmatpush.bf16.msra.mxu0 0
      %641 = vmatpush.bf16.msra.mxu0 0
      %642 = vmatpush.bf16.msra.mxu0 0
      %643 = vmatpush.bf16.msra.mxu0 0
      %644 = vmatpush.bf16.msra.mxu0 0
      %645 = vmatpush.bf16.msra.mxu0 0
      %646 = vmatpush.bf16.msra.mxu0 %v635
      %647 = vmatmul.bf16.gmra.mxu0 %v637
      %v648 = vpop.f32.mrf.mxu0
      %v649 = vadd.f32 0.0, %v648
      %v650 = vpop.f32.mrf.mxu0
      %v651 = vadd.f32 0.0, %v650
      %652 = vdwg.mxu0
      %v653 = vadd.f32 %v595, %v649
      %v654 = vadd.f32 %v596, %v651
      %v655 = vadd.f32 %v653, %v374
      %v656 = vadd.f32 %v654, %v375
      %v657 = vld [vmem:[%s7] sm:$0x1]
      %v658 = vld [vmem:[%s8] sm:$0x1]
      %v659 = vsel %vm403, %v655, 0.0
      %660 = vadd.xlane.f32.xlu0 %v659
      %v661 = vpop.xlane.xlu0 %660
      %v662 = vsel %vm403, %v656, 0.0
      %663 = vadd.xlane.f32.xlu0 %v662
      %v664 = vpop.xlane.xlu0 %663
      %v665 = vrcp.pop 64.0
      %v666 = vmul.f32 64.0, %v665
      %v667 = vsub.f32 1.0, %v666
      %v668 = vmul.f32 %v665, %v667
      %v669 = vadd.f32 %v665, %v668
      %vm670 = vweird.f32 %v665
      %v671 = vsel %vm670, %v665, %v669
      %v672 = vmul.f32 %v661, %v671
      %v673 = vmul.f32 %v664, %v671
      %v674 = vsub.f32 %v655, %v672
      %v675 = vsub.f32 %v656, %v673
      %v676 = vmul.f32 %v674, %v674
      %v677 = vmul.f32 %v675, %v675
      %v678 = vsel %vm403, %v676, 0.0
      %679 = vadd.xlane.f32.xlu0 %v678
      %v680 = vpop.xlane.xlu0 %679
      %v681 = vsel %vm403, %v677, 0.0
      %682 = vadd.xlane.f32.xlu0 %v681
      %v683 = vpop.xlane.xlu0 %682
      %v684 = vmul.f32 %v680, %v671
      %v685 = vmul.f32 %v683, %v671
      %v686 = vadd.f32 %v684, 1e-05
      %v687 = vadd.f32 %v685, 1e-05
      %v688 = vrsqrt.pop %v686
      %v689 = vmul.f32 %v688, %v686
      %v690 = vmul.f32 %v689, %v688
      %v691 = vmul.f32 0.5, %v690
      %v692 = vsub.f32 1.5, %v691
      %v693 = vmul.f32 %v688, %v692
      %vm694 = vweird.f32 %v686
      %vm695 = vweird.f32 %v688
      %vm696 = vmor %vm694, %vm695
      %v697 = vsel %vm696, %v688, %v693
      %v698 = vrsqrt.pop %v687
      %v699 = vmul.f32 %v698, %v687
      %v700 = vmul.f32 %v699, %v698
      %v701 = vmul.f32 0.5, %v700
      %v702 = vsub.f32 1.5, %v701
      %v703 = vmul.f32 %v698, %v702
      %vm704 = vweird.f32 %v687
      %vm705 = vweird.f32 %v698
      %vm706 = vmor %vm704, %vm705
      %v707 = vsel %vm706, %v698, %v703
      %v708 = vmul.f32 %v674, %v697
      %v709 = vmul.f32 %v675, %v707
      %v711 = vperm.slane %v657, 0
      %v713 = vmul.f32 %v708, %v711
      %v714 = vmul.f32 %v709, %v711
      %v716 = vperm.slane %v658, 0
      %v718 = vadd.f32 %v713, %v716
      %v719 = vadd.f32 %v714, %v716
      %720 = vst.msk [vmem:[%s372] sm:$0xff] %vm403, %v718
      %721 = vst.msk [vmem:[%s372 + $0x8] sm:$0xff] %vm403, %v719
      %p722 = scmp.lt.s32.totalorder %s20, 1
      %s723 = scalar_select %p722, %s20, 1
      %s724 = smul.addr %s723, 2
      %s725 = smul.addr %s724, 8
      %s726 = scalar_lea.vmem %s9, %s725
      // Predicated region
      $region57: #{encoder_forward.15} parent=55 // pred_check
        %p727 = pneg %p242
      $region58: #{encoder_forward.15} parent=55 // pred_check_branch
        %729 = sbr.rel (%p727) target = $region60
      $region59: #{encoder_forward.15} parent=55 // pred_region
        _
      $region60: #{encoder_forward.15} parent=55 // pred_fallthru
        _
    $region56: #{encoder_forward.15} parent=5 // pred_fallthru
      _
    %p730 = scmp.le.s32.totalorder 2, %s15
    // Predicated region
    $region61: #{encoder_forward.15} parent=5 // pred_check
      %p731 = pneg %p730
    $region62: #{encoder_forward.15} parent=5 // pred_check_branch
      %733 = sbr.rel (%p731) target = $region64
    $region63: #{encoder_forward.15} parent=5 // pred_region
      %s734 = ssub.s32 %s15, 2
      // Predicated region
      $region65: #{encoder_forward.15} parent=63 // pred_check
        %p735 = pneg %p248
      $region66: #{encoder_forward.15} parent=63 // pred_check_branch
        %737 = sbr.rel (%p735) target = $region68
      $region67: #{encoder_forward.15} parent=63 // pred_region
        %p738 = scmp.lt.s32.totalorder %s21, 1
        %s739 = scalar_select %p738, %s21, 1
        %s740 = smul.addr %s739, 2
        %s741 = smul.addr %s740, 8
        %s742 = scalar_lea.vmem %s9, %s741
      $region68: #{encoder_forward.15} parent=63 // pred_fallthru
        _
    $region64: #{encoder_forward.15} parent=5 // pred_fallthru
      _
  $region6: #{encoder_forward.15} parent=0 // loop_footer
    %s19 = sadd.s32 1, %s15
  $region7: #{encoder_forward.15} parent=0 // loop_footer_branch
    %14 = sbr.rel target = $region3
  $region8: #{encoder_forward.15} parent=0 // loop_exit
    _

// kernel: encoder_forward.17
$region0: #{encoder_forward.17}
  #allocation0 [shape = 'u32[]', space=smem, size = 0x4, offset = 0x4, fixed_abs, tag = 'smem constant byte address 0x4 - core index']
  #allocation1 [shape = 'u32[72,128]{1,0:T(1,128)}', space=vmem, size = 0x9000, scoped, tag = 'internal scratch']
  %s0 = inlined_call_operand.vmem [shape: f32[32,64], index: 0, kind: input, shape index: {}]
  %s1 = inlined_call_operand.vmem [shape: f32[32,64], index: 1, kind: input, shape index: {}]
  %s2 = inlined_call_operand.vmem [shape: f32[1,64], index: 2, kind: input, shape index: {}]
  %s3 = inlined_call_operand.vmem [shape: f32[1,64], index: 3, kind: input, shape index: {}]
  %s4 = inlined_call_operand.vmem [shape: f32[32,64], index: 4, kind: output, shape index: {}]
  %s5 = sld [smem:[#allocation0]]
  $region49: #{encoder_forward.17} parent=0
    _
  %s7 = ssub.s32 1, %s5
  %s8 = scalar_select 0, %s7, %s5
  loop: start=0, step=1, limit=4
  $region2: #{encoder_forward.17} parent=0 // loop_pre_header
    _
  $region3: #{encoder_forward.17} parent=0 // loop_header
    %s10 = sphi 0, %s14
    %p11 = scmp.ge.s32.totalorder %s10, 4
    %s20 = sphi 0, %s22
    %s23 = sphi 0, %s20
    %s24 = sphi 0, %s23
    %s40 = sphi 0, %s24
    %s46 = sphi 0, %s48
    %s49 = sphi 0, %s46
    %s50 = sphi 0, %s49
    %s66 = sphi 0, %s50
    %s70 = sphi 0, %s70
    %s72 = sphi 0, %s70
    %s73 = sphi 0, %s72
    %s87 = sphi 0, %s73
    %s91 = sphi 0, %s91
    %s93 = sphi 0, %s91
    %s94 = sphi 0, %s93
    %s108 = sphi 0, %s94
    %s114 = sphi 0, %s116
    %s117 = sphi 0, %s114
    %s118 = sphi 0, %s117
    %s134 = sphi 0, %s118
  $region4: #{encoder_forward.17} parent=0 // loop_header_branch
    %13 = sbr.rel (%p11) target = $region8
  $region5: #{encoder_forward.17} parent=0 // loop_body
    %s15 = ssub.s32 %s10, 1
    %s16 = ssub.s32 %s10, 2
    %s17 = sadd.s32 %s10, 1
    %s18 = ssub.s32 %s10, %s17
    %p19 = scmp.eq.s32.totalorder %s18, 0
    %s21 = sadd.s32 %s20, 1
    %s22 = scalar_select %p19, %s20, %s21
    %p25 = pneg %p19
    %p26 = scmp.eq.s32.totalorder %s10, 1
    %p27 = por %p25, %p26
    %p28 = scmp.ne.s32.totalorder %s20, %s23
    %p29 = scmp.eq.s32.totalorder %s10, 0
    %p30 = por %p28, %p29
    %p31 = scmp.ne.s32.totalorder %s20, %s23
    %p32 = scmp.eq.s32.totalorder %s15, 1
    %p33 = por %p31, %p32
    %p34 = scmp.ne.s32.totalorder %s23, %s24
    %p35 = scmp.eq.s32.totalorder %s15, 0
    %p36 = por %p34, %p35
    %p37 = scmp.ne.s32.totalorder %s23, %s24
    %p38 = scmp.eq.s32.totalorder %s16, 1
    %p39 = por %p37, %p38
    %p41 = scmp.ne.s32.totalorder %s24, %s40
    %p42 = scmp.eq.s32.totalorder %s16, 0
    %p43 = por %p41, %p42
    %s44 = ssub.s32 %s10, %s17
    %p45 = scmp.eq.s32.totalorder %s44, 0
    %s47 = sadd.s32 %s46, 1
    %s48 = scalar_select %p45, %s46, %s47
    %p51 = pneg %p45
    %p52 = scmp.eq.s32.totalorder %s10, 1
    %p53 = por %p51, %p52
    %p54 = scmp.ne.s32.totalorder %s46, %s49
    %p55 = scmp.eq.s32.totalorder %s10, 0
    %p56 = por %p54, %p55
    %p57 = scmp.ne.s32.totalorder %s46, %s49
    %p58 = scmp.eq.s32.totalorder %s15, 1
    %p59 = por %p57, %p58
    %p60 = scmp.ne.s32.totalorder %s49, %s50
    %p61 = scmp.eq.s32.totalorder %s15, 0
    %p62 = por %p60, %p61
    %p63 = scmp.ne.s32.totalorder %s49, %s50
    %p64 = scmp.eq.s32.totalorder %s16, 1
    %p65 = por %p63, %p64
    %p67 = scmp.ne.s32.totalorder %s50, %s66
    %p68 = scmp.eq.s32.totalorder %s16, 0
    %p69 = por %p67, %p68
    %s71 = sadd.s32 %s70, 1
    %p74 = scmp.eq.s32.totalorder %s10, 1
    %p75 = scmp.ne.s32.totalorder %s70, %s72
    %p76 = scmp.eq.s32.totalorder %s10, 0
    %p77 = por %p75, %p76
    %p78 = scmp.ne.s32.totalorder %s70, %s72
    %p79 = scmp.eq.s32.totalorder %s15, 1
    %p80 = por %p78, %p79
    %p81 = scmp.ne.s32.totalorder %s72, %s73
    %p82 = scmp.eq.s32.totalorder %s15, 0
    %p83 = por %p81, %p82
    %p84 = scmp.ne.s32.totalorder %s72, %s73
    %p85 = scmp.eq.s32.totalorder %s16, 1
    %p86 = por %p84, %p85
    %p88 = scmp.ne.s32.totalorder %s73, %s87
    %p89 = scmp.eq.s32.totalorder %s16, 0
    %p90 = por %p88, %p89
    %s92 = sadd.s32 %s91, 1
    %p95 = scmp.eq.s32.totalorder %s10, 1
    %p96 = scmp.ne.s32.totalorder %s91, %s93
    %p97 = scmp.eq.s32.totalorder %s10, 0
    %p98 = por %p96, %p97
    %p99 = scmp.ne.s32.totalorder %s91, %s93
    %p100 = scmp.eq.s32.totalorder %s15, 1
    %p101 = por %p99, %p100
    %p102 = scmp.ne.s32.totalorder %s93, %s94
    %p103 = scmp.eq.s32.totalorder %s15, 0
    %p104 = por %p102, %p103
    %p105 = scmp.ne.s32.totalorder %s93, %s94
    %p106 = scmp.eq.s32.totalorder %s16, 1
    %p107 = por %p105, %p106
    %p109 = scmp.ne.s32.totalorder %s94, %s108
    %p110 = scmp.eq.s32.totalorder %s16, 0
    %p111 = por %p109, %p110
    %s112 = ssub.s32 %s10, %s17
    %p113 = scmp.eq.s32.totalorder %s112, 0
    %s115 = sadd.s32 %s114, 1
    %s116 = scalar_select %p113, %s114, %s115
    %p119 = pneg %p113
    %p120 = scmp.eq.s32.totalorder %s10, 1
    %p121 = por %p119, %p120
    %p122 = scmp.ne.s32.totalorder %s114, %s117
    %p123 = scmp.eq.s32.totalorder %s10, 0
    %p124 = por %p122, %p123
    %p125 = scmp.ne.s32.totalorder %s114, %s117
    %p126 = scmp.eq.s32.totalorder %s15, 1
    %p127 = por %p125, %p126
    %p128 = scmp.ne.s32.totalorder %s117, %s118
    %p129 = scmp.eq.s32.totalorder %s15, 0
    %p130 = por %p128, %p129
    %p131 = scmp.ne.s32.totalorder %s117, %s118
    %p132 = scmp.eq.s32.totalorder %s16, 1
    %p133 = por %p131, %p132
    %p135 = scmp.ne.s32.totalorder %s118, %s134
    %p136 = scmp.eq.s32.totalorder %s16, 0
    %p137 = por %p135, %p136
    %p138 = scmp.le.s32.totalorder 1, %s10
    %p139 = scmp.lt.s32.totalorder %s10, 3
    %p140 = pnand %p138, %p139
    %p141 = pneg %p140
    // Predicated region
    $region9: #{encoder_forward.17} parent=5 // pred_check
      _
    $region10: #{encoder_forward.17} parent=5 // pred_check_branch
      %143 = sbr.rel (%p140) target = $region12
    $region11: #{encoder_forward.17} parent=5 // pred_region
      %s144 = ssub.s32 %s10, 1
      // Predicated region
      $region13: #{encoder_forward.17} parent=11 // pred_check
        %p145 = pneg %p83
      $region14: #{encoder_forward.17} parent=11 // pred_check_branch
        %147 = sbr.rel (%p145) target = $region16
      $region15: #{encoder_forward.17} parent=11 // pred_region
        _
      $region16: #{encoder_forward.17} parent=11 // pred_fallthru
        _
      // Predicated region
      $region17: #{encoder_forward.17} parent=11 // pred_check
        %p148 = pneg %p104
      $region18: #{encoder_forward.17} parent=11 // pred_check_branch
        %150 = sbr.rel (%p148) target = $region20
      $region19: #{encoder_forward.17} parent=11 // pred_region
        _
      $region20: #{encoder_forward.17} parent=11 // pred_fallthru
        _
    $region12: #{encoder_forward.17} parent=5 // pred_fallthru
      _
    %p151 = scmp.lt.s32.totalorder %s10, 2
    // Predicated region
    $region21: #{encoder_forward.17} parent=5 // pred_check
      %p152 = pneg %p151
    $region22: #{encoder_forward.17} parent=5 // pred_check_branch
      %154 = sbr.rel (%p152) target = $region24
    $region23: #{encoder_forward.17} parent=5 // pred_region
      // Predicated region
      $region25: #{encoder_forward.17} parent=23 // pred_check
        %p155 = pneg %p30
      $region26: #{encoder_forward.17} parent=23 // pred_check_branch
        %157 = sbr.rel (%p155) target = $region28
      $region27: #{encoder_forward.17} parent=23 // pred_region
        %s158 = smul.u32 2, %s10
        %p159 = scmp.lt.s32.totalorder %s158, 3
        %s160 = scalar_select %p159, %s158, 3
        %s161 = smul.addr %s160, 8
        %s162 = scalar_lea.vmem %s0, %s161
        %s163 = smul.u32 2, %s10
      $region28: #{encoder_forward.17} parent=23 // pred_fallthru
        _
      // Predicated region
      $region29: #{encoder_forward.17} parent=23 // pred_check
        %p164 = pneg %p56
      $region30: #{encoder_forward.17} parent=23 // pred_check_branch
        %166 = sbr.rel (%p164) target = $region32
      $region31: #{encoder_forward.17} parent=23 // pred_region
        %s167 = smul.u32 2, %s10
        %p168 = scmp.lt.s32.totalorder %s167, 3
        %s169 = scalar_select %p168, %s167, 3
        %s170 = smul.addr %s169, 8
        %s171 = scalar_lea.vmem %s1, %s170
        %s172 = smul.u32 2, %s10
      $region32: #{encoder_forward.17} parent=23 // pred_fallthru
        _
    $region24: #{encoder_forward.17} parent=5 // pred_fallthru
      _
    %p173 = scmp.le.s32.totalorder 1, %s10
    %p174 = scmp.lt.s32.totalorder %s10, 3
    %p175 = pnand %p173, %p174
    %p176 = pneg %p175
    // Predicated region
    $region33: #{encoder_forward.17} parent=5 // pred_check
      _
    $region34: #{encoder_forward.17} parent=5 // pred_check_branch
      %178 = sbr.rel (%p175) target = $region36
    $region35: #{encoder_forward.17} parent=5 // pred_region
      %s179 = ssub.s32 %s10, 1
      %s180 = smul.u32 2, %s15
      %p181 = scmp.lt.s32.totalorder %s180, 3
      %s182 = scalar_select %p181, %s180, 3
      %s183 = smul.addr %s182, 8
      %s184 = scalar_lea.vmem %s0, %s183
      %p185 = pneg %p36
      %p186 = pneg %p33
      %s187 = smul.u32 2, %s15
      %p188 = scmp.lt.s32.totalorder %s187, 3
      %s189 = scalar_select %p188, %s187, 3
      %s190 = smul.addr %s189, 8
      %s191 = scalar_lea.vmem %s1, %s190
      %p192 = pneg %p62
      %p193 = pneg %p59
      %p194 = pneg %p83
      %p195 = pneg %p80
      %p196 = pneg %p104
      %p197 = pneg %p101
      %p198 = pneg %p130
      %p199 = pneg %p127
      %s200 = smul.u32 2, %s15
      %p201 = scmp.lt.s32.totalorder %s200, 3
      %s202 = scalar_select %p201, %s200, 3
      %s203 = smul.addr %s202, 8
      %s204 = scalar_lea.vmem %s4, %s203
      %s205 = smul.u32 2, %s15
      %p206 = scmp.lt.s32.totalorder %s205, 3
      %s207 = scalar_select %p206, %s205, 3
      %s208 = smul.addr %s207, 8
      %s209 = scalar_lea.vmem %s0, %s208
      %s210 = smul.u32 2, %s15
      %s211 = smul.u32 2, %s15
      %p212 = scmp.lt.s32.totalorder %s211, 3
      %s213 = scalar_select %p212, %s211, 3
      %s214 = smul.addr %s213, 8
      %s215 = scalar_lea.vmem %s1, %s214
      %s216 = smul.u32 2, %s15
      %s217 = smul.u32 2, %s15
      %p218 = scmp.lt.s32.totalorder %s217, 3
      %s219 = scalar_select %p218, %s217, 3
      %s220 = smul.addr %s219, 8
      %s221 = scalar_lea.vmem %s4, %s220
      %s222 = smul.u32 2, %s15
      %v223 = vld [vmem:[%s209] sm:$0xff]
      %v224 = vld [vmem:[%s209 + $0x8] sm:$0xff]
      %v225 = vld [vmem:[%s215] sm:$0xff]
      %v226 = vld [vmem:[%s215 + $0x8] sm:$0xff]
      %v227 = vadd.f32 %v223, %v225
      %v228 = vadd.f32 %v224, %v226
      %v229 = vld [vmem:[%s2] sm:$0x1]
      %v230 = vld [vmem:[%s3] sm:$0x1]
      %vm231 = vcmask 523264
      %v232 = vsel %vm231, %v227, 0.0
      %233 = vadd.xlane.f32.xlu0 %v232
      %v234 = vpop.xlane.xlu0 %233
      %v235 = vsel %vm231, %v228, 0.0
      %236 = vadd.xlane.f32.xlu0 %v235
      %v237 = vpop.xlane.xlu0 %236
      %v238 = vrcp.pop 64.0
      %v239 = vmul.f32 64.0, %v238
      %v240 = vsub.f32 1.0, %v239
      %v241 = vmul.f32 %v238, %v240
      %v242 = vadd.f32 %v238, %v241
      %vm243 = vweird.f32 %v238
      %v244 = vsel %vm243, %v238, %v242
      %v245 = vmul.f32 %v234, %v244
      %v246 = vmul.f32 %v237, %v244
      %v247 = vsub.f32 %v227, %v245
      %v248 = vsub.f32 %v228, %v246
      %v249 = vmul.f32 %v247, %v247
      %v250 = vmul.f32 %v248, %v248
      %v251 = vsel %vm231, %v249, 0.0
      %252 = vadd.xlane.f32.xlu0 %v251
      %v253 = vpop.xlane.xlu0 %252
      %v254 = vsel %vm231, %v250, 0.0
      %255 = vadd.xlane.f32.xlu0 %v254
      %v256 = vpop.xlane.xlu0 %255
      %v257 = vmul.f32 %v253, %v244
      %v258 = vmul.f32 %v256, %v244
      %v259 = vadd.f32 %v257, 1e-05
      %v260 = vadd.f32 %v258, 1e-05
      %v261 = vrsqrt.pop %v259
      %v262 = vmul.f32 %v261, %v259
      %v263 = vmul.f32 %v262, %v261
      %v264 = vmul.f32 0.5, %v263
      %v265 = vsub.f32 1.5, %v264
      %v266 = vmul.f32 %v261, %v265
      %vm267 = vweird.f32 %v259
      %vm268 = vweird.f32 %v261
      %vm269 = vmor %vm267, %vm268
      %v270 = vsel %vm269, %v261, %v266
      %v271 = vrsqrt.pop %v260
      %v272 = vmul.f32 %v271, %v260
      %v273 = vmul.f32 %v272, %v271
      %v274 = vmul.f32 0.5, %v273
      %v275 = vsub.f32 1.5, %v274
      %v276 = vmul.f32 %v271, %v275
      %vm277 = vweird.f32 %v260
      %vm278 = vweird.f32 %v271
      %vm279 = vmor %vm277, %vm278
      %v280 = vsel %vm279, %v271, %v276
      %v281 = vmul.f32 %v247, %v270
      %v282 = vmul.f32 %v248, %v280
      %v284 = vperm.slane %v229, 0
      %v286 = vmul.f32 %v281, %v284
      %v287 = vmul.f32 %v282, %v284
      %v289 = vperm.slane %v230, 0
      %v291 = vadd.f32 %v286, %v289
      %v292 = vadd.f32 %v287, %v289
      %293 = vst.msk [vmem:[%s221] sm:$0xff] %vm231, %v291
      %294 = vst.msk [vmem:[%s221 + $0x8] sm:$0xff] %vm231, %v292
      %s295 = smul.u32 2, %s15
      %p296 = scmp.lt.s32.totalorder %s295, 3
      %s297 = scalar_select %p296, %s295, 3
      %s298 = smul.addr %s297, 8
      %s299 = scalar_lea.vmem %s4, %s298
      // Predicated region
      $region37: #{encoder_forward.17} parent=35 // pred_check
        %p300 = pneg %p127
      $region38: #{encoder_forward.17} parent=35 // pred_check_branch
        %302 = sbr.rel (%p300) target = $region40
      $region39: #{encoder_forward.17} parent=35 // pred_region
        %s303 = smul.u32 2, %s15
      $region40: #{encoder_forward.17} parent=35 // pred_fallthru
        _
    $region36: #{encoder_forward.17} parent=5 // pred_fallthru
      _
    %p304 = scmp.le.s32.totalorder 2, %s10
    // Predicated region
    $region41: #{encoder_forward.17} parent=5 // pred_check
      %p305 = pneg %p304
    $region42: #{encoder_forward.17} parent=5 // pred_check_branch
      %307 = sbr.rel (%p305) target = $region44
    $region43: #{encoder_forward.17} parent=5 // pred_region
      %s308 = ssub.s32 %s10, 2
      // Predicated region
      $region45: #{encoder_forward.17} parent=43 // pred_check
        %p309 = pneg %p133
      $region46: #{encoder_forward.17} parent=43 // pred_check_branch
        %311 = sbr.rel (%p309) target = $region48
      $region47: #{encoder_forward.17} parent=43 // pred_region
        %s312 = smul.u32 2, %s16
        %p313 = scmp.lt.s32.totalorder %s312, 3
        %s314 = scalar_select %p313, %s312, 3
        %s315 = smul.addr %s314, 8
        %s316 = scalar_lea.vmem %s4, %s315
      $region48: #{encoder_forward.17} parent=43 // pred_fallthru
        _
    $region44: #{encoder_forward.17} parent=5 // pred_fallthru
      _
  $region6: #{encoder_forward.17} parent=0 // loop_footer
    %s14 = sadd.s32 1, %s10
  $region7: #{encoder_forward.17} parent=0 // loop_footer_branch
    %9 = sbr.rel target = $region3
  $region8: #{encoder_forward.17} parent=0 // loop_exit
    _

// kernel: encoder_forward.18
$region0: #{encoder_forward.18}
  #allocation0 [shape = 'u32[]', space=smem, size = 0x4, offset = 0x4, fixed_abs, tag = 'smem constant byte address 0x4 - core index']
  #allocation1 [shape = 'u32[72,128]{1,0:T(1,128)}', space=vmem, size = 0x9000, scoped, tag = 'internal scratch']
  %s0 = inlined_call_operand.vmem [shape: f32[2,16,64], index: 0, kind: input, shape index: {}]
  %s1 = inlined_call_operand.vmem [shape: f32[2,8,64], index: 1, kind: input, shape index: {}]
  %s2 = inlined_call_operand.vmem [shape: f32[64,64], index: 2, kind: input, shape index: {}]
  %s3 = inlined_call_operand.vmem [shape: f32[1,64], index: 3, kind: input, shape index: {}]
  %s4 = inlined_call_operand.vmem [shape: f32[64,128], index: 4, kind: input, shape index: {}]
  %s5 = inlined_call_operand.vmem [shape: f32[1,128], index: 5, kind: input, shape index: {}]
  %s6 = inlined_call_operand.vmem [shape: f32[64,64], index: 6, kind: input, shape index: {}]
  %s7 = inlined_call_operand.vmem [shape: f32[1,64], index: 7, kind: input, shape index: {}]
  %s8 = inlined_call_operand.vmem [shape: f32[1,64], index: 8, kind: input, shape index: {}]
  %s9 = inlined_call_operand.vmem [shape: f32[1,64], index: 9, kind: input, shape index: {}]
  %s10 = inlined_call_operand.vmem [shape: f32[2,16,64], index: 10, kind: output, shape index: {}]
  %s11 = sld [smem:[#allocation0]]
  $region73: #{encoder_forward.18} parent=0
    _
  %s13 = ssub.s32 1, %s11
  %s14 = scalar_select 0, %s13, %s11
  loop: start=0, step=1, limit=4
  $region2: #{encoder_forward.18} parent=0 // loop_pre_header
    _
  $region3: #{encoder_forward.18} parent=0 // loop_header
    %s16 = sphi 0, %s20
    %p17 = scmp.ge.s32.totalorder %s16, 4
    %s26 = sphi 0, %s28
    %s29 = sphi 0, %s26
    %s30 = sphi 0, %s29
    %s46 = sphi 0, %s30
    %s52 = sphi 0, %s54
    %s55 = sphi 0, %s52
    %s56 = sphi 0, %s55
    %s72 = sphi 0, %s56
    %s76 = sphi 0, %s76
    %s78 = sphi 0, %s76
    %s79 = sphi 0, %s78
    %s93 = sphi 0, %s79
    %s97 = sphi 0, %s97
    %s99 = sphi 0, %s97
    %s100 = sphi 0, %s99
    %s114 = sphi 0, %s100
    %s118 = sphi 0, %s118
    %s120 = sphi 0, %s118
    %s121 = sphi 0, %s120
    %s135 = sphi 0, %s121
    %s139 = sphi 0, %s139
    %s141 = sphi 0, %s139
    %s142 = sphi 0, %s141
    %s156 = sphi 0, %s142
    %s160 = sphi 0, %s160
    %s162 = sphi 0, %s160
    %s163 = sphi 0, %s162
    %s177 = sphi 0, %s163
    %s181 = sphi 0, %s181
    %s183 = sphi 0, %s181
    %s184 = sphi 0, %s183
    %s198 = sphi 0, %s184
    %s202 = sphi 0, %s202
    %s204 = sphi 0, %s202
    %s205 = sphi 0, %s204
    %s219 = sphi 0, %s205
    %s223 = sphi 0, %s223
    %s225 = sphi 0, %s223
    %s226 = sphi 0, %s225
    %s240 = sphi 0, %s226
    %s246 = sphi 0, %s248
    %s249 = sphi 0, %s246
    %s250 = sphi 0, %s249
    %s266 = sphi 0, %s250
  $region4: #{encoder_forward.18} parent=0 // loop_header_branch
    %19 = sbr.rel (%p17) target = $region8
  $region5: #{encoder_forward.18} parent=0 // loop_body
    %s21 = ssub.s32 %s16, 1
    %s22 = ssub.s32 %s16, 2
    %s23 = sadd.s32 %s16, 1
    %s24 = ssub.s32 %s16, %s23
    %p25 = scmp.eq.s32.totalorder %s24, 0
    %s27 = sadd.s32 %s26, 1
    %s28 = scalar_select %p25, %s26, %s27
    %p31 = pneg %p25
    %p32 = scmp.eq.s32.totalorder %s16, 1
    %p33 = por %p31, %p32
    %p34 = scmp.ne.s32.totalorder %s26, %s29
    %p35 = scmp.eq.s32.totalorder %s16, 0
    %p36 = por %p34, %p35
    %p37 = scmp.ne.s32.totalorder %s26, %s29
    %p38 = scmp.eq.s32.totalorder %s21, 1
    %p39 = por %p37, %p38
    %p40 = scmp.ne.s32.totalorder %s29, %s30
    %p41 = scmp.eq.s32.totalorder %s21, 0
    %p42 = por %p40, %p41
    %p43 = scmp.ne.s32.totalorder %s29, %s30
    %p44 = scmp.eq.s32.totalorder %s22, 1
    %p45 = por %p43, %p44
    %p47 = scmp.ne.s32.totalorder %s30, %s46
    %p48 = scmp.eq.s32.totalorder %s22, 0
    %p49 = por %p47, %p48
    %s50 = ssub.s32 %s16, %s23
    %p51 = scmp.eq.s32.totalorder %s50, 0
    %s53 = sadd.s32 %s52, 1
    %s54 = scalar_select %p51, %s52, %s53
    %p57 = pneg %p51
    %p58 = scmp.eq.s32.totalorder %s16, 1
    %p59 = por %p57, %p58
    %p60 = scmp.ne.s32.totalorder %s52, %s55
    %p61 = scmp.eq.s32.totalorder %s16, 0
    %p62 = por %p60, %p61
    %p63 = scmp.ne.s32.totalorder %s52, %s55
    %p64 = scmp.eq.s32.totalorder %s21, 1
    %p65 = por %p63, %p64
    %p66 = scmp.ne.s32.totalorder %s55, %s56
    %p67 = scmp.eq.s32.totalorder %s21, 0
    %p68 = por %p66, %p67
    %p69 = scmp.ne.s32.totalorder %s55, %s56
    %p70 = scmp.eq.s32.totalorder %s22, 1
    %p71 = por %p69, %p70
    %p73 = scmp.ne.s32.totalorder %s56, %s72
    %p74 = scmp.eq.s32.totalorder %s22, 0
    %p75 = por %p73, %p74
    %s77 = sadd.s32 %s76, 1
    %p80 = scmp.eq.s32.totalorder %s16, 1
    %p81 = scmp.ne.s32.totalorder %s76, %s78
    %p82 = scmp.eq.s32.totalorder %s16, 0
    %p83 = por %p81, %p82
    %p84 = scmp.ne.s32.totalorder %s76, %s78
    %p85 = scmp.eq.s32.totalorder %s21, 1
    %p86 = por %p84, %p85
    %p87 = scmp.ne.s32.totalorder %s78, %s79
    %p88 = scmp.eq.s32.totalorder %s21, 0
    %p89 = por %p87, %p88
    %p90 = scmp.ne.s32.totalorder %s78, %s79
    %p91 = scmp.eq.s32.totalorder %s22, 1
    %p92 = por %p90, %p91
    %p94 = scmp.ne.s32.totalorder %s79, %s93
    %p95 = scmp.eq.s32.totalorder %s22, 0
    %p96 = por %p94, %p95
    %s98 = sadd.s32 %s97, 1
    %p101 = scmp.eq.s32.totalorder %s16, 1
    %p102 = scmp.ne.s32.totalorder %s97, %s99
    %p103 = scmp.eq.s32.totalorder %s16, 0
    %p104 = por %p102, %p103
    %p105 = scmp.ne.s32.totalorder %s97, %s99
    %p106 = scmp.eq.s32.totalorder %s21, 1
    %p107 = por %p105, %p106
    %p108 = scmp.ne.s32.totalorder %s99, %s100
    %p109 = scmp.eq.s32.totalorder %s21, 0
    %p110 = por %p108, %p109
    %p111 = scmp.ne.s32.totalorder %s99, %s100
    %p112 = scmp.eq.s32.totalorder %s22, 1
    %p113 = por %p111, %p112
    %p115 = scmp.ne.s32.totalorder %s100, %s114
    %p116 = scmp.eq.s32.totalorder %s22, 0
    %p117 = por %p115, %p116
    %s119 = sadd.s32 %s118, 1
    %p122 = scmp.eq.s32.totalorder %s16, 1
    %p123 = scmp.ne.s32.totalorder %s118, %s120
    %p124 = scmp.eq.s32.totalorder %s16, 0
    %p125 = por %p123, %p124
    %p126 = scmp.ne.s32.totalorder %s118, %s120
    %p127 = scmp.eq.s32.totalorder %s21, 1
    %p128 = por %p126, %p127
    %p129 = scmp.ne.s32.totalorder %s120, %s121
    %p130 = scmp.eq.s32.totalorder %s21, 0
    %p131 = por %p129, %p130
    %p132 = scmp.ne.s32.totalorder %s120, %s121
    %p133 = scmp.eq.s32.totalorder %s22, 1
    %p134 = por %p132, %p133
    %p136 = scmp.ne.s32.totalorder %s121, %s135
    %p137 = scmp.eq.s32.totalorder %s22, 0
    %p138 = por %p136, %p137
    %s140 = sadd.s32 %s139, 1
    %p143 = scmp.eq.s32.totalorder %s16, 1
    %p144 = scmp.ne.s32.totalorder %s139, %s141
    %p145 = scmp.eq.s32.totalorder %s16, 0
    %p146 = por %p144, %p145
    %p147 = scmp.ne.s32.totalorder %s139, %s141
    %p148 = scmp.eq.s32.totalorder %s21, 1
    %p149 = por %p147, %p148
    %p150 = scmp.ne.s32.totalorder %s141, %s142
    %p151 = scmp.eq.s32.totalorder %s21, 0
    %p152 = por %p150, %p151
    %p153 = scmp.ne.s32.totalorder %s141, %s142
    %p154 = scmp.eq.s32.totalorder %s22, 1
    %p155 = por %p153, %p154
    %p157 = scmp.ne.s32.totalorder %s142, %s156
    %p158 = scmp.eq.s32.totalorder %s22, 0
    %p159 = por %p157, %p158
    %s161 = sadd.s32 %s160, 1
    %p164 = scmp.eq.s32.totalorder %s16, 1
    %p165 = scmp.ne.s32.totalorder %s160, %s162
    %p166 = scmp.eq.s32.totalorder %s16, 0
    %p167 = por %p165, %p166
    %p168 = scmp.ne.s32.totalorder %s160, %s162
    %p169 = scmp.eq.s32.totalorder %s21, 1
    %p170 = por %p168, %p169
    %p171 = scmp.ne.s32.totalorder %s162, %s163
    %p172 = scmp.eq.s32.totalorder %s21, 0
    %p173 = por %p171, %p172
    %p174 = scmp.ne.s32.totalorder %s162, %s163
    %p175 = scmp.eq.s32.totalorder %s22, 1
    %p176 = por %p174, %p175
    %p178 = scmp.ne.s32.totalorder %s163, %s177
    %p179 = scmp.eq.s32.totalorder %s22, 0
    %p180 = por %p178, %p179
    %s182 = sadd.s32 %s181, 1
    %p185 = scmp.eq.s32.totalorder %s16, 1
    %p186 = scmp.ne.s32.totalorder %s181, %s183
    %p187 = scmp.eq.s32.totalorder %s16, 0
    %p188 = por %p186, %p187
    %p189 = scmp.ne.s32.totalorder %s181, %s183
    %p190 = scmp.eq.s32.totalorder %s21, 1
    %p191 = por %p189, %p190
    %p192 = scmp.ne.s32.totalorder %s183, %s184
    %p193 = scmp.eq.s32.totalorder %s21, 0
    %p194 = por %p192, %p193
    %p195 = scmp.ne.s32.totalorder %s183, %s184
    %p196 = scmp.eq.s32.totalorder %s22, 1
    %p197 = por %p195, %p196
    %p199 = scmp.ne.s32.totalorder %s184, %s198
    %p200 = scmp.eq.s32.totalorder %s22, 0
    %p201 = por %p199, %p200
    %s203 = sadd.s32 %s202, 1
    %p206 = scmp.eq.s32.totalorder %s16, 1
    %p207 = scmp.ne.s32.totalorder %s202, %s204
    %p208 = scmp.eq.s32.totalorder %s16, 0
    %p209 = por %p207, %p208
    %p210 = scmp.ne.s32.totalorder %s202, %s204
    %p211 = scmp.eq.s32.totalorder %s21, 1
    %p212 = por %p210, %p211
    %p213 = scmp.ne.s32.totalorder %s204, %s205
    %p214 = scmp.eq.s32.totalorder %s21, 0
    %p215 = por %p213, %p214
    %p216 = scmp.ne.s32.totalorder %s204, %s205
    %p217 = scmp.eq.s32.totalorder %s22, 1
    %p218 = por %p216, %p217
    %p220 = scmp.ne.s32.totalorder %s205, %s219
    %p221 = scmp.eq.s32.totalorder %s22, 0
    %p222 = por %p220, %p221
    %s224 = sadd.s32 %s223, 1
    %p227 = scmp.eq.s32.totalorder %s16, 1
    %p228 = scmp.ne.s32.totalorder %s223, %s225
    %p229 = scmp.eq.s32.totalorder %s16, 0
    %p230 = por %p228, %p229
    %p231 = scmp.ne.s32.totalorder %s223, %s225
    %p232 = scmp.eq.s32.totalorder %s21, 1
    %p233 = por %p231, %p232
    %p234 = scmp.ne.s32.totalorder %s225, %s226
    %p235 = scmp.eq.s32.totalorder %s21, 0
    %p236 = por %p234, %p235
    %p237 = scmp.ne.s32.totalorder %s225, %s226
    %p238 = scmp.eq.s32.totalorder %s22, 1
    %p239 = por %p237, %p238
    %p241 = scmp.ne.s32.totalorder %s226, %s240
    %p242 = scmp.eq.s32.totalorder %s22, 0
    %p243 = por %p241, %p242
    %s244 = ssub.s32 %s16, %s23
    %p245 = scmp.eq.s32.totalorder %s244, 0
    %s247 = sadd.s32 %s246, 1
    %s248 = scalar_select %p245, %s246, %s247
    %p251 = pneg %p245
    %p252 = scmp.eq.s32.totalorder %s16, 1
    %p253 = por %p251, %p252
    %p254 = scmp.ne.s32.totalorder %s246, %s249
    %p255 = scmp.eq.s32.totalorder %s16, 0
    %p256 = por %p254, %p255
    %p257 = scmp.ne.s32.totalorder %s246, %s249
    %p258 = scmp.eq.s32.totalorder %s21, 1
    %p259 = por %p257, %p258
    %p260 = scmp.ne.s32.totalorder %s249, %s250
    %p261 = scmp.eq.s32.totalorder %s21, 0
    %p262 = por %p260, %p261
    %p263 = scmp.ne.s32.totalorder %s249, %s250
    %p264 = scmp.eq.s32.totalorder %s22, 1
    %p265 = por %p263, %p264
    %p267 = scmp.ne.s32.totalorder %s250, %s266
    %p268 = scmp.eq.s32.totalorder %s22, 0
    %p269 = por %p267, %p268
    %p270 = scmp.le.s32.totalorder 1, %s16
    %p271 = scmp.lt.s32.totalorder %s16, 3
    %p272 = pnand %p270, %p271
    %p273 = pneg %p272
    // Predicated region
    $region9: #{encoder_forward.18} parent=5 // pred_check
      _
    $region10: #{encoder_forward.18} parent=5 // pred_check_branch
      %275 = sbr.rel (%p272) target = $region12
    $region11: #{encoder_forward.18} parent=5 // pred_region
      %s276 = ssub.s32 %s16, 1
      // Predicated region
      $region13: #{encoder_forward.18} parent=11 // pred_check
        %p277 = pneg %p89
      $region14: #{encoder_forward.18} parent=11 // pred_check_branch
        %279 = sbr.rel (%p277) target = $region16
      $region15: #{encoder_forward.18} parent=11 // pred_region
        _
      $region16: #{encoder_forward.18} parent=11 // pred_fallthru
        _
      // Predicated region
      $region17: #{encoder_forward.18} parent=11 // pred_check
        %p280 = pneg %p110
      $region18: #{encoder_forward.18} parent=11 // pred_check_branch
        %282 = sbr.rel (%p280) target = $region20
      $region19: #{encoder_forward.18} parent=11 // pred_region
        _
      $region20: #{encoder_forward.18} parent=11 // pred_fallthru
        _
      // Predicated region
      $region21: #{encoder_forward.18} parent=11 // pred_check
        %p283 = pneg %p131
      $region22: #{encoder_forward.18} parent=11 // pred_check_branch
        %285 = sbr.rel (%p283) target = $region24
      $region23: #{encoder_forward.18} parent=11 // pred_region
        _
      $region24: #{encoder_forward.18} parent=11 // pred_fallthru
        _
      // Predicated region
      $region25: #{encoder_forward.18} parent=11 // pred_check
        %p286 = pneg %p152
      $region26: #{encoder_forward.18} parent=11 // pred_check_branch
        %288 = sbr.rel (%p286) target = $region28
      $region27: #{encoder_forward.18} parent=11 // pred_region
        _
      $region28: #{encoder_forward.18} parent=11 // pred_fallthru
        _
      // Predicated region
      $region29: #{encoder_forward.18} parent=11 // pred_check
        %p289 = pneg %p173
      $region30: #{encoder_forward.18} parent=11 // pred_check_branch
        %291 = sbr.rel (%p289) target = $region32
      $region31: #{encoder_forward.18} parent=11 // pred_region
        _
      $region32: #{encoder_forward.18} parent=11 // pred_fallthru
        _
      // Predicated region
      $region33: #{encoder_forward.18} parent=11 // pred_check
        %p292 = pneg %p194
      $region34: #{encoder_forward.18} parent=11 // pred_check_branch
        %294 = sbr.rel (%p292) target = $region36
      $region35: #{encoder_forward.18} parent=11 // pred_region
        _
      $region36: #{encoder_forward.18} parent=11 // pred_fallthru
        _
      // Predicated region
      $region37: #{encoder_forward.18} parent=11 // pred_check
        %p295 = pneg %p215
      $region38: #{encoder_forward.18} parent=11 // pred_check_branch
        %297 = sbr.rel (%p295) target = $region40
      $region39: #{encoder_forward.18} parent=11 // pred_region
        _
      $region40: #{encoder_forward.18} parent=11 // pred_fallthru
        _
      // Predicated region
      $region41: #{encoder_forward.18} parent=11 // pred_check
        %p298 = pneg %p236
      $region42: #{encoder_forward.18} parent=11 // pred_check_branch
        %300 = sbr.rel (%p298) target = $region44
      $region43: #{encoder_forward.18} parent=11 // pred_region
        _
      $region44: #{encoder_forward.18} parent=11 // pred_fallthru
        _
    $region12: #{encoder_forward.18} parent=5 // pred_fallthru
      _
    %p301 = scmp.lt.s32.totalorder %s16, 2
    // Predicated region
    $region45: #{encoder_forward.18} parent=5 // pred_check
      %p302 = pneg %p301
    $region46: #{encoder_forward.18} parent=5 // pred_check_branch
      %304 = sbr.rel (%p302) target = $region48
    $region47: #{encoder_forward.18} parent=5 // pred_region
      // Predicated region
      $region49: #{encoder_forward.18} parent=47 // pred_check
        %p305 = pneg %p36
      $region50: #{encoder_forward.18} parent=47 // pred_check_branch
        %307 = sbr.rel (%p305) target = $region52
      $region51: #{encoder_forward.18} parent=47 // pred_region
        %p308 = scmp.lt.s32.totalorder %s16, 1
        %s309 = scalar_select %p308, %s16, 1
        %s310 = smul.addr %s309, 2
        %s311 = smul.addr %s310, 8
        %s312 = scalar_lea.vmem %s0, %s311
      $region52: #{encoder_forward.18} parent=47 // pred_fallthru
        _
      // Predicated region
      $region53: #{encoder_forward.18} parent=47 // pred_check
        %p313 = pneg %p62
      $region54: #{encoder_forward.18} parent=47 // pred_check_branch
        %315 = sbr.rel (%p313) target = $region56
      $region55: #{encoder_forward.18} parent=47 // pred_region
        %p316 = scmp.lt.s32.totalorder %s16, 1
        %s317 = scalar_select %p316, %s16, 1
        %s318 = smul.addr %s317, 8
        %s319 = scalar_lea.vmem %s1, %s318
      $region56: #{encoder_forward.18} parent=47 // pred_fallthru
        _
    $region48: #{encoder_forward.18} parent=5 // pred_fallthru
      _
    %p320 = scmp.le.s32.totalorder 1, %s16
    %p321 = scmp.lt.s32.totalorder %s16, 3
    %p322 = pnand %p320, %p321
    %p323 = pneg %p322
    // Predicated region
    $region57: #{encoder_forward.18} parent=5 // pred_check
      _
    $region58: #{encoder_forward.18} parent=5 // pred_check_branch
      %325 = sbr.rel (%p322) target = $region60
    $region59: #{encoder_forward.18} parent=5 // pred_region
      %s326 = ssub.s32 %s16, 1
      %p327 = scmp.lt.s32.totalorder %s21, 1
      %s328 = scalar_select %p327, %s21, 1
      %s329 = smul.addr %s328, 2
      %s330 = smul.addr %s329, 8
      %s331 = scalar_lea.vmem %s0, %s330
      %p332 = pneg %p42
      %p333 = pneg %p39
      %p334 = scmp.lt.s32.totalorder %s21, 1
      %s335 = scalar_select %p334, %s21, 1
      %s336 = smul.addr %s335, 8
      %s337 = scalar_lea.vmem %s1, %s336
      %p338 = pneg %p68
      %p339 = pneg %p65
      %p340 = pneg %p89
      %p341 = pneg %p86
      %p342 = pneg %p110
      %p343 = pneg %p107
      %p344 = pneg %p131
      %p345 = pneg %p128
      %p346 = pneg %p152
      %p347 = pneg %p149
      %p348 = pneg %p173
      %p349 = pneg %p170
      %p350 = pneg %p194
      %p351 = pneg %p191
      %p352 = pneg %p215
      %p353 = pneg %p212
      %p354 = pneg %p236
      %p355 = pneg %p233
      %p356 = pneg %p262
      %p357 = pneg %p259
      %p358 = scmp.lt.s32.totalorder %s21, 1
      %s359 = scalar_select %p358, %s21, 1
      %s360 = smul.addr %s359, 2
      %s361 = smul.addr %s360, 8
      %s362 = scalar_lea.vmem %s10, %s361
      %p363 = scmp.lt.s32.totalorder %s21, 1
      %s364 = scalar_select %p363, %s21, 1
      %s365 = smul.addr %s364, 2
      %s366 = smul.addr %s365, 8
      %s367 = scalar_lea.vmem %s0, %s366
      %p368 = scmp.lt.s32.totalorder %s21, 1
      %s369 = scalar_select %p368, %s21, 1
      %s370 = smul.addr %s369, 8
      %s371 = scalar_lea.vmem %s1, %s370
      %p372 = scmp.lt.s32.totalorder %s21, 1
      %s373 = scalar_select %p372, %s21, 1
      %s374 = smul.addr %s373, 2
      %s375 = smul.addr %s374, 8
      %s376 = scalar_lea.vmem %s10, %s375
      %v378 = vld [vmem:[%s367] sm:$0xff]
      %v379 = vld [vmem:[%s367 + $0x8] sm:$0xff]
      %v380 = vld [vmem:[%s371] sm:$0xff]
      %v381 = vld [vmem:[%s2] sm:$0xff]
      %v382 = vld [vmem:[%s2 + $0x8] sm:$0xff]
      %v383 = vld [vmem:[%s2 + $0x10] sm:$0xff]
      %v384 = vld [vmem:[%s2 + $0x18] sm:$0xff]
      %v385 = vld [vmem:[%s2 + $0x20] sm:$0xff]
      %v386 = vld [vmem:[%s2 + $0x28] sm:$0xff]
      %v387 = vld [vmem:[%s2 + $0x30] sm:$0xff]
      %v388 = vld [vmem:[%s2 + $0x38] sm:$0xff]
      %v389 = vpack.c.bf16 %v379, %v378
      %v390 = vpack.c.bf16 %v382, %v381
      %v391 = vpack.c.bf16 %v384, %v383
      %v392 = vpack.c.bf16 %v386, %v385
      %v393 = vpack.c.bf16 %v388, %v387
      %v394 = vld [vmem:[%s3] sm:$0x1]
      %v396 = vperm.slane %v394, 0
      %vm398 = vcmask 523264
      %v400 = vsel %vm398, %v389, 0
      %402 = vmatpush.bf16.msra.mxu0 0
      %403 = vmatpush.bf16.msra.mxu0 0
      %404 = vmatpush.bf16.msra.mxu0 0
      %405 = vmatpush.bf16.msra.mxu0 0
      %406 = vmatpush.bf16.msra.mxu0 %v393
      %407 = vmatpush.bf16.msra.mxu0 %v392
      %408 = vmatpush.bf16.msra.mxu0 %v391
      %409 = vmatpush.bf16.msra.mxu0 %v390
      %410 = vmatmul.bf16.gmra.mxu0 %v400
      %v411 = vpop.f32.mrf.mxu0
      %v412 = vadd.f32 %v396, %v411
      %v413 = vpop.f32.mrf.mxu0
      %v414 = vadd.f32 %v396, %v413
      %415 = vdwg.mxu0
      %v416 = vld [vmem:[%s4] sm:$0xff]
      %v417 = vld [vmem:[%s4 + $0x8] sm:$0xff]
      %v418 = vld [vmem:[%s4 + $0x10] sm:$0xff]
      %v419 = vld [vmem:[%s4 + $0x18] sm:$0xff]
      %v420 = vld [vmem:[%s4 + $0x20] sm:$0xff]
      %v421 = vld [vmem:[%s4 + $0x28] sm:$0xff]
      %v422 = vld [vmem:[%s4 + $0x30] sm:$0xff]
      %v423 = vld [vmem:[%s4 + $0x38] sm:$0xff]
      %v424 = vpack.c.bf16 %v380, %v380
      %v425 = vpack.c.bf16 %v417, %v416
      %v426 = vpack.c.bf16 %v419, %v418
      %v427 = vpack.c.bf16 %v421, %v420
      %v428 = vpack.c.bf16 %v423, %v422
      %v429 = vld [vmem:[%s5] sm:$0x1]
      %v431 = vperm.slane %v429, 0
      %v434 = vsel %vm398, %v424, 0
      %436 = vmatpush.bf16.msra.mxu0 0
      %437 = vmatpush.bf16.msra.mxu0 0
      %438 = vmatpush.bf16.msra.mxu0 0
      %439 = vmatpush.bf16.msra.mxu0 0
      %440 = vmatpush.bf16.msra.mxu0 %v428
      %441 = vmatpush.bf16.msra.mxu0 %v427
      %442 = vmatpush.bf16.msra.mxu0 %v426
      %443 = vmatpush.bf16.msra.mxu0 %v425
      %444 = vmatmul.bf16.gmra.mxu0 %v434
      %v445 = vpop.f32.mrf.mxu0
      %v446 = vadd.f32 %v431, %v445
      %v447 = vpop.f32.mrf.mxu0
      %448 = vdwg.mxu0
      %v449 = vld [vmem:[%s7] sm:$0x1]
      %v451 = vperm.slane %v449, 0
      %v453 = vadd.f32 %v451, 0.0
      %vm454 = vcmask 130048
      %v456 = vsel %vm454, %v412, 0
      %v459 = vsel %vm454, %v414, 0
      %v462 = vsel %vm454, %v446, 0
      %464 = vmatpush.xpose.msra.mxu0 0.0
      %465 = vmatpush.xpose.msra.mxu0 0.0
      %466 = vmatpush.xpose.msra.mxu0 0.0
      %467 = vmatpush.xpose.msra.mxu0 0.0
      %468 = vmatpush.xpose.msra.mxu0 0.0
      %469 = vmatpush.xpose.msra.mxu0 0.0
      %470 = vmatpush.xpose.msra.mxu0 0.0
      %471 = vmatpush.xpose.msra.mxu0 0.0
      %472 = vmatpush.xpose.msra.mxu0 0.0
      %473 = vmatpush.xpose.msra.mxu0 0.0
      %474 = vmatpush.xpose.msra.mxu0 0.0
      %475 = vmatpush.xpose.msra.mxu0 0.0
      %476 = vmatpush.xpose.msra.mxu0 0.0
      %477 = vmatpush.xpose.msra.mxu0 0.0
      %478 = vmatpush.xpose.msra.mxu0 0.0
      %479 = vmatpush.xpose.msra.mxu0 %v462
      %480 = vmatmul.f32.gmra.mxu0 %v456
      %v481 = vpop.f32.mrf.mxu0
      %v482 = vadd.f32 0.0, %v481
      %483 = vmatmul.f32.gmra.mxu0 %v459
      %v484 = vpop.f32.mrf.mxu0
      %v485 = vadd.f32 0.0, %v484
      %486 = vdwg.mxu0
      %v487 = vmul.f32 %v482, 0.25
      %v488 = vmul.f32 %v485, 0.25
      %vm489 = vcmask 64512
      %v490 = vsel %vm489, %v487, -inf
      %491 = vmax.xlane.f32.xlu0 %v490
      %v492 = vpop.xlane.xlu0 %491
      %v493 = vsel %vm489, %v488, -inf
      %494 = vmax.xlane.f32.xlu0 %v493
      %v495 = vpop.xlane.xlu0 %494
      %v496 = vsub.f32 %v487, %v492
      %v497 = vsub.f32 %v488, %v495
      %v498 = vmul.f32 %v496, 1.442695
      %v499 = vpow.pop %v498
      %v500 = vmul.f32 %v497, 1.442695
      %v501 = vpow.pop %v500
      %v502 = vsel %vm489, %v499, 0.0
      %503 = vadd.xlane.f32.xlu0 %v502
      %v504 = vpop.xlane.xlu0 %503
      %v505 = vsel %vm489, %v501, 0.0
      %506 = vadd.xlane.f32.xlu0 %v505
      %v507 = vpop.xlane.xlu0 %506
      %v508 = vrcp.pop %v504
      %v509 = vrcp.pop %v507
      %v510 = vmul.f32 %v499, %v508
      %v511 = vmul.f32 %v501, %v509
      %512 = vrot.lane.b32.xlu0 %v446, 64
      %v513 = vpop.permute.xlu0 %512
      %v516 = vsel %vm489, %v510, 0
      %v519 = vsel %vm489, %v511, 0
      %521 = vmatpush.msra.mxu0 0.0
      %522 = vmatpush.msra.mxu0 0.0
      %523 = vmatpush.msra.mxu0 0.0
      %524 = vmatpush.msra.mxu0 0.0
      %525 = vmatpush.msra.mxu0 0.0
      %526 = vmatpush.msra.mxu0 0.0
      %527 = vmatpush.msra.mxu0 0.0
      %528 = vmatpush.msra.mxu0 0.0
      %529 = vmatpush.msra.mxu0 0.0
      %530 = vmatpush.msra.mxu0 0.0
      %531 = vmatpush.msra.mxu0 0.0
      %532 = vmatpush.msra.mxu0 0.0
      %533 = vmatpush.msra.mxu0 0.0
      %534 = vmatpush.msra.mxu0 0.0
      %535 = vmatpush.msra.mxu0 0.0
      %536 = vmatpush.msra.mxu0 %v513
      %537 = vmatmul.f32.gmra.mxu0 %v516
      %v538 = vpop.f32.mrf.mxu0
      %v539 = vadd.f32 0.0, %v538
      %540 = vmatmul.f32.gmra.mxu0 %v519
      %v541 = vpop.f32.mrf.mxu0
      %v542 = vadd.f32 0.0, %v541
      %543 = vdwg.mxu0
      %v544 = vld [vmem:[%s6] sm:$0xff]
      %v545 = vld [vmem:[%s6 + $0x8] sm:$0xff]
      %v546 = vpack.c.bf16 %v542, %v539
      %v547 = vpack.c.bf16 %v545, %v544
      %v549 = vsel %vm454, %v546, 0
      %551 = vmatpush.bf16.msra.mxu0 0
      %552 = vmatpush.bf16.msra.mxu0 0
      %553 = vmatpush.bf16.msra.mxu0 0
      %554 = vmatpush.bf16.msra.mxu0 0
      %555 = vmatpush.bf16.msra.mxu0 0
      %556 = vmatpush.bf16.msra.mxu0 0
      %557 = vmatpush.bf16.msra.mxu0 0
      %558 = vmatpush.bf16.msra.mxu0 %v547
      %559 = vmatmul.bf16.gmra.mxu0 %v549
      %v560 = vpop.f32.mrf.mxu0
      %v561 = vadd.f32 0.0, %v560
      %v562 = vpop.f32.mrf.mxu0
      %v563 = vadd.f32 0.0, %v562
      %564 = vdwg.mxu0
      %v565 = vadd.f32 %v453, %v561
      %v566 = vadd.f32 %v453, %v563
      %567 = vrot.lane.b32.xlu0 %v412, 112
      %v568 = vpop.permute.xlu0 %567
      %569 = vrot.lane.b32.xlu0 %v414, 112
      %v570 = vpop.permute.xlu0 %569
      %571 = vrot.lane.b32.xlu0 %v446, 112
      %v572 = vpop.permute.xlu0 %571
      %v573 = vsel %vm454, %v568, 0
      %v575 = vsel %vm454, %v570, 0
      %v577 = vsel %vm454, %v572, 0
      %579 = vmatpush.xpose.msra.mxu0 0.0
      %580 = vmatpush.xpose.msra.mxu0 0.0
      %581 = vmatpush.xpose.msra.mxu0 0.0
      %582 = vmatpush.xpose.msra.mxu0 0.0
      %583 = vmatpush.xpose.msra.mxu0 0.0
      %584 = vmatpush.xpose.msra.mxu0 0.0
      %585 = vmatpush.xpose.msra.mxu0 0.0
      %586 = vmatpush.xpose.msra.mxu0 0.0
      %587 = vmatpush.xpose.msra.mxu0 0.0
      %588 = vmatpush.xpose.msra.mxu0 0.0
      %589 = vmatpush.xpose.msra.mxu0 0.0
      %590 = vmatpush.xpose.msra.mxu0 0.0
      %591 = vmatpush.xpose.msra.mxu0 0.0
      %592 = vmatpush.xpose.msra.mxu0 0.0
      %593 = vmatpush.xpose.msra.mxu0 0.0
      %594 = vmatpush.xpose.msra.mxu0 %v577
      %595 = vmatmul.f32.gmra.mxu0 %v573
      %v596 = vpop.f32.mrf.mxu0
      %v597 = vadd.f32 0.0, %v596
      %598 = vmatmul.f32.gmra.mxu0 %v575
      %v599 = vpop.f32.mrf.mxu0
      %v600 = vadd.f32 0.0, %v599
      %601 = vdwg.mxu0
      %v602 = vmul.f32 %v597, 0.25
      %v603 = vmul.f32 %v600, 0.25
      %v604 = vsel %vm489, %v602, -inf
      %605 = vmax.xlane.f32.xlu0 %v604
      %v606 = vpop.xlane.xlu0 %605
      %v607 = vsel %vm489, %v603, -inf
      %608 = vmax.xlane.f32.xlu0 %v607
      %v609 = vpop.xlane.xlu0 %608
      %v610 = vsub.f32 %v602, %v606
      %v611 = vsub.f32 %v603, %v609
      %v612 = vmul.f32 %v610, 1.442695
      %v613 = vpow.pop %v612
      %v614 = vmul.f32 %v611, 1.442695
      %v615 = vpow.pop %v614
      %v616 = vsel %vm489, %v613, 0.0
      %617 = vadd.xlane.f32.xlu0 %v616
      %v618 = vpop.xlane.xlu0 %617
      %v619 = vsel %vm489, %v615, 0.0
      %620 = vadd.xlane.f32.xlu0 %v619
      %v621 = vpop.xlane.xlu0 %620
      %v622 = vrcp.pop %v618
      %v623 = vrcp.pop %v621
      %v624 = vmul.f32 %v613, %v622
      %v625 = vmul.f32 %v615, %v623
      %626 = vrot.lane.b32.xlu0 %v446, 48
      %v627 = vpop.permute.xlu0 %626
      %v630 = vsel %vm489, %v624, 0
      %v633 = vsel %vm489, %v625, 0
      %635 = vmatpush.msra.mxu0 0.0
      %636 = vmatpush.msra.mxu0 0.0
      %637 = vmatpush.msra.mxu0 0.0
      %638 = vmatpush.msra.mxu0 0.0
      %639 = vmatpush.msra.mxu0 0.0
      %640 = vmatpush.msra.mxu0 0.0
      %641 = vmatpush.msra.mxu0 0.0
      %642 = vmatpush.msra.mxu0 0.0
      %643 = vmatpush.msra.mxu0 0.0
      %644 = vmatpush.msra.mxu0 0.0
      %645 = vmatpush.msra.mxu0 0.0
      %646 = vmatpush.msra.mxu0 0.0
      %647 = vmatpush.msra.mxu0 0.0
      %648 = vmatpush.msra.mxu0 0.0
      %649 = vmatpush.msra.mxu0 0.0
      %650 = vmatpush.msra.mxu0 %v627
      %651 = vmatmul.f32.gmra.mxu0 %v630
      %v652 = vpop.f32.mrf.mxu0
      %v653 = vadd.f32 0.0, %v652
      %654 = vmatmul.f32.gmra.mxu0 %v633
      %v655 = vpop.f32.mrf.mxu0
      %v656 = vadd.f32 0.0, %v655
      %657 = vdwg.mxu0
      %v658 = vld [vmem:[%s6 + $0x10] sm:$0xff]
      %v659 = vld [vmem:[%s6 + $0x18] sm:$0xff]
      %v660 = vpack.c.bf16 %v656, %v653
      %v661 = vpack.c.bf16 %v659, %v658
      %v663 = vsel %vm454, %v660, 0
      %665 = vmatpush.bf16.msra.mxu0 0
      %666 = vmatpush.bf16.msra.mxu0 0
      %667 = vmatpush.bf16.msra.mxu0 0
      %668 = vmatpush.bf16.msra.mxu0 0
      %669 = vmatpush.bf16.msra.mxu0 0
      %670 = vmatpush.bf16.msra.mxu0 0
      %671 = vmatpush.bf16.msra.mxu0 0
      %672 = vmatpush.bf16.msra.mxu0 %v661
      %673 = vmatmul.bf16.gmra.mxu0 %v663
      %v674 = vpop.f32.mrf.mxu0
      %v675 = vadd.f32 0.0, %v674
      %v676 = vpop.f32.mrf.mxu0
      %v677 = vadd.f32 0.0, %v676
      %678 = vdwg.mxu0
      %v679 = vadd.f32 %v565, %v675
      %v680 = vadd.f32 %v566, %v677
      %681 = vrot.lane.b32.xlu0 %v412, 96
      %v682 = vpop.permute.xlu0 %681
      %683 = vrot.lane.b32.xlu0 %v414, 96
      %v684 = vpop.permute.xlu0 %683
      %685 = vrot.lane.b32.xlu0 %v446, 96
      %v686 = vpop.permute.xlu0 %685
      %v687 = vsel %vm454, %v682, 0
      %v689 = vsel %vm454, %v684, 0
      %v691 = vsel %vm454, %v686, 0
      %693 = vmatpush.xpose.msra.mxu0 0.0
      %694 = vmatpush.xpose.msra.mxu0 0.0
      %695 = vmatpush.xpose.msra.mxu0 0.0
      %696 = vmatpush.xpose.msra.mxu0 0.0
      %697 = vmatpush.xpose.msra.mxu0 0.0
      %698 = vmatpush.xpose.msra.mxu0 0.0
      %699 = vmatpush.xpose.msra.mxu0 0.0
      %700 = vmatpush.xpose.msra.mxu0 0.0
      %701 = vmatpush.xpose.msra.mxu0 0.0
      %702 = vmatpush.xpose.msra.mxu0 0.0
      %703 = vmatpush.xpose.msra.mxu0 0.0
      %704 = vmatpush.xpose.msra.mxu0 0.0
      %705 = vmatpush.xpose.msra.mxu0 0.0
      %706 = vmatpush.xpose.msra.mxu0 0.0
      %707 = vmatpush.xpose.msra.mxu0 0.0
      %708 = vmatpush.xpose.msra.mxu0 %v691
      %709 = vmatmul.f32.gmra.mxu0 %v687
      %v710 = vpop.f32.mrf.mxu0
      %v711 = vadd.f32 0.0, %v710
      %712 = vmatmul.f32.gmra.mxu0 %v689
      %v713 = vpop.f32.mrf.mxu0
      %v714 = vadd.f32 0.0, %v713
      %715 = vdwg.mxu0
      %v716 = vmul.f32 %v711, 0.25
      %v717 = vmul.f32 %v714, 0.25
      %v718 = vsel %vm489, %v716, -inf
      %719 = vmax.xlane.f32.xlu0 %v718
      %v720 = vpop.xlane.xlu0 %719
      %v721 = vsel %vm489, %v717, -inf
      %722 = vmax.xlane.f32.xlu0 %v721
      %v723 = vpop.xlane.xlu0 %722
      %v724 = vsub.f32 %v716, %v720
      %v725 = vsub.f32 %v717, %v723
      %v726 = vmul.f32 %v724, 1.442695
      %v727 = vpow.pop %v726
      %v728 = vmul.f32 %v725, 1.442695
      %v729 = vpow.pop %v728
      %v730 = vsel %vm489, %v727, 0.0
      %731 = vadd.xlane.f32.xlu0 %v730
      %v732 = vpop.xlane.xlu0 %731
      %v733 = vsel %vm489, %v729, 0.0
      %734 = vadd.xlane.f32.xlu0 %v733
      %v735 = vpop.xlane.xlu0 %734
      %v736 = vrcp.pop %v732
      %v737 = vrcp.pop %v735
      %v738 = vmul.f32 %v727, %v736
      %v739 = vmul.f32 %v729, %v737
      %740 = vrot.lane.b32.xlu0 %v446, 32
      %v741 = vpop.permute.xlu0 %740
      %v744 = vsel %vm489, %v738, 0
      %v747 = vsel %vm489, %v739, 0
      %749 = vmatpush.msra.mxu0 0.0
      %750 = vmatpush.msra.mxu0 0.0
      %751 = vmatpush.msra.mxu0 0.0
      %752 = vmatpush.msra.mxu0 0.0
      %753 = vmatpush.msra.mxu0 0.0
      %754 = vmatpush.msra.mxu0 0.0
      %755 = vmatpush.msra.mxu0 0.0
      %756 = vmatpush.msra.mxu0 0.0
      %757 = vmatpush.msra.mxu0 0.0
      %758 = vmatpush.msra.mxu0 0.0
      %759 = vmatpush.msra.mxu0 0.0
      %760 = vmatpush.msra.mxu0 0.0
      %761 = vmatpush.msra.mxu0 0.0
      %762 = vmatpush.msra.mxu0 0.0
      %763 = vmatpush.msra.mxu0 0.0
      %764 = vmatpush.msra.mxu0 %v741
      %765 = vmatmul.f32.gmra.mxu0 %v744
      %v766 = vpop.f32.mrf.mxu0
      %v767 = vadd.f32 0.0, %v766
      %768 = vmatmul.f32.gmra.mxu0 %v747
      %v769 = vpop.f32.mrf.mxu0
      %v770 = vadd.f32 0.0, %v769
      %771 = vdwg.mxu0
      %v772 = vld [vmem:[%s6 + $0x20] sm:$0xff]
      %v773 = vld [vmem:[%s6 + $0x28] sm:$0xff]
      %v774 = vpack.c.bf16 %v770, %v767
      %v775 = vpack.c.bf16 %v773, %v772
      %v777 = vsel %vm454, %v774, 0
      %779 = vmatpush.bf16.msra.mxu0 0
      %780 = vmatpush.bf16.msra.mxu0 0
      %781 = vmatpush.bf16.msra.mxu0 0
      %782 = vmatpush.bf16.msra.mxu0 0
      %783 = vmatpush.bf16.msra.mxu0 0
      %784 = vmatpush.bf16.msra.mxu0 0
      %785 = vmatpush.bf16.msra.mxu0 0
      %786 = vmatpush.bf16.msra.mxu0 %v775
      %787 = vmatmul.bf16.gmra.mxu0 %v777
      %v788 = vpop.f32.mrf.mxu0
      %v789 = vadd.f32 0.0, %v788
      %v790 = vpop.f32.mrf.mxu0
      %v791 = vadd.f32 0.0, %v790
      %792 = vdwg.mxu0
      %v793 = vadd.f32 %v679, %v789
      %v794 = vadd.f32 %v680, %v791
      %795 = vrot.lane.b32.xlu0 %v412, 80
      %v796 = vpop.permute.xlu0 %795
      %797 = vrot.lane.b32.xlu0 %v414, 80
      %v798 = vpop.permute.xlu0 %797
      %799 = vrot.lane.b32.xlu0 %v446, 80
      %v800 = vpop.permute.xlu0 %799
      %v801 = vsel %vm454, %v796, 0
      %v803 = vsel %vm454, %v798, 0
      %v805 = vsel %vm454, %v800, 0
      %807 = vmatpush.xpose.msra.mxu0 0.0
      %808 = vmatpush.xpose.msra.mxu0 0.0
      %809 = vmatpush.xpose.msra.mxu0 0.0
      %810 = vmatpush.xpose.msra.mxu0 0.0
      %811 = vmatpush.xpose.msra.mxu0 0.0
      %812 = vmatpush.xpose.msra.mxu0 0.0
      %813 = vmatpush.xpose.msra.mxu0 0.0
      %814 = vmatpush.xpose.msra.mxu0 0.0
      %815 = vmatpush.xpose.msra.mxu0 0.0
      %816 = vmatpush.xpose.msra.mxu0 0.0
      %817 = vmatpush.xpose.msra.mxu0 0.0
      %818 = vmatpush.xpose.msra.mxu0 0.0
      %819 = vmatpush.xpose.msra.mxu0 0.0
      %820 = vmatpush.xpose.msra.mxu0 0.0
      %821 = vmatpush.xpose.msra.mxu0 0.0
      %822 = vmatpush.xpose.msra.mxu0 %v805
      %823 = vmatmul.f32.gmra.mxu0 %v801
      %v824 = vpop.f32.mrf.mxu0
      %v825 = vadd.f32 0.0, %v824
      %826 = vmatmul.f32.gmra.mxu0 %v803
      %v827 = vpop.f32.mrf.mxu0
      %v828 = vadd.f32 0.0, %v827
      %829 = vdwg.mxu0
      %v830 = vmul.f32 %v825, 0.25
      %v831 = vmul.f32 %v828, 0.25
      %v832 = vsel %vm489, %v830, -inf
      %833 = vmax.xlane.f32.xlu0 %v832
      %v834 = vpop.xlane.xlu0 %833
      %v835 = vsel %vm489, %v831, -inf
      %836 = vmax.xlane.f32.xlu0 %v835
      %v837 = vpop.xlane.xlu0 %836
      %v838 = vsub.f32 %v830, %v834
      %v839 = vsub.f32 %v831, %v837
      %v840 = vmul.f32 %v838, 1.442695
      %v841 = vpow.pop %v840
      %v842 = vmul.f32 %v839, 1.442695
      %v843 = vpow.pop %v842
      %v844 = vsel %vm489, %v841, 0.0
      %845 = vadd.xlane.f32.xlu0 %v844
      %v846 = vpop.xlane.xlu0 %845
      %v847 = vsel %vm489, %v843, 0.0
      %848 = vadd.xlane.f32.xlu0 %v847
      %v849 = vpop.xlane.xlu0 %848
      %v850 = vrcp.pop %v846
      %v851 = vrcp.pop %v849
      %v852 = vmul.f32 %v841, %v850
      %v853 = vmul.f32 %v843, %v851
      %854 = vrot.lane.b32.xlu0 %v446, 16
      %v855 = vpop.permute.xlu0 %854
      %v858 = vsel %vm489, %v852, 0
      %v861 = vsel %vm489, %v853, 0
      %863 = vmatpush.msra.mxu0 0.0
      %864 = vmatpush.msra.mxu0 0.0
      %865 = vmatpush.msra.mxu0 0.0
      %866 = vmatpush.msra.mxu0 0.0
      %867 = vmatpush.msra.mxu0 0.0
      %868 = vmatpush.msra.mxu0 0.0
      %869 = vmatpush.msra.mxu0 0.0
      %870 = vmatpush.msra.mxu0 0.0
      %871 = vmatpush.msra.mxu0 0.0
      %872 = vmatpush.msra.mxu0 0.0
      %873 = vmatpush.msra.mxu0 0.0
      %874 = vmatpush.msra.mxu0 0.0
      %875 = vmatpush.msra.mxu0 0.0
      %876 = vmatpush.msra.mxu0 0.0
      %877 = vmatpush.msra.mxu0 0.0
      %878 = vmatpush.msra.mxu0 %v855
      %879 = vmatmul.f32.gmra.mxu0 %v858
      %v880 = vpop.f32.mrf.mxu0
      %v881 = vadd.f32 0.0, %v880
      %882 = vmatmul.f32.gmra.mxu0 %v861
      %v883 = vpop.f32.mrf.mxu0
      %v884 = vadd.f32 0.0, %v883
      %885 = vdwg.mxu0
      %v886 = vld [vmem:[%s6 + $0x30] sm:$0xff]
      %v887 = vld [vmem:[%s6 + $0x38] sm:$0xff]
      %v888 = vpack.c.bf16 %v884, %v881
      %v889 = vpack.c.bf16 %v887, %v886
      %v891 = vsel %vm454, %v888, 0
      %893 = vmatpush.bf16.msra.mxu0 0
      %894 = vmatpush.bf16.msra.mxu0 0
      %895 = vmatpush.bf16.msra.mxu0 0
      %896 = vmatpush.bf16.msra.mxu0 0
      %897 = vmatpush.bf16.msra.mxu0 0
      %898 = vmatpush.bf16.msra.mxu0 0
      %899 = vmatpush.bf16.msra.mxu0 0
      %900 = vmatpush.bf16.msra.mxu0 %v889
      %901 = vmatmul.bf16.gmra.mxu0 %v891
      %v902 = vpop.f32.mrf.mxu0
      %v903 = vadd.f32 0.0, %v902
      %v904 = vpop.f32.mrf.mxu0
      %v905 = vadd.f32 0.0, %v904
      %906 = vdwg.mxu0
      %v907 = vadd.f32 %v793, %v903
      %v908 = vadd.f32 %v794, %v905
      %v909 = vadd.f32 %v907, %v378
      %v910 = vadd.f32 %v908, %v379
      %v911 = vld [vmem:[%s8] sm:$0x1]
      %v912 = vld [vmem:[%s9] sm:$0x1]
      %v913 = vsel %vm398, %v909, 0.0
      %914 = vadd.xlane.f32.xlu0 %v913
      %v915 = vpop.xlane.xlu0 %914
      %v916 = vsel %vm398, %v910, 0.0
      %917 = vadd.xlane.f32.xlu0 %v916
      %v918 = vpop.xlane.xlu0 %917
      %v919 = vrcp.pop 64.0
      %v920 = vmul.f32 64.0, %v919
      %v921 = vsub.f32 1.0, %v920
      %v922 = vmul.f32 %v919, %v921
      %v923 = vadd.f32 %v919, %v922
      %vm924 = vweird.f32 %v919
      %v925 = vsel %vm924, %v919, %v923
      %v926 = vmul.f32 %v915, %v925
      %v927 = vmul.f32 %v918, %v925
      %v928 = vsub.f32 %v909, %v926
      %v929 = vsub.f32 %v910, %v927
      %v930 = vmul.f32 %v928, %v928
      %v931 = vmul.f32 %v929, %v929
      %v932 = vsel %vm398, %v930, 0.0
      %933 = vadd.xlane.f32.xlu0 %v932
      %v934 = vpop.xlane.xlu0 %933
      %v935 = vsel %vm398, %v931, 0.0
      %936 = vadd.xlane.f32.xlu0 %v935
      %v937 = vpop.xlane.xlu0 %936
      %v938 = vmul.f32 %v934, %v925
      %v939 = vmul.f32 %v937, %v925
      %v940 = vadd.f32 %v938, 1e-05
      %v941 = vadd.f32 %v939, 1e-05
      %v942 = vrsqrt.pop %v940
      %v943 = vmul.f32 %v942, %v940
      %v944 = vmul.f32 %v943, %v942
      %v945 = vmul.f32 0.5, %v944
      %v946 = vsub.f32 1.5, %v945
      %v947 = vmul.f32 %v942, %v946
      %vm948 = vweird.f32 %v940
      %vm949 = vweird.f32 %v942
      %vm950 = vmor %vm948, %vm949
      %v951 = vsel %vm950, %v942, %v947
      %v952 = vrsqrt.pop %v941
      %v953 = vmul.f32 %v952, %v941
      %v954 = vmul.f32 %v953, %v952
      %v955 = vmul.f32 0.5, %v954
      %v956 = vsub.f32 1.5, %v955
      %v957 = vmul.f32 %v952, %v956
      %vm958 = vweird.f32 %v941
      %vm959 = vweird.f32 %v952
      %vm960 = vmor %vm958, %vm959
      %v961 = vsel %vm960, %v952, %v957
      %v962 = vmul.f32 %v928, %v951
      %v963 = vmul.f32 %v929, %v961
      %v965 = vperm.slane %v911, 0
      %v967 = vmul.f32 %v962, %v965
      %v968 = vmul.f32 %v963, %v965
      %v970 = vperm.slane %v912, 0
      %v972 = vadd.f32 %v967, %v970
      %v973 = vadd.f32 %v968, %v970
      %974 = vst.msk [vmem:[%s376] sm:$0xff] %vm398, %v972
      %975 = vst.msk [vmem:[%s376 + $0x8] sm:$0xff] %vm398, %v973
      %p976 = scmp.lt.s32.totalorder %s21, 1
      %s977 = scalar_select %p976, %s21, 1
      %s978 = smul.addr %s977, 2
      %s979 = smul.addr %s978, 8
      %s980 = scalar_lea.vmem %s10, %s979
      // Predicated region
      $region61: #{encoder_forward.18} parent=59 // pred_check
        %p981 = pneg %p259
      $region62: #{encoder_forward.18} parent=59 // pred_check_branch
        %983 = sbr.rel (%p981) target = $region64
      $region63: #{encoder_forward.18} parent=59 // pred_region
        _
      $region64: #{encoder_forward.18} parent=59 // pred_fallthru
        _
    $region60: #{encoder_forward.18} parent=5 // pred_fallthru
      _
    %p984 = scmp.le.s32.totalorder 2, %s16
    // Predicated region
    $region65: #{encoder_forward.18} parent=5 // pred_check
      %p985 = pneg %p984
    $region66: #{encoder_forward.18} parent=5 // pred_check_branch
      %987 = sbr.rel (%p985) target = $region68
    $region67: #{encoder_forward.18} parent=5 // pred_region
      %s988 = ssub.s32 %s16, 2
      // Predicated region
      $region69: #{encoder_forward.18} parent=67 // pred_check
        %p989 = pneg %p265
      $region70: #{encoder_forward.18} parent=67 // pred_check_branch
        %991 = sbr.rel (%p989) target = $region72
      $region71: #{encoder_forward.18} parent=67 // pred_region
        %p992 = scmp.lt.s32.totalorder %s22, 1
        %s993 = scalar_select %p992, %s22, 1
        %s994 = smul.addr %s993, 2
        %s995 = smul.addr %s994, 8
        %s996 = scalar_lea.vmem %s10, %s995
      $region72: #{encoder_forward.18} parent=67 // pred_fallthru
        _
    $region68: #{encoder_forward.18} parent=5 // pred_fallthru
      _
  $region6: #{encoder_forward.18} parent=0 // loop_footer
    %s20 = sadd.s32 1, %s16
  $region7: #{encoder_forward.18} parent=0 // loop_footer_branch
    %15 = sbr.rel target = $region3
  $region8: #{encoder_forward.18} parent=0 // loop_exit
    _

// kernel: encoder_forward.23
$region0: #{encoder_forward.23}
  #allocation0 [shape = 'u32[]', space=smem, size = 0x4, offset = 0x4, fixed_abs, tag = 'smem constant byte address 0x4 - core index']
  #allocation1 [shape = 'u32[72,128]{1,0:T(1,128)}', space=vmem, size = 0x9000, scoped, tag = 'internal scratch']
  %s0 = inlined_call_operand.vmem [shape: f32[32,64], index: 0, kind: input, shape index: {}]
  %s1 = inlined_call_operand.vmem [shape: f32[32,64], index: 1, kind: input, shape index: {}]
  %s2 = inlined_call_operand.vmem [shape: f32[1,64], index: 2, kind: input, shape index: {}]
  %s3 = inlined_call_operand.vmem [shape: f32[1,64], index: 3, kind: input, shape index: {}]
  %s4 = inlined_call_operand.hbm [shape: f32[32,64], index: 4, kind: output, shape index: {}]
  %s5 = sld [smem:[#allocation0]]
  $region49: #{encoder_forward.23} parent=0
    _
  %s7 = ssub.s32 1, %s5
  %s8 = scalar_select 0, %s7, %s5
  $region1: #{encoder_forward.23} parent=0
    #allocation2 [shape = 'u8[16384]{0}', space=vmem, size = 0x4000, scoped, tag = 'output window, operand 0']
    #allocation3 [shape = 's32[2]{0}', space=sflag, size = 0x8, scoped, tag = 'scoped memory for encoder_forward.23']
    %9 = vsyncpa [#allocation3], 0
    %s10 = scalar_lea.sflag [#allocation3], 1
    %11 = vsyncpa %s10, 0
    loop: start=0, step=1, limit=4
    $region2: #{encoder_forward.23} parent=1 // loop_pre_header
      _
    $region3: #{encoder_forward.23} parent=1 // loop_header
      %s13 = sphi 0, %s17
      %p14 = scmp.ge.s32.totalorder %s13, 4
      %s23 = sphi 0, %s25
      %s26 = sphi 0, %s23
      %s27 = sphi 0, %s26
      %s43 = sphi 0, %s27
      %s49 = sphi 0, %s51
      %s52 = sphi 0, %s49
      %s53 = sphi 0, %s52
      %s69 = sphi 0, %s53
      %s73 = sphi 0, %s73
      %s75 = sphi 0, %s73
      %s76 = sphi 0, %s75
      %s90 = sphi 0, %s76
      %s94 = sphi 0, %s94
      %s96 = sphi 0, %s94
      %s97 = sphi 0, %s96
      %s111 = sphi 0, %s97
      %s117 = sphi 0, %s119
      %s120 = sphi 0, %s117
      %s121 = sphi 0, %s120
      %s137 = sphi 0, %s121
    $region4: #{encoder_forward.23} parent=1 // loop_header_branch
      %16 = sbr.rel (%p14) target = $region8
    $region5: #{encoder_forward.23} parent=1 // loop_body
      %s18 = ssub.s32 %s13, 1
      %s19 = ssub.s32 %s13, 2
      %s20 = sadd.s32 %s13, 1
      %s21 = ssub.s32 %s13, %s20
      %p22 = scmp.eq.s32.totalorder %s21, 0
      %s24 = sadd.s32 %s23, 1
      %s25 = scalar_select %p22, %s23, %s24
      %p28 = pneg %p22
      %p29 = scmp.eq.s32.totalorder %s13, 1
      %p30 = por %p28, %p29
      %p31 = scmp.ne.s32.totalorder %s23, %s26
      %p32 = scmp.eq.s32.totalorder %s13, 0
      %p33 = por %p31, %p32
      %p34 = scmp.ne.s32.totalorder %s23, %s26
      %p35 = scmp.eq.s32.totalorder %s18, 1
      %p36 = por %p34, %p35
      %p37 = scmp.ne.s32.totalorder %s26, %s27
      %p38 = scmp.eq.s32.totalorder %s18, 0
      %p39 = por %p37, %p38
      %p40 = scmp.ne.s32.totalorder %s26, %s27
      %p41 = scmp.eq.s32.totalorder %s19, 1
      %p42 = por %p40, %p41
      %p44 = scmp.ne.s32.totalorder %s27, %s43
      %p45 = scmp.eq.s32.totalorder %s19, 0
      %p46 = por %p44, %p45
      %s47 = ssub.s32 %s13, %s20
      %p48 = scmp.eq.s32.totalorder %s47, 0
      %s50 = sadd.s32 %s49, 1
      %s51 = scalar_select %p48, %s49, %s50
      %p54 = pneg %p48
      %p55 = scmp.eq.s32.totalorder %s13, 1
      %p56 = por %p54, %p55
      %p57 = scmp.ne.s32.totalorder %s49, %s52
      %p58 = scmp.eq.s32.totalorder %s13, 0
      %p59 = por %p57, %p58
      %p60 = scmp.ne.s32.totalorder %s49, %s52
      %p61 = scmp.eq.s32.totalorder %s18, 1
      %p62 = por %p60, %p61
      %p63 = scmp.ne.s32.totalorder %s52, %s53
      %p64 = scmp.eq.s32.totalorder %s18, 0
      %p65 = por %p63, %p64
      %p66 = scmp.ne.s32.totalorder %s52, %s53
      %p67 = scmp.eq.s32.totalorder %s19, 1
      %p68 = por %p66, %p67
      %p70 = scmp.ne.s32.totalorder %s53, %s69
      %p71 = scmp.eq.s32.totalorder %s19, 0
      %p72 = por %p70, %p71
      %s74 = sadd.s32 %s73, 1
      %p77 = scmp.eq.s32.totalorder %s13, 1
      %p78 = scmp.ne.s32.totalorder %s73, %s75
      %p79 = scmp.eq.s32.totalorder %s13, 0
      %p80 = por %p78, %p79
      %p81 = scmp.ne.s32.totalorder %s73, %s75
      %p82 = scmp.eq.s32.totalorder %s18, 1
      %p83 = por %p81, %p82
      %p84 = scmp.ne.s32.totalorder %s75, %s76
      %p85 = scmp.eq.s32.totalorder %s18, 0
      %p86 = por %p84, %p85
      %p87 = scmp.ne.s32.totalorder %s75, %s76
      %p88 = scmp.eq.s32.totalorder %s19, 1
      %p89 = por %p87, %p88
      %p91 = scmp.ne.s32.totalorder %s76, %s90
      %p92 = scmp.eq.s32.totalorder %s19, 0
      %p93 = por %p91, %p92
      %s95 = sadd.s32 %s94, 1
      %p98 = scmp.eq.s32.totalorder %s13, 1
      %p99 = scmp.ne.s32.totalorder %s94, %s96
      %p100 = scmp.eq.s32.totalorder %s13, 0
      %p101 = por %p99, %p100
      %p102 = scmp.ne.s32.totalorder %s94, %s96
      %p103 = scmp.eq.s32.totalorder %s18, 1
      %p104 = por %p102, %p103
      %p105 = scmp.ne.s32.totalorder %s96, %s97
      %p106 = scmp.eq.s32.totalorder %s18, 0
      %p107 = por %p105, %p106
      %p108 = scmp.ne.s32.totalorder %s96, %s97
      %p109 = scmp.eq.s32.totalorder %s19, 1
      %p110 = por %p108, %p109
      %p112 = scmp.ne.s32.totalorder %s97, %s111
      %p113 = scmp.eq.s32.totalorder %s19, 0
      %p114 = por %p112, %p113
      %s115 = ssub.s32 %s13, %s20
      %p116 = scmp.eq.s32.totalorder %s115, 0
      %s118 = sadd.s32 %s117, 1
      %s119 = scalar_select %p116, %s117, %s118
      %p122 = pneg %p116
      %p123 = scmp.eq.s32.totalorder %s13, 1
      %p124 = por %p122, %p123
      %p125 = scmp.ne.s32.totalorder %s117, %s120
      %p126 = scmp.eq.s32.totalorder %s13, 0
      %p127 = por %p125, %p126
      %p128 = scmp.ne.s32.totalorder %s117, %s120
      %p129 = scmp.eq.s32.totalorder %s18, 1
      %p130 = por %p128, %p129
      %p131 = scmp.ne.s32.totalorder %s120, %s121
      %p132 = scmp.eq.s32.totalorder %s18, 0
      %p133 = por %p131, %p132
      %p134 = scmp.ne.s32.totalorder %s120, %s121
      %p135 = scmp.eq.s32.totalorder %s19, 1
      %p136 = por %p134, %p135
      %p138 = scmp.ne.s32.totalorder %s121, %s137
      %p139 = scmp.eq.s32.totalorder %s19, 0
      %p140 = por %p138, %p139
      %p141 = scmp.le.s32.totalorder 1, %s13
      %p142 = scmp.lt.s32.totalorder %s13, 3
      %p143 = pnand %p141, %p142
      %p144 = pneg %p143
      // Predicated region
      $region9: #{encoder_forward.23} parent=5 // pred_check
        _
      $region10: #{encoder_forward.23} parent=5 // pred_check_branch
        %146 = sbr.rel (%p143) target = $region12
      $region11: #{encoder_forward.23} parent=5 // pred_region
        %s147 = ssub.s32 %s13, 1
        // Predicated region
        $region13: #{encoder_forward.23} parent=11 // pred_check
          %p148 = pneg %p86
        $region14: #{encoder_forward.23} parent=11 // pred_check_branch
          %150 = sbr.rel (%p148) target = $region16
        $region15: #{encoder_forward.23} parent=11 // pred_region
          _
        $region16: #{encoder_forward.23} parent=11 // pred_fallthru
          _
        // Predicated region
        $region17: #{encoder_forward.23} parent=11 // pred_check
          %p151 = pneg %p107
        $region18: #{encoder_forward.23} parent=11 // pred_check_branch
          %153 = sbr.rel (%p151) target = $region20
        $region19: #{encoder_forward.23} parent=11 // pred_region
          _
        $region20: #{encoder_forward.23} parent=11 // pred_fallthru
          _
      $region12: #{encoder_forward.23} parent=5 // pred_fallthru
        _
      %p154 = scmp.lt.s32.totalorder %s13, 2
      // Predicated region
      $region21: #{encoder_forward.23} parent=5 // pred_check
        %p155 = pneg %p154
      $region22: #{encoder_forward.23} parent=5 // pred_check_branch
        %157 = sbr.rel (%p155) target = $region24
      $region23: #{encoder_forward.23} parent=5 // pred_region
        // Predicated region
        $region25: #{encoder_forward.23} parent=23 // pred_check
          %p158 = pneg %p33
        $region26: #{encoder_forward.23} parent=23 // pred_check_branch
          %160 = sbr.rel (%p158) target = $region28
        $region27: #{encoder_forward.23} parent=23 // pred_region
          %s161 = smul.u32 2, %s13
          %p162 = scmp.lt.s32.totalorder %s161, 3
          %s163 = scalar_select %p162, %s161, 3
          %s164 = smul.addr %s163, 8
          %s165 = scalar_lea.vmem %s0, %s164
          %s166 = smul.u32 2, %s13
        $region28: #{encoder_forward.23} parent=23 // pred_fallthru
          _
        // Predicated region
        $region29: #{encoder_forward.23} parent=23 // pred_check
          %p167 = pneg %p59
        $region30: #{encoder_forward.23} parent=23 // pred_check_branch
          %169 = sbr.rel (%p167) target = $region32
        $region31: #{encoder_forward.23} parent=23 // pred_region
          %s170 = smul.u32 2, %s13
          %p171 = scmp.lt.s32.totalorder %s170, 3
          %s172 = scalar_select %p171, %s170, 3
          %s173 = smul.addr %s172, 8
          %s174 = scalar_lea.vmem %s1, %s173
          %s175 = smul.u32 2, %s13
        $region32: #{encoder_forward.23} parent=23 // pred_fallthru
          _
      $region24: #{encoder_forward.23} parent=5 // pred_fallthru
        _
      %p176 = scmp.le.s32.totalorder 1, %s13
      %p177 = scmp.lt.s32.totalorder %s13, 3
      %p178 = pnand %p176, %p177
      %p179 = pneg %p178
      // Predicated region
      $region33: #{encoder_forward.23} parent=5 // pred_check
        _
      $region34: #{encoder_forward.23} parent=5 // pred_check_branch
        %181 = sbr.rel (%p178) target = $region36
      $region35: #{encoder_forward.23} parent=5 // pred_region
        %s182 = ssub.s32 %s13, 1
        %s183 = smul.u32 2, %s18
        %p184 = scmp.lt.s32.totalorder %s183, 3
        %s185 = scalar_select %p184, %s183, 3
        %s186 = smul.addr %s185, 8
        %s187 = scalar_lea.vmem %s0, %s186
        %p188 = pneg %p39
        %p189 = pneg %p36
        %s190 = smul.u32 2, %s18
        %p191 = scmp.lt.s32.totalorder %s190, 3
        %s192 = scalar_select %p191, %s190, 3
        %s193 = smul.addr %s192, 8
        %s194 = scalar_lea.vmem %s1, %s193
        %p195 = pneg %p65
        %p196 = pneg %p62
        %p197 = pneg %p86
        %p198 = pneg %p83
        %p199 = pneg %p107
        %p200 = pneg %p104
        %p201 = pneg %p133
        %p202 = pneg %p130
        %s203 = sand.u32 %s120, 1
        %s204 = scalar_lea.sflag [#allocation3], %s203
        %s205 = sand.u32 %s120, 1
        %s206 = smul.addr %s205, 16
        %s207 = scalar_lea.vmem [#allocation2], %s206
        %s208 = smul.u32 2, %s18
        %p209 = scmp.lt.s32.totalorder %s208, 3
        %s210 = scalar_select %p209, %s208, 3
        %s211 = smul.addr %s210, 8
        %s212 = scalar_lea.vmem %s0, %s211
        %s213 = smul.u32 2, %s18
        %s214 = smul.u32 2, %s18
        %p215 = scmp.lt.s32.totalorder %s214, 3
        %s216 = scalar_select %p215, %s214, 3
        %s217 = smul.addr %s216, 8
        %s218 = scalar_lea.vmem %s1, %s217
        %s219 = smul.u32 2, %s18
        %s220 = smul.u32 2, %s18
        %v221 = vld [vmem:[%s212] sm:$0xff]
        %v222 = vld [vmem:[%s212 + $0x8] sm:$0xff]
        %v223 = vld [vmem:[%s218] sm:$0xff]
        %v224 = vld [vmem:[%s218 + $0x8] sm:$0xff]
        %v225 = vadd.f32 %v221, %v223
        %v226 = vadd.f32 %v222, %v224
        %v227 = vld [vmem:[%s2] sm:$0x1]
        %v228 = vld [vmem:[%s3] sm:$0x1]
        %vm229 = vcmask 523264
        %v230 = vsel %vm229, %v225, 0.0
        %231 = vadd.xlane.f32.xlu0 %v230
        %v232 = vpop.xlane.xlu0 %231
        %v233 = vsel %vm229, %v226, 0.0
        %234 = vadd.xlane.f32.xlu0 %v233
        %v235 = vpop.xlane.xlu0 %234
        %v236 = vrcp.pop 64.0
        %v237 = vmul.f32 64.0, %v236
        %v238 = vsub.f32 1.0, %v237
        %v239 = vmul.f32 %v236, %v238
        %v240 = vadd.f32 %v236, %v239
        %vm241 = vweird.f32 %v236
        %v242 = vsel %vm241, %v236, %v240
        %v243 = vmul.f32 %v232, %v242
        %v244 = vmul.f32 %v235, %v242
        %v245 = vsub.f32 %v225, %v243
        %v246 = vsub.f32 %v226, %v244
        %v247 = vmul.f32 %v245, %v245
        %v248 = vmul.f32 %v246, %v246
        %v249 = vsel %vm229, %v247, 0.0
        %250 = vadd.xlane.f32.xlu0 %v249
        %v251 = vpop.xlane.xlu0 %250
        %v252 = vsel %vm229, %v248, 0.0
        %253 = vadd.xlane.f32.xlu0 %v252
        %v254 = vpop.xlane.xlu0 %253
        %v255 = vmul.f32 %v251, %v242
        %v256 = vmul.f32 %v254, %v242
        %v257 = vadd.f32 %v255, 1e-05
        %v258 = vadd.f32 %v256, 1e-05
        %v259 = vrsqrt.pop %v257
        %v260 = vmul.f32 %v259, %v257
        %v261 = vmul.f32 %v260, %v259
        %v262 = vmul.f32 0.5, %v261
        %v263 = vsub.f32 1.5, %v262
        %v264 = vmul.f32 %v259, %v263
        %vm265 = vweird.f32 %v257
        %vm266 = vweird.f32 %v259
        %vm267 = vmor %vm265, %vm266
        %v268 = vsel %vm267, %v259, %v264
        %v269 = vrsqrt.pop %v258
        %v270 = vmul.f32 %v269, %v258
        %v271 = vmul.f32 %v270, %v269
        %v272 = vmul.f32 0.5, %v271
        %v273 = vsub.f32 1.5, %v272
        %v274 = vmul.f32 %v269, %v273
        %vm275 = vweird.f32 %v258
        %vm276 = vweird.f32 %v269
        %vm277 = vmor %vm275, %vm276
        %v278 = vsel %vm277, %v269, %v274
        %v279 = vmul.f32 %v245, %v268
        %v280 = vmul.f32 %v246, %v278
        %v282 = vperm.slane %v227, 0
        %v284 = vmul.f32 %v279, %v282
        %v285 = vmul.f32 %v280, %v282
        %v287 = vperm.slane %v228, 0
        %v289 = vadd.f32 %v284, %v287
        %v290 = vadd.f32 %v285, %v287
        %291 = vst.msk [vmem:[%s207] sm:$0xff] %vm229, %v289
        %292 = vst.msk [vmem:[%s207 + $0x8] sm:$0xff] %vm229, %v290
        %s293 = sand.u32 %s120, 1
        %s294 = scalar_lea.sflag [#allocation3], %s293
        %s295 = sand.u32 %s120, 1
        %s296 = smul.addr %s295, 16
        %s297 = scalar_lea.vmem [#allocation2], %s296
        // Predicated region
        $region37: #{encoder_forward.23} parent=35 // pred_check
          %p298 = pneg %p130
        $region38: #{encoder_forward.23} parent=35 // pred_check_branch
          %300 = sbr.rel (%p298) target = $region40
        $region39: #{encoder_forward.23} parent=35 // pred_region
          %s301 = smul.u32 2, %s18
          %303 = vsyncadd %s294, 0
          %s304 = smul.addr %s301, 8
          %s305 = scalar_lea.hbm %s4, %s304
          %s306 = sshll.u32 %s297, 4
          %s307 = int_to_ptr.vmem [resolvable:$true] %s306
          %s308 = sshll.u32 %s305, 4
          %s309 = int_to_ptr.hbm [resolvable:$true] %s308
          %314 = dma.vmem_to_hbm [thread:$0]  %s307, 256, %s309, %s294, 128, 128, 8
        $region40: #{encoder_forward.23} parent=35 // pred_fallthru
          _
      $region36: #{encoder_forward.23} parent=5 // pred_fallthru
        _
      %p315 = scmp.le.s32.totalorder 2, %s13
      // Predicated region
      $region41: #{encoder_forward.23} parent=5 // pred_check
        %p316 = pneg %p315
      $region42: #{encoder_forward.23} parent=5 // pred_check_branch
        %318 = sbr.rel (%p316) target = $region44
      $region43: #{encoder_forward.23} parent=5 // pred_region
        %s319 = ssub.s32 %s13, 2
        // Predicated region
        $region45: #{encoder_forward.23} parent=43 // pred_check
          %p320 = pneg %p136
        $region46: #{encoder_forward.23} parent=43 // pred_check_branch
          %322 = sbr.rel (%p320) target = $region48
        $region47: #{encoder_forward.23} parent=43 // pred_region
          %s323 = sand.u32 %s121, 1
          %s324 = scalar_lea.sflag [#allocation3], %s323
          %s325 = sand.u32 %s121, 1
          %s326 = smul.addr %s325, 16
          %s327 = scalar_lea.vmem [#allocation2], %s326
          %329 = dma.done %s324, 256
        $region48: #{encoder_forward.23} parent=43 // pred_fallthru
          _
      $region44: #{encoder_forward.23} parent=5 // pred_fallthru
        _
    $region6: #{encoder_forward.23} parent=1 // loop_footer
      %s17 = sadd.s32 1, %s13
    $region7: #{encoder_forward.23} parent=1 // loop_footer_branch
      %12 = sbr.rel target = $region3
    $region8: #{encoder_forward.23} parent=1 // loop_exit
      _
    %330 = vsyncpa [#allocation3], 1
    %s331 = scalar_lea.sflag [#allocation3], 1
    %332 = vsyncpa %s331, 1

</llo_original>
